<compile_context>
chip_gen: v7x
topology: tpu7x:2x2x1
jax: 0.10.0
libtpu: 0.0.40
codegen_flags: <defaults>
</compile_context>

<pallas_src>
import math
import numpy as np

import jax
import jax.numpy as jnp
from jax import lax
from jax.experimental import pallas as pl
from jax.experimental.pallas import tpu as pltpu

LANE = 128
_VMEM_LIMIT = 64 * 1024 * 1024      # <= physical VMEM on v5e/v6e/v7x
_VMEM_BUDGET = 40 * 1024 * 1024     # tile-size budget (headroom for scratch)
_NUM_CORE_SPLIT = 2                 # megacore-friendly split (v7x); harmless on 1 TC


# ----------------------------------------------------------------------------
# Pallas kernels
# ----------------------------------------------------------------------------
def interp_matmul_kernel(xlt_ref, xrb_ref, xlb_ref, xrt_ref,
                         glt_ref, grb_ref, glb_ref, grt_ref,
                         w_ref, e_ref, y_ref, sum_ref, ssq_ref):
    """Fused trilinear combine + (num_param,1,1)-conv-as-matmul + BN stats.

    x_* refs:  (tile_m, inc*N) bf16 gathered corner stacks (channel-major, N minor)
    g_* refs:  (tile_m, N) f32 trilinear weights (de-duplicated over channels)
    w_ref:     (inc*N, outc) f32 conv weight
    e_ref:     (N, inc*N) f32 constant 0/1 expander, E[n, c*N+n] = 1
    """
    e = e_ref[...]

    def bcast(g_ref):
        # (tile_m, N) -> (tile_m, inc*N) channel-major broadcast done on the
        # MXU (idle in this memory-bound kernel); exact up to bf16 rounding.
        return jnp.dot(g_ref[...], e, preferred_element_type=jnp.float32)

    # elementwise combine in f32 (v5e has no bf16 VPU; converts are free filler)
    x_off = (bcast(glt_ref) * xlt_ref[...].astype(jnp.float32) +
             bcast(grb_ref) * xrb_ref[...].astype(jnp.float32) +
             bcast(glb_ref) * xlb_ref[...].astype(jnp.float32) +
             bcast(grt_ref) * xrt_ref[...].astype(jnp.float32))

    # (num_param,1,1)/stride(num_param,1,1) conv  ==  matmul over K = inc*N
    y = jnp.dot(x_off, w_ref[...], preferred_element_type=jnp.float32)
    y_ref[...] = y

    # per-core partial BatchNorm statistics, accumulated over the inner axis
    @pl.when(pl.program_id(1) == 0)
    def _():
        sum_ref[...] = jnp.zeros_like(sum_ref)
        ssq_ref[...] = jnp.zeros_like(ssq_ref)

    sum_ref[...] += jnp.sum(y, axis=0, keepdims=True)[None]
    ssq_ref[...] += jnp.sum(y * y, axis=0, keepdims=True)[None]


def bn_silu_kernel(y_ref, a_ref, b_ref, o_ref):
    # y_hat = gamma*(y-mean)/sqrt(var+eps)+beta folded into  y*a + b ; SiLU(y_hat)
    yh = y_ref[...] * a_ref[...] + b_ref[...]
    o_ref[...] = yh * jax.nn.sigmoid(yh)


# ----------------------------------------------------------------------------
# Parameter construction (deterministic, mirrors the module's __init__ shapes)
# ----------------------------------------------------------------------------
def make_params(key, inc, outc, num_param):
    k1, k2 = jax.random.split(key)
    # p_conv = Conv3d(inc, 3*num_param, k=3, pad=1): weight is const-0 per module
    # init, bias is free (deterministic random so offsets are non-trivial).
    p_w = jnp.zeros((3 * num_param, inc, 3, 3, 3), jnp.float32)
    p_b = 0.75 * jax.random.uniform(k1, (3 * num_param,), jnp.float32,
                                    minval=-1.0, maxval=1.0)
    # conv = Conv3d(inc, outc, k=(num_param,1,1), stride=(num_param,1,1), bias=False)
    conv_w = 0.2 * jax.random.normal(k2, (outc, inc, num_param), jnp.float32)
    # BatchNorm3d default affine init
    gamma = jnp.ones((outc,), jnp.float32)
    beta = jnp.zeros((outc,), jnp.float32)
    return dict(p_w=p_w, p_b=p_b, conv_w=conv_w, gamma=gamma, beta=beta)


def get_p_n(num_param):
    """Replica of LDConv_3D._get_p_n (flat (3*num_param,) float array)."""
    base_int = round(math.sqrt(num_param))
    depth_number = round(num_param ** (1.0 / 3.0))
    row_number = num_param // (base_int * depth_number)
    mod_number = num_param % (base_int * depth_number)
    zz, xx, yy = np.meshgrid(np.arange(depth_number), np.arange(row_number),
                             np.arange(base_int), indexing='ij')
    z, x, y = zz.ravel(), xx.ravel(), yy.ravel()
    if mod_number > 0:
        mz, mx, my = np.meshgrid(np.arange(depth_number, depth_number + 1),
                                 np.arange(row_number, row_number + 1),
                                 np.arange(mod_number), indexing='ij')
        z = np.concatenate([z, mz.ravel()])
        x = np.concatenate([x, mx.ravel()])
        y = np.concatenate([y, my.ravel()])
    return np.concatenate([z, x, y]).astype(np.float32)


# ----------------------------------------------------------------------------
# Glue: offsets, sampling coordinates, gathers (data-dependent), row packing
# ----------------------------------------------------------------------------
def _prepare_rows(x, params, num_param, stride):
    b, c, D, H, W = x.shape
    N = num_param

    # p_conv (weight == 0, so this is bias broadcast; still computed faithfully)
    offset = lax.conv_general_dilated(
        x, params['p_w'], window_strides=(stride,) * 3,
        padding=((1, 1), (1, 1), (1, 1)),
        dimension_numbers=('NCDHW', 'OIDHW', 'NCDHW'))
    offset = offset + params['p_b'][None, :, None, None, None]
    _, _, d, h, w = offset.shape

    p_n = jnp.asarray(get_p_n(N)).reshape(1, 3 * N, 1, 1, 1)
    z0, x0, y0 = jnp.meshgrid(jnp.arange(0, d * stride, stride),
                              jnp.arange(0, h * stride, stride),
                              jnp.arange(0, w * stride, stride), indexing='ij')
    p_0 = jnp.concatenate(
        [jnp.broadcast_to(z0[None, None].astype(jnp.float32), (1, N, d, h, w)),
         jnp.broadcast_to(x0[None, None].astype(jnp.float32), (1, N, d, h, w)),
         jnp.broadcast_to(y0[None, None].astype(jnp.float32), (1, N, d, h, w))],
        axis=1)

    p = p_0 + p_n + offset                          # (b, 3N, d, h, w)
    p = jnp.transpose(p, (0, 2, 3, 4, 1))           # (b, d, h, w, 3N)

    pz, px, py = p[..., :N], p[..., N:2 * N], p[..., 2 * N:]
    fz, fx, fy = jnp.floor(pz), jnp.floor(px), jnp.floor(py)

    clz = lambda v: jnp.clip(v, 0.0, D - 1)
    clh = lambda v: jnp.clip(v, 0.0, H - 1)
    clw = lambda v: jnp.clip(v, 0.0, W - 1)

    qz_lt, qx_lt, qy_lt = clz(fz), clh(fx), clw(fy)
    qz_rb, qx_rb, qy_rb = clz(fz + 1), clh(fx + 1), clw(fy + 1)
    pz, px, py = clz(pz), clh(px), clw(py)

    g_lt = (1 + (qz_lt - pz)) * (1 + (qx_lt - px)) * (1 + (qy_lt - py))
    g_rb = (1 - (qz_rb - pz)) * (1 - (qx_rb - px)) * (1 - (qy_rb - py))
    g_lb = (1 + (qz_lt - pz)) * (1 - (qx_rb - px)) * (1 + (qy_lt - py))
    g_rt = (1 - (qz_rb - pz)) * (1 + (qx_lt - px)) * (1 - (qy_rb - py))

    # TODO(synk): the data-dependent per-element corner gather stays in XLA
    # (take_along_axis); an in-kernel DMA gather would need per-row descriptors
    # (paged-attention style) and is left out of this version.
    x_flat = x.reshape(b, c, D * H * W)

    def gather(qz, qx, qy):
        idx = (qz.astype(jnp.int32) * (H * W) +
               qx.astype(jnp.int32) * W +
               qy.astype(jnp.int32)).reshape(b, 1, -1)
        out = jnp.take_along_axis(
            x_flat, jnp.broadcast_to(idx, (b, c, idx.shape[-1])), axis=2)
        return out.reshape(b, c, d, h, w, N)

    xq_lt = gather(qz_lt, qx_lt, qy_lt)
    xq_rb = gather(qz_rb, qx_rb, qy_rb)
    xq_lb = gather(qz_lt, qx_rb, qy_lt)   # q_lb = (z_lt, x_rb, y_lt)
    xq_rt = gather(qz_rb, qx_lt, qy_rb)   # q_rt = (z_rb, x_lt, y_rb)

    M = b * d * h * w
    K = c * N

    def to_mk_x(xq):   # (b,c,d,h,w,N) -> (M, c*N) bf16 [channel-major, n minor]
        return jnp.transpose(xq, (0, 2, 3, 4, 1, 5)).reshape(M, K).astype(jnp.bfloat16)

    def to_mk_g(g):    # (b,d,h,w,N) -> (M, N) f32  (de-duplicated over channels)
        return g.reshape(M, N).astype(jnp.float32)

    xqs = tuple(to_mk_x(a) for a in (xq_lt, xq_rb, xq_lb, xq_rt))
    gs = tuple(to_mk_g(a) for a in (g_lt, g_rb, g_lb, g_rt))

    # conv weight (outc, inc, num_param) -> (inc*num_param, outc), matching K order
    w_mat = jnp.transpose(params['conv_w'], (1, 2, 0)).reshape(K, -1)
    return xqs, gs, w_mat, (b, d, h, w, M, K, c, N)


def _round16(v):
    return max(16, (v // 16) * 16)


def _pad_rows(arr, rows):
    pad = rows - arr.shape[0]
    if pad == 0:
        return arr
    return jnp.pad(arr, ((0, pad),) + ((0, 0),) * (arr.ndim - 1))


# ----------------------------------------------------------------------------
# Forward pass (Pallas)
# ----------------------------------------------------------------------------
def ldconv3d_forward(x, params, num_param, stride=1, tile_m=1024,
                     tile_rows2=1024, eps=1e-5):
    xqs, gs, w_mat, (b, d, h, w, M, K, c, N) = _prepare_rows(
        x, params, num_param, stride)
    outc = w_mat.shape[1]

    # ---- kernel 1 tiling: big row tiles, capped by VMEM budget & 2-way split
    def footprint(t):   # double-buffered VMEM bytes for one grid step
        return 2 * (4 * t * K * 2 + 4 * t * N * 4 + t * outc * 4 +
                    K * outc * 4 + N * K * 4) + 4 * _NUM_CORE_SPLIT * outc * 4

    tm = _round16(min(tile_m, -(-M // _NUM_CORE_SPLIT)))
    while tm > 16 and footprint(tm) > _VMEM_BUDGET:
        tm = _round16(tm // 2)

    tiles_per_core = -(-M // (_NUM_CORE_SPLIT * tm))
    M_pad = _NUM_CORE_SPLIT * tiles_per_core * tm
    # zero-pad rows: padded rows give y == 0 and contribute 0 to sum / ssq
    xqs = tuple(_pad_rows(a, M_pad) for a in xqs)
    gs = tuple(_pad_rows(a, M_pad) for a in gs)

    # constant 0/1 channel-broadcast expander, E[n, ch*N + n] = 1
    e_mat = jnp.tile(jnp.eye(N, dtype=jnp.float32), (1, c))

    row_x = pl.BlockSpec((tm, K), lambda core, i: (core * tiles_per_core + i, 0))
    row_g = pl.BlockSpec((tm, N), lambda core, i: (core * tiles_per_core + i, 0))

    y, psum, pssq = pl.pallas_call(
        interp_matmul_kernel,
        out_shape=(jax.ShapeDtypeStruct((M_pad, outc), jnp.float32),
                   jax.ShapeDtypeStruct((_NUM_CORE_SPLIT, 1, outc), jnp.float32),
                   jax.ShapeDtypeStruct((_NUM_CORE_SPLIT, 1, outc), jnp.float32)),
        grid_spec=pltpu.PrefetchScalarGridSpec(
            num_scalar_prefetch=0,
            grid=(_NUM_CORE_SPLIT, tiles_per_core),
            in_specs=[row_x] * 4 + [row_g] * 4
                     + [pl.BlockSpec((K, outc), lambda core, i: (0, 0)),
                        pl.BlockSpec((N, K), lambda core, i: (0, 0))],
            out_specs=[pl.BlockSpec((tm, outc),
                                    lambda core, i: (core * tiles_per_core + i, 0)),
                       pl.BlockSpec((1, 1, outc), lambda core, i: (core, 0, 0)),
                       pl.BlockSpec((1, 1, outc), lambda core, i: (core, 0, 0))]),
        compiler_params=pltpu.CompilerParams(
            dimension_semantics=("parallel", "arbitrary"),
            vmem_limit_bytes=_VMEM_LIMIT),
    )(*xqs, *gs, w_mat, e_mat)

    # BatchNorm3d training-mode batch statistics (biased variance), f32.
    ysum = jnp.sum(psum, axis=(0, 1))
    yssq = jnp.sum(pssq, axis=(0, 1))
    mean = ysum / M
    var = jnp.maximum(yssq / M - mean * mean, 0.0)
    inv = lax.rsqrt(var + eps)
    a_vec = params['gamma'] * inv
    b_vec = params['beta'] - mean * a_vec

    # ---- kernel 2: BN affine + SiLU on a lane-dense (rows, 128) view of y
    if LANE % outc == 0 and (M_pad * outc) % LANE == 0:
        Mo = M_pad * outc // LANE
        reps = LANE // outc
        a_lane = jnp.tile(a_vec, reps).reshape(1, LANE)
        b_lane = jnp.tile(b_vec, reps).reshape(1, LANE)
        y_flat = y.reshape(Mo, LANE)                    # free row-major reshape
        tm2 = Mo if Mo <= tile_rows2 else (tile_rows2 // 8) * 8
        Mo_pad = -(-Mo // tm2) * tm2
        y_flat = _pad_rows(y_flat, Mo_pad)
        out_flat = pl.pallas_call(
            bn_silu_kernel,
            out_shape=jax.ShapeDtypeStruct((Mo_pad, LANE), jnp.float32),
            grid_spec=pltpu.PrefetchScalarGridSpec(
                num_scalar_prefetch=0,
                grid=(Mo_pad // tm2,),
                in_specs=[pl.BlockSpec((tm2, LANE), lambda i: (i, 0)),
                          pl.BlockSpec((1, LANE), lambda i: (0, 0)),
                          pl.BlockSpec((1, LANE), lambda i: (0, 0))],
                out_specs=pl.BlockSpec((tm2, LANE), lambda i: (i, 0))),
            compiler_params=pltpu.CompilerParams(
                dimension_semantics=("parallel",),
                vmem_limit_bytes=_VMEM_LIMIT),
        )(y_flat, a_lane, b_lane)
        out_rows = out_flat[:Mo].reshape(M_pad, outc)[:M]
    else:
        # fallback: lane-sparse (M_pad, outc) layout (only when 128 % outc != 0)
        out_rows = pl.pallas_call(
            bn_silu_kernel,
            out_shape=jax.ShapeDtypeStruct((M_pad, outc), jnp.float32),
            grid_spec=pltpu.PrefetchScalarGridSpec(
                num_scalar_prefetch=0,
                grid=(M_pad // tm,),
                in_specs=[pl.BlockSpec((tm, outc), lambda i: (i, 0)),
                          pl.BlockSpec((1, outc), lambda i: (0, 0)),
                          pl.BlockSpec((1, outc), lambda i: (0, 0))],
                out_specs=pl.BlockSpec((tm, outc), lambda i: (i, 0))),
            compiler_params=pltpu.CompilerParams(
                dimension_semantics=("parallel",),
                vmem_limit_bytes=_VMEM_LIMIT),
        )(y, a_vec.reshape(1, outc), b_vec.reshape(1, outc))[:M]

    # back to NCDHW (module contract).
    # TODO(synk): this final transpose stays in XLA; folding the NCDHW layout
    # into kernel 2's out_spec would need a scatter-style index_map.
    return out_rows.reshape(b, d, h, w, outc).transpose(0, 4, 1, 2, 3)


# ----------------------------------------------------------------------------
# Pure-JAX reference of the same forward (numerical sanity check)
# ----------------------------------------------------------------------------
def ldconv3d_reference(x, params, num_param, stride=1, eps=1e-5):
    xqs, gs, w_mat, (b, d, h, w, M, K, c, N) = _prepare_rows(
        x, params, num_param, stride)
    x_off = sum(jnp.tile(g, (1, c)) * xq.astype(jnp.float32)
                for g, xq in zip(gs, xqs))
    y = jnp.dot(x_off, w_mat, precision=lax.Precision.HIGHEST)
    mean = jnp.mean(y, axis=0)
    var = jnp.mean(y * y, axis=0) - mean * mean
    yh = (y - mean) * lax.rsqrt(var + eps) * params['gamma'] + params['beta']
    out = yh * jax.nn.sigmoid(yh)
    return out.reshape(b, d, h, w, -1).transpose(0, 4, 1, 2, 3)


# ----------------------------------------------------------------------------
if __name__ == "__main__":
    key = jax.random.PRNGKey(0)
    kx, kp = jax.random.split(key)

    b, inc, D, H, W = 2, 4, 4, 8, 8
    outc, num_param, stride = 8, 8, 1

    x = jax.random.normal(kx, (b, inc, D, H, W), jnp.float32)
    params = make_params(kp, inc, outc, num_param)

    out = jax.block_until_ready(ldconv3d_forward(x, params, num_param, stride))
    ref = jax.block_until_ready(ldconv3d_reference(x, params, num_param, stride))

    assert out.shape == (b, outc, D, H, W), out.shape
    assert bool(jnp.all(jnp.isfinite(out)))
    assert np.allclose(np.asarray(out), np.asarray(ref), atol=1e-2, rtol=1e-2), \
        "Pallas output mismatch vs JAX reference"

    print("KERNEL_OK")
</pallas_src>

<mosaic_0001>
module attributes {stable_mosaic.version = 11 : i64} {
  func.func @interp_matmul_kernel(%arg0: i32, %arg1: i32, %arg2: memref<256x32xbf16, #tpu.memory_space<vmem>>, %arg3: memref<256x32xbf16, #tpu.memory_space<vmem>>, %arg4: memref<256x32xbf16, #tpu.memory_space<vmem>>, %arg5: memref<256x32xbf16, #tpu.memory_space<vmem>>, %arg6: memref<256x8xf32, #tpu.memory_space<vmem>>, %arg7: memref<256x8xf32, #tpu.memory_space<vmem>>, %arg8: memref<256x8xf32, #tpu.memory_space<vmem>>, %arg9: memref<256x8xf32, #tpu.memory_space<vmem>>, %arg10: memref<32x8xf32, #tpu.memory_space<vmem>>, %arg11: memref<8x32xf32, #tpu.memory_space<vmem>>, %arg12: memref<256x8xf32, #tpu.memory_space<vmem>>, %arg13: memref<1x1x8xf32, #tpu.memory_space<vmem>>, %arg14: memref<1x1x8xf32, #tpu.memory_space<vmem>>) attributes {dimension_semantics = [#tpu.dimension_semantics<parallel>, #tpu.dimension_semantics<arbitrary>], iteration_bounds = array<i64: 2, 1>, scalar_prefetch = 0 : i64, scratch_operands = 0 : i64, tpu.core_type = #tpu.core_type<tc>, window_params = [{transform_indices = @transform_0, window_bounds = array<i64: 256, 32>}, {transform_indices = @transform_1, window_bounds = array<i64: 256, 32>}, {transform_indices = @transform_2, window_bounds = array<i64: 256, 32>}, {transform_indices = @transform_3, window_bounds = array<i64: 256, 32>}, {transform_indices = @transform_4, window_bounds = array<i64: 256, 8>}, {transform_indices = @transform_5, window_bounds = array<i64: 256, 8>}, {transform_indices = @transform_6, window_bounds = array<i64: 256, 8>}, {transform_indices = @transform_7, window_bounds = array<i64: 256, 8>}, {pipeline_mode = #tpu.pipeline_mode<synchronous>, transform_indices = @transform_8, window_bounds = array<i64: 32, 8>}, {pipeline_mode = #tpu.pipeline_mode<synchronous>, transform_indices = @transform_9, window_bounds = array<i64: 8, 32>}, {transform_indices = @transform_10, window_bounds = array<i64: 256, 8>}, {transform_indices = @transform_11, window_bounds = array<i64: 1, 1, 8>}, {transform_indices = @transform_12, window_bounds = array<i64: 1, 1, 8>}]} {
    %c0 = arith.constant 0 : index
    %c0_0 = arith.constant 0 : index
    %0 = vector.load %arg11[%c0, %c0_0] : memref<8x32xf32, #tpu.memory_space<vmem>>, vector<8x32xf32>
    %c0_1 = arith.constant 0 : index
    %c0_2 = arith.constant 0 : index
    %1 = vector.load %arg6[%c0_1, %c0_2] : memref<256x8xf32, #tpu.memory_space<vmem>>, vector<256x8xf32>
    %cst = arith.constant dense<0.000000e+00> : vector<256x32xf32>
    %2 = tpu.matmul %1, %0, %cst {dimension_numbers = #tpu.dot_dimension_numbers<[1], [0], [0], [1], [0, 0, 1, 1], [], []>} : vector<256x8xf32>, vector<8x32xf32>, vector<256x32xf32> -> vector<256x32xf32>
    %c0_3 = arith.constant 0 : index
    %c0_4 = arith.constant 0 : index
    %3 = vector.load %arg2[%c0_3, %c0_4] : memref<256x32xbf16, #tpu.memory_space<vmem>>, vector<256x32xbf16>
    %4 = arith.extf %3 : vector<256x32xbf16> to vector<256x32xf32>
    %5 = arith.mulf %2, %4 : vector<256x32xf32>
    %c0_5 = arith.constant 0 : index
    %c0_6 = arith.constant 0 : index
    %6 = vector.load %arg7[%c0_5, %c0_6] : memref<256x8xf32, #tpu.memory_space<vmem>>, vector<256x8xf32>
    %cst_7 = arith.constant dense<0.000000e+00> : vector<256x32xf32>
    %7 = tpu.matmul %6, %0, %cst_7 {dimension_numbers = #tpu.dot_dimension_numbers<[1], [0], [0], [1], [0, 0, 1, 1], [], []>} : vector<256x8xf32>, vector<8x32xf32>, vector<256x32xf32> -> vector<256x32xf32>
    %c0_8 = arith.constant 0 : index
    %c0_9 = arith.constant 0 : index
    %8 = vector.load %arg3[%c0_8, %c0_9] : memref<256x32xbf16, #tpu.memory_space<vmem>>, vector<256x32xbf16>
    %9 = arith.extf %8 : vector<256x32xbf16> to vector<256x32xf32>
    %10 = arith.mulf %7, %9 : vector<256x32xf32>
    %11 = arith.addf %5, %10 : vector<256x32xf32>
    %c0_10 = arith.constant 0 : index
    %c0_11 = arith.constant 0 : index
    %12 = vector.load %arg8[%c0_10, %c0_11] : memref<256x8xf32, #tpu.memory_space<vmem>>, vector<256x8xf32>
    %cst_12 = arith.constant dense<0.000000e+00> : vector<256x32xf32>
    %13 = tpu.matmul %12, %0, %cst_12 {dimension_numbers = #tpu.dot_dimension_numbers<[1], [0], [0], [1], [0, 0, 1, 1], [], []>} : vector<256x8xf32>, vector<8x32xf32>, vector<256x32xf32> -> vector<256x32xf32>
    %c0_13 = arith.constant 0 : index
    %c0_14 = arith.constant 0 : index
    %14 = vector.load %arg4[%c0_13, %c0_14] : memref<256x32xbf16, #tpu.memory_space<vmem>>, vector<256x32xbf16>
    %15 = arith.extf %14 : vector<256x32xbf16> to vector<256x32xf32>
    %16 = arith.mulf %13, %15 : vector<256x32xf32>
    %17 = arith.addf %11, %16 : vector<256x32xf32>
    %c0_15 = arith.constant 0 : index
    %c0_16 = arith.constant 0 : index
    %18 = vector.load %arg9[%c0_15, %c0_16] : memref<256x8xf32, #tpu.memory_space<vmem>>, vector<256x8xf32>
    %cst_17 = arith.constant dense<0.000000e+00> : vector<256x32xf32>
    %19 = tpu.matmul %18, %0, %cst_17 {dimension_numbers = #tpu.dot_dimension_numbers<[1], [0], [0], [1], [0, 0, 1, 1], [], []>} : vector<256x8xf32>, vector<8x32xf32>, vector<256x32xf32> -> vector<256x32xf32>
    %c0_18 = arith.constant 0 : index
    %c0_19 = arith.constant 0 : index
    %20 = vector.load %arg5[%c0_18, %c0_19] : memref<256x32xbf16, #tpu.memory_space<vmem>>, vector<256x32xbf16>
    %21 = arith.extf %20 : vector<256x32xbf16> to vector<256x32xf32>
    %22 = arith.mulf %19, %21 : vector<256x32xf32>
    %23 = arith.addf %17, %22 : vector<256x32xf32>
    %c0_20 = arith.constant 0 : index
    %c0_21 = arith.constant 0 : index
    %24 = vector.load %arg10[%c0_20, %c0_21] : memref<32x8xf32, #tpu.memory_space<vmem>>, vector<32x8xf32>
    %cst_22 = arith.constant dense<0.000000e+00> : vector<256x8xf32>
    %25 = tpu.matmul %23, %24, %cst_22 {dimension_numbers = #tpu.dot_dimension_numbers<[1], [0], [0], [1], [0, 0, 1, 1], [], []>} : vector<256x32xf32>, vector<32x8xf32>, vector<256x8xf32> -> vector<256x8xf32>
    %c0_23 = arith.constant 0 : index
    %c0_24 = arith.constant 0 : index
    %26 = vector.load %arg12[%c0_23, %c0_24] : memref<256x8xf32, #tpu.memory_space<vmem>>, vector<256x8xf32>
    tpu.vector_store %arg12[%c0_23, %c0_24], %25 {strides = array<i32>} : memref<256x8xf32, #tpu.memory_space<vmem>>, vector<256x8xf32>,
    %c0_i32 = arith.constant 0 : i32
    %27 = arith.cmpi eq, %arg1, %c0_i32 : i32
    %28 = arith.extui %27 : i1 to i32
    %c0_i32_25 = arith.constant 0 : i32
    %29 = arith.cmpi ne, %28, %c0_i32_25 : i32
    scf.if %29 {
      %cst_40 = arith.constant 0.000000e+00 : f32
      %43 = vector.broadcast %cst_40 : f32 to vector<1x1x8xf32>
      %c0_41 = arith.constant 0 : index
      %c0_42 = arith.constant 0 : index
      %c0_43 = arith.constant 0 : index
      %44 = vector.load %arg13[%c0_41, %c0_42, %c0_43] : memref<1x1x8xf32, #tpu.memory_space<vmem>>, vector<1x1x8xf32>
      tpu.vector_store %arg13[%c0_41, %c0_42, %c0_43], %43 {strides = array<i32>} : memref<1x1x8xf32, #tpu.memory_space<vmem>>, vector<1x1x8xf32>,
      %cst_44 = arith.constant 0.000000e+00 : f32
      %45 = vector.broadcast %cst_44 : f32 to vector<1x1x8xf32>
      %c0_45 = arith.constant 0 : index
      %c0_46 = arith.constant 0 : index
      %c0_47 = arith.constant 0 : index
      %46 = vector.load %arg14[%c0_45, %c0_46, %c0_47] : memref<1x1x8xf32, #tpu.memory_space<vmem>>, vector<1x1x8xf32>
      tpu.vector_store %arg14[%c0_45, %c0_46, %c0_47], %45 {strides = array<i32>} : memref<1x1x8xf32, #tpu.memory_space<vmem>>, vector<1x1x8xf32>,
    } else {
    }
    %c0_26 = arith.constant 0 : index
    %c0_27 = arith.constant 0 : index
    %c0_28 = arith.constant 0 : index
    %30 = vector.load %arg13[%c0_26, %c0_27, %c0_28] : memref<1x1x8xf32, #tpu.memory_space<vmem>>, vector<1x1x8xf32>
    %cst_29 = arith.constant dense<0.000000e+00> : vector<8xf32>
    %31 = vector.multi_reduction <add>, %25, %cst_29 [0] : vector<256x8xf32> to vector<8xf32>
    %32 = vector.shape_cast %31 : vector<8xf32> to vector<1x8xf32>
    %33 = vector.shape_cast %32 : vector<1x8xf32> to vector<1x1x8xf32>
    %34 = arith.addf %30, %33 : vector<1x1x8xf32>
    %c0_30 = arith.constant 0 : index
    %c0_31 = arith.constant 0 : index
    %c0_32 = arith.constant 0 : index
    %35 = vector.load %arg13[%c0_30, %c0_31, %c0_32] : memref<1x1x8xf32, #tpu.memory_space<vmem>>, vector<1x1x8xf32>
    tpu.vector_store %arg13[%c0_30, %c0_31, %c0_32], %34 {strides = array<i32>} : memref<1x1x8xf32, #tpu.memory_space<vmem>>, vector<1x1x8xf32>,
    %c0_33 = arith.constant 0 : index
    %c0_34 = arith.constant 0 : index
    %c0_35 = arith.constant 0 : index
    %36 = vector.load %arg14[%c0_33, %c0_34, %c0_35] : memref<1x1x8xf32, #tpu.memory_space<vmem>>, vector<1x1x8xf32>
    %37 = arith.mulf %25, %25 : vector<256x8xf32>
    %cst_36 = arith.constant dense<0.000000e+00> : vector<8xf32>
    %38 = vector.multi_reduction <add>, %37, %cst_36 [0] : vector<256x8xf32> to vector<8xf32>
    %39 = vector.shape_cast %38 : vector<8xf32> to vector<1x8xf32>
    %40 = vector.shape_cast %39 : vector<1x8xf32> to vector<1x1x8xf32>
    %41 = arith.addf %36, %40 : vector<1x1x8xf32>
    %c0_37 = arith.constant 0 : index
    %c0_38 = arith.constant 0 : index
    %c0_39 = arith.constant 0 : index
    %42 = vector.load %arg14[%c0_37, %c0_38, %c0_39] : memref<1x1x8xf32, #tpu.memory_space<vmem>>, vector<1x1x8xf32>
    tpu.vector_store %arg14[%c0_37, %c0_38, %c0_39], %41 {strides = array<i32>} : memref<1x1x8xf32, #tpu.memory_space<vmem>>, vector<1x1x8xf32>,
    return
  }
  func.func @transform_0(%arg0: i32, %arg1: i32) -> (i32, i32) {
    %c1_i32 = arith.constant 1 : i32
    %0 = arith.muli %arg0, %c1_i32 : i32
    %1 = arith.addi %0, %arg1 : i32
    %c0_i32 = arith.constant 0 : i32
    %c0_i32_0 = arith.constant 0 : i32
    return %1, %c0_i32 : i32, i32
  }
  func.func @transform_1(%arg0: i32, %arg1: i32) -> (i32, i32) {
    %c1_i32 = arith.constant 1 : i32
    %0 = arith.muli %arg0, %c1_i32 : i32
    %1 = arith.addi %0, %arg1 : i32
    %c0_i32 = arith.constant 0 : i32
    %c0_i32_0 = arith.constant 0 : i32
    return %1, %c0_i32 : i32, i32
  }
  func.func @transform_2(%arg0: i32, %arg1: i32) -> (i32, i32) {
    %c1_i32 = arith.constant 1 : i32
    %0 = arith.muli %arg0, %c1_i32 : i32
    %1 = arith.addi %0, %arg1 : i32
    %c0_i32 = arith.constant 0 : i32
    %c0_i32_0 = arith.constant 0 : i32
    return %1, %c0_i32 : i32, i32
  }
  func.func @transform_3(%arg0: i32, %arg1: i32) -> (i32, i32) {
    %c1_i32 = arith.constant 1 : i32
    %0 = arith.muli %arg0, %c1_i32 : i32
    %1 = arith.addi %0, %arg1 : i32
    %c0_i32 = arith.constant 0 : i32
    %c0_i32_0 = arith.constant 0 : i32
    return %1, %c0_i32 : i32, i32
  }
  func.func @transform_4(%arg0: i32, %arg1: i32) -> (i32, i32) {
    %c1_i32 = arith.constant 1 : i32
    %0 = arith.muli %arg0, %c1_i32 : i32
    %1 = arith.addi %0, %arg1 : i32
    %c0_i32 = arith.constant 0 : i32
    %c0_i32_0 = arith.constant 0 : i32
    return %1, %c0_i32 : i32, i32
  }
  func.func @transform_5(%arg0: i32, %arg1: i32) -> (i32, i32) {
    %c1_i32 = arith.constant 1 : i32
    %0 = arith.muli %arg0, %c1_i32 : i32
    %1 = arith.addi %0, %arg1 : i32
    %c0_i32 = arith.constant 0 : i32
    %c0_i32_0 = arith.constant 0 : i32
    return %1, %c0_i32 : i32, i32
  }
  func.func @transform_6(%arg0: i32, %arg1: i32) -> (i32, i32) {
    %c1_i32 = arith.constant 1 : i32
    %0 = arith.muli %arg0, %c1_i32 : i32
    %1 = arith.addi %0, %arg1 : i32
    %c0_i32 = arith.constant 0 : i32
    %c0_i32_0 = arith.constant 0 : i32
    return %1, %c0_i32 : i32, i32
  }
  func.func @transform_7(%arg0: i32, %arg1: i32) -> (i32, i32) {
    %c1_i32 = arith.constant 1 : i32
    %0 = arith.muli %arg0, %c1_i32 : i32
    %1 = arith.addi %0, %arg1 : i32
    %c0_i32 = arith.constant 0 : i32
    %c0_i32_0 = arith.constant 0 : i32
    return %1, %c0_i32 : i32, i32
  }
  func.func @transform_8(%arg0: i32, %arg1: i32) -> (i32, i32) {
    %c0_i32 = arith.constant 0 : i32
    %c0_i32_0 = arith.constant 0 : i32
    %c0_i32_1 = arith.constant 0 : i32
    return %c0_i32, %c0_i32_0 : i32, i32
  }
  func.func @transform_9(%arg0: i32, %arg1: i32) -> (i32, i32) {
    %c0_i32 = arith.constant 0 : i32
    %c0_i32_0 = arith.constant 0 : i32
    %c0_i32_1 = arith.constant 0 : i32
    return %c0_i32, %c0_i32_0 : i32, i32
  }
  func.func @transform_10(%arg0: i32, %arg1: i32) -> (i32, i32) {
    %c1_i32 = arith.constant 1 : i32
    %0 = arith.muli %arg0, %c1_i32 : i32
    %1 = arith.addi %0, %arg1 : i32
    %c0_i32 = arith.constant 0 : i32
    %c0_i32_0 = arith.constant 0 : i32
    return %1, %c0_i32 : i32, i32
  }
  func.func @transform_11(%arg0: i32, %arg1: i32) -> (i32, i32, i32) {
    %c0_i32 = arith.constant 0 : i32
    %c0_i32_0 = arith.constant 0 : i32
    %c0_i32_1 = arith.constant 0 : i32
    return %arg0, %c0_i32, %c0_i32_0 : i32, i32, i32
  }
  func.func @transform_12(%arg0: i32, %arg1: i32) -> (i32, i32, i32) {
    %c0_i32 = arith.constant 0 : i32
    %c0_i32_0 = arith.constant 0 : i32
    %c0_i32_1 = arith.constant 0 : i32
    return %arg0, %c0_i32, %c0_i32_0 : i32, i32, i32
  }
}

</mosaic_0001>

<llo_original>
// kernel: tpu_custom_call.1
$region0: #{tpu_custom_call.1}
  #allocation0 [shape = 'u32[]', space=smem, size = 0x4, offset = 0x4, fixed_abs, tag = 'smem constant byte address 0x4 - core index']
  #allocation1 [shape = 'u32[144,128]{1,0:T(1,128)}', space=vmem, size = 0x12000, scoped, tag = 'internal scratch']
  %s0 = inlined_call_operand.hbm [shape: bf16[512,32], index: 0, kind: input, shape index: {}]
  %s1 = inlined_call_operand.hbm [shape: bf16[512,32], index: 1, kind: input, shape index: {}]
  %s2 = inlined_call_operand.hbm [shape: bf16[512,32], index: 2, kind: input, shape index: {}]
  %s3 = inlined_call_operand.hbm [shape: bf16[512,32], index: 3, kind: input, shape index: {}]
  %s4 = inlined_call_operand.hbm [shape: f32[512,8], index: 4, kind: input, shape index: {}]
  %s5 = inlined_call_operand.hbm [shape: f32[512,8], index: 5, kind: input, shape index: {}]
  %s6 = inlined_call_operand.hbm [shape: f32[512,8], index: 6, kind: input, shape index: {}]
  %s7 = inlined_call_operand.hbm [shape: f32[512,8], index: 7, kind: input, shape index: {}]
  %s8 = inlined_call_operand.hbm [shape: f32[32,8], index: 8, kind: input, shape index: {}]
  %s9 = inlined_call_operand.hbm [shape: f32[8,32], index: 9, kind: input, shape index: {}]
  %s10 = inlined_call_operand.hbm [shape: f32[512,8], index: 10, kind: output, shape index: {0}]
  %s11 = inlined_call_operand.hbm [shape: f32[2,1,8], index: 11, kind: output, shape index: {1}]
  %s12 = inlined_call_operand.hbm [shape: f32[2,1,8], index: 12, kind: output, shape index: {2}]
  %13 = xla_tuple %s10, %s11, %s12
  %s14 = sld [smem:[#allocation0]]
  $region133: #{tpu_custom_call.1} parent=0
    _
  %s16 = ssub.s32 1, %s14
  %s17 = scalar_select 0, %s16, %s14
  $region1: #{tpu_custom_call.1} parent=0
    #allocation2 [shape = 'u8[131072]{0}', space=vmem, size = 0x20000, scoped, tag = 'input window, operand 0']
    #allocation3 [shape = 's32[2]{0}', space=sflag, size = 0x8, scoped, tag = 'scoped memory for tpu_custom_call.1']
    #allocation4 [shape = 's32[2]{0}', space=sflag, size = 0x8, scoped, tag = 'scoped memory for tpu_custom_call.1']
    #allocation5 [shape = 'u8[131072]{0}', space=vmem, size = 0x20000, scoped, tag = 'input window, operand 1']
    #allocation6 [shape = 's32[2]{0}', space=sflag, size = 0x8, scoped, tag = 'scoped memory for tpu_custom_call.1']
    #allocation7 [shape = 'u8[131072]{0}', space=vmem, size = 0x20000, scoped, tag = 'input window, operand 2']
    #allocation8 [shape = 'u8[131072]{0}', space=vmem, size = 0x20000, scoped, tag = 'input window, operand 3']
    #allocation9 [shape = 's32[2]{0}', space=sflag, size = 0x8, scoped, tag = 'scoped memory for tpu_custom_call.1']
    #allocation10 [shape = 'u8[262144]{0}', space=vmem, size = 0x40000, scoped, tag = 'input window, operand 4']
    #allocation11 [shape = 'u8[262144]{0}', space=vmem, size = 0x40000, scoped, tag = 'input window, operand 5']
    #allocation12 [shape = 's32[2]{0}', space=sflag, size = 0x8, scoped, tag = 'scoped memory for tpu_custom_call.1']
    #allocation13 [shape = 'u8[262144]{0}', space=vmem, size = 0x40000, scoped, tag = 'input window, operand 6']
    #allocation14 [shape = 'u8[262144]{0}', space=vmem, size = 0x40000, scoped, tag = 'input window, operand 7']
    #allocation15 [shape = 's32[2]{0}', space=sflag, size = 0x8, scoped, tag = 'scoped memory for tpu_custom_call.1']
    #allocation16 [shape = 'u8[16384]{0}', space=vmem, size = 0x4000, scoped, tag = 'input window, operand 8, single buffered']
    #allocation17 [shape = 'u8[4096]{0}', space=vmem, size = 0x1000, scoped, tag = 'input window, operand 9, single buffered']
    #allocation18 [shape = 's32[1]{0}', space=sflag, size = 0x4, scoped, tag = 'scoped memory for tpu_custom_call.1']
    #allocation19 [shape = 'u8[262144]{0}', space=vmem, size = 0x40000, scoped, tag = 'output window, operand 0']
    #allocation20 [shape = 'u8[1024]{0}', space=vmem, size = 0x400, scoped, tag = 'output window, operand 1']
    #allocation21 [shape = 's32[2]{0}', space=sflag, size = 0x8, scoped, tag = 'scoped memory for tpu_custom_call.1']
    #allocation22 [shape = 'u8[1024]{0}', space=vmem, size = 0x400, scoped, tag = 'output window, operand 2']
    %18 = vsyncpa [#allocation3], 0
    %s19 = scalar_lea.sflag [#allocation3], 1
    %20 = vsyncpa %s19, 0
    %21 = vsyncpa [#allocation6], 0
    %s22 = scalar_lea.sflag [#allocation6], 1
    %23 = vsyncpa %s22, 0
    %24 = vsyncpa [#allocation9], 0
    %s25 = scalar_lea.sflag [#allocation9], 1
    %26 = vsyncpa %s25, 0
    %27 = vsyncpa [#allocation12], 0
    %s28 = scalar_lea.sflag [#allocation12], 1
    %29 = vsyncpa %s28, 0
    %30 = vsyncpa [#allocation15], 0
    %s31 = scalar_lea.sflag [#allocation15], 1
    %32 = vsyncpa %s31, 0
    %33 = vsyncpa [#allocation18], 0
    %34 = vsyncpa [#allocation4], 0
    %s35 = scalar_lea.sflag [#allocation4], 1
    %36 = vsyncpa %s35, 0
    %37 = vsyncpa [#allocation21], 0
    %s38 = scalar_lea.sflag [#allocation21], 1
    %39 = vsyncpa %s38, 0
    loop: start=0, step=1, limit=4
    $region2: #{tpu_custom_call.1} parent=1 // loop_pre_header
      _
    $region3: #{tpu_custom_call.1} parent=1 // loop_header
      %s41 = sphi 0, %s45
      %p42 = scmp.ge.s32.totalorder %s41, 4
      %s48 = sphi 0, %s60
      %s49 = sphi 0, %s56
      %s50 = sphi 0, %s48
      %s51 = sphi 0, %s49
      %s52 = sphi 0, %s50
      %s53 = sphi 0, %s51
      %s65 = sphi 0, %s67
      %s68 = sphi 0, %s65
      %s69 = sphi 0, %s68
      %s85 = sphi 0, %s69
      %s93 = sphi 0, %s95
      %s96 = sphi 0, %s93
      %s97 = sphi 0, %s96
      %s113 = sphi 0, %s97
      %s121 = sphi 0, %s123
      %s124 = sphi 0, %s121
      %s125 = sphi 0, %s124
      %s141 = sphi 0, %s125
      %s149 = sphi 0, %s151
      %s152 = sphi 0, %s149
      %s153 = sphi 0, %s152
      %s169 = sphi 0, %s153
      %s177 = sphi 0, %s179
      %s180 = sphi 0, %s177
      %s181 = sphi 0, %s180
      %s197 = sphi 0, %s181
      %s205 = sphi 0, %s207
      %s208 = sphi 0, %s205
      %s209 = sphi 0, %s208
      %s225 = sphi 0, %s209
      %s233 = sphi 0, %s235
      %s236 = sphi 0, %s233
      %s237 = sphi 0, %s236
      %s253 = sphi 0, %s237
      %s261 = sphi 0, %s263
      %s264 = sphi 0, %s261
      %s265 = sphi 0, %s264
      %s281 = sphi 0, %s265
      %s285 = sphi 0, %s285
      %s287 = sphi 0, %s285
      %s288 = sphi 0, %s287
      %s302 = sphi 0, %s288
      %s306 = sphi 0, %s306
      %s308 = sphi 0, %s306
      %s309 = sphi 0, %s308
      %s323 = sphi 0, %s309
      %s331 = sphi 0, %s333
      %s334 = sphi 0, %s331
      %s335 = sphi 0, %s334
      %s351 = sphi 0, %s335
      %s357 = sphi 0, %s359
      %s360 = sphi 0, %s357
      %s361 = sphi 0, %s360
      %s377 = sphi 0, %s361
      %s383 = sphi 0, %s385
      %s386 = sphi 0, %s383
      %s387 = sphi 0, %s386
      %s403 = sphi 0, %s387
    $region4: #{tpu_custom_call.1} parent=1 // loop_header_branch
      %44 = sbr.rel (%p42) target = $region8
    $region5: #{tpu_custom_call.1} parent=1 // loop_body
      %s46 = ssub.s32 %s41, 1
      %s47 = ssub.s32 %s41, 2
      %s54 = sadd.s32 1, %s49
      %p55 = scmp.ge.s32.totalorder %s54, 1
      %s56 = scalar_select %p55, 0, %s54
      %s57 = sadd.s32 1, %s48
      %s58 = scalar_select %p55, %s57, %s48
      %p59 = scmp.ge.s32.totalorder %s58, 2
      %s60 = scalar_select %p59, 0, %s58
      %s61 = sadd.s32 %s48, %s49
      %s62 = sadd.s32 %s60, %s56
      %s63 = ssub.s32 %s61, %s62
      %p64 = scmp.eq.s32.totalorder %s63, 0
      %s66 = sadd.s32 %s65, 1
      %s67 = scalar_select %p64, %s65, %s66
      %p70 = pneg %p64
      %p71 = scmp.eq.s32.totalorder %s41, 1
      %p72 = por %p70, %p71
      %p73 = scmp.ne.s32.totalorder %s65, %s68
      %p74 = scmp.eq.s32.totalorder %s41, 0
      %p75 = por %p73, %p74
      %p76 = scmp.ne.s32.totalorder %s65, %s68
      %p77 = scmp.eq.s32.totalorder %s46, 1
      %p78 = por %p76, %p77
      %p79 = scmp.ne.s32.totalorder %s68, %s69
      %p80 = scmp.eq.s32.totalorder %s46, 0
      %p81 = por %p79, %p80
      %p82 = scmp.ne.s32.totalorder %s68, %s69
      %p83 = scmp.eq.s32.totalorder %s47, 1
      %p84 = por %p82, %p83
      %p86 = scmp.ne.s32.totalorder %s69, %s85
      %p87 = scmp.eq.s32.totalorder %s47, 0
      %p88 = por %p86, %p87
      %s89 = sadd.s32 %s48, %s49
      %s90 = sadd.s32 %s60, %s56
      %s91 = ssub.s32 %s89, %s90
      %p92 = scmp.eq.s32.totalorder %s91, 0
      %s94 = sadd.s32 %s93, 1
      %s95 = scalar_select %p92, %s93, %s94
      %p98 = pneg %p92
      %p99 = scmp.eq.s32.totalorder %s41, 1
      %p100 = por %p98, %p99
      %p101 = scmp.ne.s32.totalorder %s93, %s96
      %p102 = scmp.eq.s32.totalorder %s41, 0
      %p103 = por %p101, %p102
      %p104 = scmp.ne.s32.totalorder %s93, %s96
      %p105 = scmp.eq.s32.totalorder %s46, 1
      %p106 = por %p104, %p105
      %p107 = scmp.ne.s32.totalorder %s96, %s97
      %p108 = scmp.eq.s32.totalorder %s46, 0
      %p109 = por %p107, %p108
      %p110 = scmp.ne.s32.totalorder %s96, %s97
      %p111 = scmp.eq.s32.totalorder %s47, 1
      %p112 = por %p110, %p111
      %p114 = scmp.ne.s32.totalorder %s97, %s113
      %p115 = scmp.eq.s32.totalorder %s47, 0
      %p116 = por %p114, %p115
      %s117 = sadd.s32 %s48, %s49
      %s118 = sadd.s32 %s60, %s56
      %s119 = ssub.s32 %s117, %s118
      %p120 = scmp.eq.s32.totalorder %s119, 0
      %s122 = sadd.s32 %s121, 1
      %s123 = scalar_select %p120, %s121, %s122
      %p126 = pneg %p120
      %p127 = scmp.eq.s32.totalorder %s41, 1
      %p128 = por %p126, %p127
      %p129 = scmp.ne.s32.totalorder %s121, %s124
      %p130 = scmp.eq.s32.totalorder %s41, 0
      %p131 = por %p129, %p130
      %p132 = scmp.ne.s32.totalorder %s121, %s124
      %p133 = scmp.eq.s32.totalorder %s46, 1
      %p134 = por %p132, %p133
      %p135 = scmp.ne.s32.totalorder %s124, %s125
      %p136 = scmp.eq.s32.totalorder %s46, 0
      %p137 = por %p135, %p136
      %p138 = scmp.ne.s32.totalorder %s124, %s125
      %p139 = scmp.eq.s32.totalorder %s47, 1
      %p140 = por %p138, %p139
      %p142 = scmp.ne.s32.totalorder %s125, %s141
      %p143 = scmp.eq.s32.totalorder %s47, 0
      %p144 = por %p142, %p143
      %s145 = sadd.s32 %s48, %s49
      %s146 = sadd.s32 %s60, %s56
      %s147 = ssub.s32 %s145, %s146
      %p148 = scmp.eq.s32.totalorder %s147, 0
      %s150 = sadd.s32 %s149, 1
      %s151 = scalar_select %p148, %s149, %s150
      %p154 = pneg %p148
      %p155 = scmp.eq.s32.totalorder %s41, 1
      %p156 = por %p154, %p155
      %p157 = scmp.ne.s32.totalorder %s149, %s152
      %p158 = scmp.eq.s32.totalorder %s41, 0
      %p159 = por %p157, %p158
      %p160 = scmp.ne.s32.totalorder %s149, %s152
      %p161 = scmp.eq.s32.totalorder %s46, 1
      %p162 = por %p160, %p161
      %p163 = scmp.ne.s32.totalorder %s152, %s153
      %p164 = scmp.eq.s32.totalorder %s46, 0
      %p165 = por %p163, %p164
      %p166 = scmp.ne.s32.totalorder %s152, %s153
      %p167 = scmp.eq.s32.totalorder %s47, 1
      %p168 = por %p166, %p167
      %p170 = scmp.ne.s32.totalorder %s153, %s169
      %p171 = scmp.eq.s32.totalorder %s47, 0
      %p172 = por %p170, %p171
      %s173 = sadd.s32 %s48, %s49
      %s174 = sadd.s32 %s60, %s56
      %s175 = ssub.s32 %s173, %s174
      %p176 = scmp.eq.s32.totalorder %s175, 0
      %s178 = sadd.s32 %s177, 1
      %s179 = scalar_select %p176, %s177, %s178
      %p182 = pneg %p176
      %p183 = scmp.eq.s32.totalorder %s41, 1
      %p184 = por %p182, %p183
      %p185 = scmp.ne.s32.totalorder %s177, %s180
      %p186 = scmp.eq.s32.totalorder %s41, 0
      %p187 = por %p185, %p186
      %p188 = scmp.ne.s32.totalorder %s177, %s180
      %p189 = scmp.eq.s32.totalorder %s46, 1
      %p190 = por %p188, %p189
      %p191 = scmp.ne.s32.totalorder %s180, %s181
      %p192 = scmp.eq.s32.totalorder %s46, 0
      %p193 = por %p191, %p192
      %p194 = scmp.ne.s32.totalorder %s180, %s181
      %p195 = scmp.eq.s32.totalorder %s47, 1
      %p196 = por %p194, %p195
      %p198 = scmp.ne.s32.totalorder %s181, %s197
      %p199 = scmp.eq.s32.totalorder %s47, 0
      %p200 = por %p198, %p199
      %s201 = sadd.s32 %s48, %s49
      %s202 = sadd.s32 %s60, %s56
      %s203 = ssub.s32 %s201, %s202
      %p204 = scmp.eq.s32.totalorder %s203, 0
      %s206 = sadd.s32 %s205, 1
      %s207 = scalar_select %p204, %s205, %s206
      %p210 = pneg %p204
      %p211 = scmp.eq.s32.totalorder %s41, 1
      %p212 = por %p210, %p211
      %p213 = scmp.ne.s32.totalorder %s205, %s208
      %p214 = scmp.eq.s32.totalorder %s41, 0
      %p215 = por %p213, %p214
      %p216 = scmp.ne.s32.totalorder %s205, %s208
      %p217 = scmp.eq.s32.totalorder %s46, 1
      %p218 = por %p216, %p217
      %p219 = scmp.ne.s32.totalorder %s208, %s209
      %p220 = scmp.eq.s32.totalorder %s46, 0
      %p221 = por %p219, %p220
      %p222 = scmp.ne.s32.totalorder %s208, %s209
      %p223 = scmp.eq.s32.totalorder %s47, 1
      %p224 = por %p222, %p223
      %p226 = scmp.ne.s32.totalorder %s209, %s225
      %p227 = scmp.eq.s32.totalorder %s47, 0
      %p228 = por %p226, %p227
      %s229 = sadd.s32 %s48, %s49
      %s230 = sadd.s32 %s60, %s56
      %s231 = ssub.s32 %s229, %s230
      %p232 = scmp.eq.s32.totalorder %s231, 0
      %s234 = sadd.s32 %s233, 1
      %s235 = scalar_select %p232, %s233, %s234
      %p238 = pneg %p232
      %p239 = scmp.eq.s32.totalorder %s41, 1
      %p240 = por %p238, %p239
      %p241 = scmp.ne.s32.totalorder %s233, %s236
      %p242 = scmp.eq.s32.totalorder %s41, 0
      %p243 = por %p241, %p242
      %p244 = scmp.ne.s32.totalorder %s233, %s236
      %p245 = scmp.eq.s32.totalorder %s46, 1
      %p246 = por %p244, %p245
      %p247 = scmp.ne.s32.totalorder %s236, %s237
      %p248 = scmp.eq.s32.totalorder %s46, 0
      %p249 = por %p247, %p248
      %p250 = scmp.ne.s32.totalorder %s236, %s237
      %p251 = scmp.eq.s32.totalorder %s47, 1
      %p252 = por %p250, %p251
      %p254 = scmp.ne.s32.totalorder %s237, %s253
      %p255 = scmp.eq.s32.totalorder %s47, 0
      %p256 = por %p254, %p255
      %s257 = sadd.s32 %s48, %s49
      %s258 = sadd.s32 %s60, %s56
      %s259 = ssub.s32 %s257, %s258
      %p260 = scmp.eq.s32.totalorder %s259, 0
      %s262 = sadd.s32 %s261, 1
      %s263 = scalar_select %p260, %s261, %s262
      %p266 = pneg %p260
      %p267 = scmp.eq.s32.totalorder %s41, 1
      %p268 = por %p266, %p267
      %p269 = scmp.ne.s32.totalorder %s261, %s264
      %p270 = scmp.eq.s32.totalorder %s41, 0
      %p271 = por %p269, %p270
      %p272 = scmp.ne.s32.totalorder %s261, %s264
      %p273 = scmp.eq.s32.totalorder %s46, 1
      %p274 = por %p272, %p273
      %p275 = scmp.ne.s32.totalorder %s264, %s265
      %p276 = scmp.eq.s32.totalorder %s46, 0
      %p277 = por %p275, %p276
      %p278 = scmp.ne.s32.totalorder %s264, %s265
      %p279 = scmp.eq.s32.totalorder %s47, 1
      %p280 = por %p278, %p279
      %p282 = scmp.ne.s32.totalorder %s265, %s281
      %p283 = scmp.eq.s32.totalorder %s47, 0
      %p284 = por %p282, %p283
      %s286 = sadd.s32 %s285, 1
      %p289 = scmp.eq.s32.totalorder %s41, 1
      %p290 = scmp.ne.s32.totalorder %s285, %s287
      %p291 = scmp.eq.s32.totalorder %s41, 0
      %p292 = por %p290, %p291
      %p293 = scmp.ne.s32.totalorder %s285, %s287
      %p294 = scmp.eq.s32.totalorder %s46, 1
      %p295 = por %p293, %p294
      %p296 = scmp.ne.s32.totalorder %s287, %s288
      %p297 = scmp.eq.s32.totalorder %s46, 0
      %p298 = por %p296, %p297
      %p299 = scmp.ne.s32.totalorder %s287, %s288
      %p300 = scmp.eq.s32.totalorder %s47, 1
      %p301 = por %p299, %p300
      %p303 = scmp.ne.s32.totalorder %s288, %s302
      %p304 = scmp.eq.s32.totalorder %s47, 0
      %p305 = por %p303, %p304
      %s307 = sadd.s32 %s306, 1
      %p310 = scmp.eq.s32.totalorder %s41, 1
      %p311 = scmp.ne.s32.totalorder %s306, %s308
      %p312 = scmp.eq.s32.totalorder %s41, 0
      %p313 = por %p311, %p312
      %p314 = scmp.ne.s32.totalorder %s306, %s308
      %p315 = scmp.eq.s32.totalorder %s46, 1
      %p316 = por %p314, %p315
      %p317 = scmp.ne.s32.totalorder %s308, %s309
      %p318 = scmp.eq.s32.totalorder %s46, 0
      %p319 = por %p317, %p318
      %p320 = scmp.ne.s32.totalorder %s308, %s309
      %p321 = scmp.eq.s32.totalorder %s47, 1
      %p322 = por %p320, %p321
      %p324 = scmp.ne.s32.totalorder %s309, %s323
      %p325 = scmp.eq.s32.totalorder %s47, 0
      %p326 = por %p324, %p325
      %s327 = sadd.s32 %s48, %s49
      %s328 = sadd.s32 %s60, %s56
      %s329 = ssub.s32 %s327, %s328
      %p330 = scmp.eq.s32.totalorder %s329, 0
      %s332 = sadd.s32 %s331, 1
      %s333 = scalar_select %p330, %s331, %s332
      %p336 = pneg %p330
      %p337 = scmp.eq.s32.totalorder %s41, 1
      %p338 = por %p336, %p337
      %p339 = scmp.ne.s32.totalorder %s331, %s334
      %p340 = scmp.eq.s32.totalorder %s41, 0
      %p341 = por %p339, %p340
      %p342 = scmp.ne.s32.totalorder %s331, %s334
      %p343 = scmp.eq.s32.totalorder %s46, 1
      %p344 = por %p342, %p343
      %p345 = scmp.ne.s32.totalorder %s334, %s335
      %p346 = scmp.eq.s32.totalorder %s46, 0
      %p347 = por %p345, %p346
      %p348 = scmp.ne.s32.totalorder %s334, %s335
      %p349 = scmp.eq.s32.totalorder %s47, 1
      %p350 = por %p348, %p349
      %p352 = scmp.ne.s32.totalorder %s335, %s351
      %p353 = scmp.eq.s32.totalorder %s47, 0
      %p354 = por %p352, %p353
      %s355 = ssub.s32 %s48, %s60
      %p356 = scmp.eq.s32.totalorder %s355, 0
      %s358 = sadd.s32 %s357, 1
      %s359 = scalar_select %p356, %s357, %s358
      %p362 = pneg %p356
      %p363 = scmp.eq.s32.totalorder %s41, 1
      %p364 = por %p362, %p363
      %p365 = scmp.ne.s32.totalorder %s357, %s360
      %p366 = scmp.eq.s32.totalorder %s41, 0
      %p367 = por %p365, %p366
      %p368 = scmp.ne.s32.totalorder %s357, %s360
      %p369 = scmp.eq.s32.totalorder %s46, 1
      %p370 = por %p368, %p369
      %p371 = scmp.ne.s32.totalorder %s360, %s361
      %p372 = scmp.eq.s32.totalorder %s46, 0
      %p373 = por %p371, %p372
      %p374 = scmp.ne.s32.totalorder %s360, %s361
      %p375 = scmp.eq.s32.totalorder %s47, 1
      %p376 = por %p374, %p375
      %p378 = scmp.ne.s32.totalorder %s361, %s377
      %p379 = scmp.eq.s32.totalorder %s47, 0
      %p380 = por %p378, %p379
      %s381 = ssub.s32 %s48, %s60
      %p382 = scmp.eq.s32.totalorder %s381, 0
      %s384 = sadd.s32 %s383, 1
      %s385 = scalar_select %p382, %s383, %s384
      %p388 = pneg %p382
      %p389 = scmp.eq.s32.totalorder %s41, 1
      %p390 = por %p388, %p389
      %p391 = scmp.ne.s32.totalorder %s383, %s386
      %p392 = scmp.eq.s32.totalorder %s41, 0
      %p393 = por %p391, %p392
      %p394 = scmp.ne.s32.totalorder %s383, %s386
      %p395 = scmp.eq.s32.totalorder %s46, 1
      %p396 = por %p394, %p395
      %p397 = scmp.ne.s32.totalorder %s386, %s387
      %p398 = scmp.eq.s32.totalorder %s46, 0
      %p399 = por %p397, %p398
      %p400 = scmp.ne.s32.totalorder %s386, %s387
      %p401 = scmp.eq.s32.totalorder %s47, 1
      %p402 = por %p400, %p401
      %p404 = scmp.ne.s32.totalorder %s387, %s403
      %p405 = scmp.eq.s32.totalorder %s47, 0
      %p406 = por %p404, %p405
      %p407 = scmp.le.s32.totalorder 1, %s41
      %p408 = scmp.lt.s32.totalorder %s41, 3
      %p409 = pnand %p407, %p408
      %p410 = pneg %p409
      // Predicated region
      $region9: #{tpu_custom_call.1} parent=5 // pred_check
        _
      $region10: #{tpu_custom_call.1} parent=5 // pred_check_branch
        %412 = sbr.rel (%p409) target = $region12
      $region11: #{tpu_custom_call.1} parent=5 // pred_region
        %s413 = ssub.s32 %s41, 1
        // Predicated region
        $region13: #{tpu_custom_call.1} parent=11 // pred_check
          %p414 = pneg %p298
        $region14: #{tpu_custom_call.1} parent=11 // pred_check_branch
          %416 = sbr.rel (%p414) target = $region16
        $region15: #{tpu_custom_call.1} parent=11 // pred_region
          %s418 = ssub.s32 512, 512
          %419 = vsyncadd [#allocation15], %s418
          %s420 = sshll.u32 [#allocation16], 4
          %s421 = int_to_ptr.vmem [resolvable:$true] %s420
          %426 = dma.hbm_to_vmem [thread:$0]  %s8, 512, %s421, [#allocation15], 128, 128, 8
        $region16: #{tpu_custom_call.1} parent=11 // pred_fallthru
          _
        // Predicated region
        $region17: #{tpu_custom_call.1} parent=11 // pred_check
          %p427 = pneg %p319
        $region18: #{tpu_custom_call.1} parent=11 // pred_check_branch
          %429 = sbr.rel (%p427) target = $region20
        $region19: #{tpu_custom_call.1} parent=11 // pred_region
          %s431 = ssub.s32 128, 128
          %432 = vsyncadd [#allocation18], %s431
          %s434 = sshll.u32 [#allocation17], 4
          %s435 = int_to_ptr.vmem [resolvable:$true] %s434
          %437 = dma.hbm_to_vmem [thread:$0]  %s9, 128, %s435, [#allocation18]
        $region20: #{tpu_custom_call.1} parent=11 // pred_fallthru
          _
      $region12: #{tpu_custom_call.1} parent=5 // pred_fallthru
        _
      %p438 = scmp.lt.s32.totalorder %s41, 2
      // Predicated region
      $region21: #{tpu_custom_call.1} parent=5 // pred_check
        %p439 = pneg %p438
      $region22: #{tpu_custom_call.1} parent=5 // pred_check_branch
        %441 = sbr.rel (%p439) target = $region24
      $region23: #{tpu_custom_call.1} parent=5 // pred_region
        // Predicated region
        $region25: #{tpu_custom_call.1} parent=23 // pred_check
          %p442 = pneg %p75
        $region26: #{tpu_custom_call.1} parent=23 // pred_check_branch
          %444 = sbr.rel (%p442) target = $region28
        $region27: #{tpu_custom_call.1} parent=23 // pred_region
          %s445 = sand.u32 %s65, 1
          %s446 = scalar_lea.sflag [#allocation3], %s445
          %s447 = sand.u32 %s65, 1
          %s448 = smul.addr %s447, 128
          %s449 = scalar_lea.vmem [#allocation2], %s448
          %s450 = sadd.s32 %s48, %s49
          %s451 = smul.u32 32, %s450
          %s453 = ssub.s32 2048, 2048
          %454 = vsyncadd %s446, %s453
          %s455 = smul.addr %s451, 64
          %s456 = scalar_lea.hbm %s0, %s455
          %s457 = sshll.u32 %s449, 4
          %s458 = int_to_ptr.vmem [resolvable:$true] %s457
          %463 = dma.hbm_to_vmem [thread:$0]  %s456, 2048, %s458, %s446, 64, 64, 4
        $region28: #{tpu_custom_call.1} parent=23 // pred_fallthru
          _
        // Predicated region
        $region29: #{tpu_custom_call.1} parent=23 // pred_check
          %p464 = pneg %p103
        $region30: #{tpu_custom_call.1} parent=23 // pred_check_branch
          %466 = sbr.rel (%p464) target = $region32
        $region31: #{tpu_custom_call.1} parent=23 // pred_region
          %s467 = sand.u32 %s41, 1
          %s468 = scalar_lea.sflag [#allocation6], %s467
          %s469 = sand.u32 %s93, 1
          %s470 = smul.addr %s469, 128
          %s471 = scalar_lea.vmem [#allocation5], %s470
          %s472 = sadd.s32 %s48, %s49
          %s473 = smul.u32 32, %s472
          %s475 = ssub.s32 2048, 2048
          %476 = vsyncadd %s468, %s475
          %s477 = smul.addr %s473, 64
          %s478 = scalar_lea.hbm %s1, %s477
          %s479 = sshll.u32 %s471, 4
          %s480 = int_to_ptr.vmem [resolvable:$true] %s479
          %485 = dma.hbm_to_vmem [thread:$0]  %s478, 2048, %s480, %s468, 64, 64, 4
        $region32: #{tpu_custom_call.1} parent=23 // pred_fallthru
          _
        // Predicated region
        $region33: #{tpu_custom_call.1} parent=23 // pred_check
          %p486 = pneg %p131
        $region34: #{tpu_custom_call.1} parent=23 // pred_check_branch
          %488 = sbr.rel (%p486) target = $region36
        $region35: #{tpu_custom_call.1} parent=23 // pred_region
          %s489 = sand.u32 %s41, 1
          %s490 = scalar_lea.sflag [#allocation6], %s489
          %s491 = sand.u32 %s121, 1
          %s492 = smul.addr %s491, 128
          %s493 = scalar_lea.vmem [#allocation7], %s492
          %s494 = sadd.s32 %s48, %s49
          %s495 = smul.u32 32, %s494
          %s497 = ssub.s32 2048, 2048
          %498 = vsyncadd %s490, %s497
          %s499 = smul.addr %s495, 64
          %s500 = scalar_lea.hbm %s2, %s499
          %s501 = sshll.u32 %s493, 4
          %s502 = int_to_ptr.vmem [resolvable:$true] %s501
          %507 = dma.hbm_to_vmem [thread:$0]  %s500, 2048, %s502, %s490, 64, 64, 4
        $region36: #{tpu_custom_call.1} parent=23 // pred_fallthru
          _
        // Predicated region
        $region37: #{tpu_custom_call.1} parent=23 // pred_check
          %p508 = pneg %p159
        $region38: #{tpu_custom_call.1} parent=23 // pred_check_branch
          %510 = sbr.rel (%p508) target = $region40
        $region39: #{tpu_custom_call.1} parent=23 // pred_region
          %s511 = sand.u32 %s41, 1
          %s512 = scalar_lea.sflag [#allocation9], %s511
          %s513 = sand.u32 %s149, 1
          %s514 = smul.addr %s513, 128
          %s515 = scalar_lea.vmem [#allocation8], %s514
          %s516 = sadd.s32 %s48, %s49
          %s517 = smul.u32 32, %s516
          %s519 = ssub.s32 2048, 2048
          %520 = vsyncadd %s512, %s519
          %s521 = smul.addr %s517, 64
          %s522 = scalar_lea.hbm %s3, %s521
          %s523 = sshll.u32 %s515, 4
          %s524 = int_to_ptr.vmem [resolvable:$true] %s523
          %529 = dma.hbm_to_vmem [thread:$0]  %s522, 2048, %s524, %s512, 64, 64, 4
        $region40: #{tpu_custom_call.1} parent=23 // pred_fallthru
          _
        // Predicated region
        $region41: #{tpu_custom_call.1} parent=23 // pred_check
          %p530 = pneg %p187
        $region42: #{tpu_custom_call.1} parent=23 // pred_check_branch
          %532 = sbr.rel (%p530) target = $region44
        $region43: #{tpu_custom_call.1} parent=23 // pred_region
          %s533 = sand.u32 %s41, 1
          %s534 = scalar_lea.sflag [#allocation9], %s533
          %s535 = sand.u32 %s177, 1
          %s536 = smul.addr %s535, 256
          %s537 = scalar_lea.vmem [#allocation10], %s536
          %s538 = sadd.s32 %s48, %s49
          %s539 = smul.u32 32, %s538
          %s541 = ssub.s32 4096, 4096
          %542 = vsyncadd %s534, %s541
          %s543 = smul.addr %s539, 128
          %s544 = scalar_lea.hbm %s4, %s543
          %s545 = sshll.u32 %s537, 4
          %s546 = int_to_ptr.vmem [resolvable:$true] %s545
          %551 = dma.hbm_to_vmem [thread:$0]  %s544, 4096, %s546, %s534, 128, 128, 8
        $region44: #{tpu_custom_call.1} parent=23 // pred_fallthru
          _
        // Predicated region
        $region45: #{tpu_custom_call.1} parent=23 // pred_check
          %p552 = pneg %p215
        $region46: #{tpu_custom_call.1} parent=23 // pred_check_branch
          %554 = sbr.rel (%p552) target = $region48
        $region47: #{tpu_custom_call.1} parent=23 // pred_region
          %s555 = sand.u32 %s41, 1
          %s556 = scalar_lea.sflag [#allocation12], %s555
          %s557 = sand.u32 %s205, 1
          %s558 = smul.addr %s557, 256
          %s559 = scalar_lea.vmem [#allocation11], %s558
          %s560 = sadd.s32 %s48, %s49
          %s561 = smul.u32 32, %s560
          %s563 = ssub.s32 4096, 4096
          %564 = vsyncadd %s556, %s563
          %s565 = smul.addr %s561, 128
          %s566 = scalar_lea.hbm %s5, %s565
          %s567 = sshll.u32 %s559, 4
          %s568 = int_to_ptr.vmem [resolvable:$true] %s567
          %573 = dma.hbm_to_vmem [thread:$0]  %s566, 4096, %s568, %s556, 128, 128, 8
        $region48: #{tpu_custom_call.1} parent=23 // pred_fallthru
          _
        // Predicated region
        $region49: #{tpu_custom_call.1} parent=23 // pred_check
          %p574 = pneg %p243
        $region50: #{tpu_custom_call.1} parent=23 // pred_check_branch
          %576 = sbr.rel (%p574) target = $region52
        $region51: #{tpu_custom_call.1} parent=23 // pred_region
          %s577 = sand.u32 %s41, 1
          %s578 = scalar_lea.sflag [#allocation12], %s577
          %s579 = sand.u32 %s233, 1
          %s580 = smul.addr %s579, 256
          %s581 = scalar_lea.vmem [#allocation13], %s580
          %s582 = sadd.s32 %s48, %s49
          %s583 = smul.u32 32, %s582
          %s585 = ssub.s32 4096, 4096
          %586 = vsyncadd %s578, %s585
          %s587 = smul.addr %s583, 128
          %s588 = scalar_lea.hbm %s6, %s587
          %s589 = sshll.u32 %s581, 4
          %s590 = int_to_ptr.vmem [resolvable:$true] %s589
          %595 = dma.hbm_to_vmem [thread:$0]  %s588, 4096, %s590, %s578, 128, 128, 8
        $region52: #{tpu_custom_call.1} parent=23 // pred_fallthru
          _
        // Predicated region
        $region53: #{tpu_custom_call.1} parent=23 // pred_check
          %p596 = pneg %p271
        $region54: #{tpu_custom_call.1} parent=23 // pred_check_branch
          %598 = sbr.rel (%p596) target = $region56
        $region55: #{tpu_custom_call.1} parent=23 // pred_region
          %s599 = sand.u32 %s41, 1
          %s600 = scalar_lea.sflag [#allocation15], %s599
          %s601 = sand.u32 %s261, 1
          %s602 = smul.addr %s601, 256
          %s603 = scalar_lea.vmem [#allocation14], %s602
          %s604 = sadd.s32 %s48, %s49
          %s605 = smul.u32 32, %s604
          %s607 = ssub.s32 4096, 4096
          %608 = vsyncadd %s600, %s607
          %s609 = smul.addr %s605, 128
          %s610 = scalar_lea.hbm %s7, %s609
          %s611 = sshll.u32 %s603, 4
          %s612 = int_to_ptr.vmem [resolvable:$true] %s611
          %617 = dma.hbm_to_vmem [thread:$0]  %s610, 4096, %s612, %s600, 128, 128, 8
        $region56: #{tpu_custom_call.1} parent=23 // pred_fallthru
          _
      $region24: #{tpu_custom_call.1} parent=5 // pred_fallthru
        _
      %p618 = scmp.le.s32.totalorder 1, %s41
      %p619 = scmp.lt.s32.totalorder %s41, 3
      %p620 = pnand %p618, %p619
      %p621 = pneg %p620
      // Predicated region
      $region57: #{tpu_custom_call.1} parent=5 // pred_check
        _
      $region58: #{tpu_custom_call.1} parent=5 // pred_check_branch
        %623 = sbr.rel (%p620) target = $region60
      $region59: #{tpu_custom_call.1} parent=5 // pred_region
        %s624 = ssub.s32 %s41, 1
        %s625 = sand.u32 %s68, 1
        %s626 = scalar_lea.sflag [#allocation3], %s625
        %s627 = sand.u32 %s68, 1
        %s628 = smul.addr %s627, 128
        %s629 = scalar_lea.vmem [#allocation2], %s628
        // Predicated region
        $region61: #{tpu_custom_call.1} parent=59 // pred_check
          %p630 = pneg %p81
        $region62: #{tpu_custom_call.1} parent=59 // pred_check_branch
          %632 = sbr.rel (%p630) target = $region64
        $region63: #{tpu_custom_call.1} parent=59 // pred_region
          %633 = dma.done %s626, 2048
        $region64: #{tpu_custom_call.1} parent=59 // pred_fallthru
          _
        %s634 = sand.u32 %s46, 1
        %s635 = scalar_lea.sflag [#allocation6], %s634
        %s636 = sand.u32 %s96, 1
        %s637 = smul.addr %s636, 128
        %s638 = scalar_lea.vmem [#allocation5], %s637
        // Predicated region
        $region65: #{tpu_custom_call.1} parent=59 // pred_check
          %p639 = pneg %p109
        $region66: #{tpu_custom_call.1} parent=59 // pred_check_branch
          %641 = sbr.rel (%p639) target = $region68
        $region67: #{tpu_custom_call.1} parent=59 // pred_region
          %642 = dma.done %s635, 2048
        $region68: #{tpu_custom_call.1} parent=59 // pred_fallthru
          _
        %s643 = sand.u32 %s46, 1
        %s644 = scalar_lea.sflag [#allocation6], %s643
        %s645 = sand.u32 %s124, 1
        %s646 = smul.addr %s645, 128
        %s647 = scalar_lea.vmem [#allocation7], %s646
        // Predicated region
        $region69: #{tpu_custom_call.1} parent=59 // pred_check
          %p648 = pneg %p137
        $region70: #{tpu_custom_call.1} parent=59 // pred_check_branch
          %650 = sbr.rel (%p648) target = $region72
        $region71: #{tpu_custom_call.1} parent=59 // pred_region
          %651 = dma.done %s644, 2048
        $region72: #{tpu_custom_call.1} parent=59 // pred_fallthru
          _
        %s652 = sand.u32 %s46, 1
        %s653 = scalar_lea.sflag [#allocation9], %s652
        %s654 = sand.u32 %s152, 1
        %s655 = smul.addr %s654, 128
        %s656 = scalar_lea.vmem [#allocation8], %s655
        // Predicated region
        $region73: #{tpu_custom_call.1} parent=59 // pred_check
          %p657 = pneg %p165
        $region74: #{tpu_custom_call.1} parent=59 // pred_check_branch
          %659 = sbr.rel (%p657) target = $region76
        $region75: #{tpu_custom_call.1} parent=59 // pred_region
          %660 = dma.done %s653, 2048
        $region76: #{tpu_custom_call.1} parent=59 // pred_fallthru
          _
        %s661 = sand.u32 %s46, 1
        %s662 = scalar_lea.sflag [#allocation9], %s661
        %s663 = sand.u32 %s180, 1
        %s664 = smul.addr %s663, 256
        %s665 = scalar_lea.vmem [#allocation10], %s664
        // Predicated region
        $region77: #{tpu_custom_call.1} parent=59 // pred_check
          %p666 = pneg %p193
        $region78: #{tpu_custom_call.1} parent=59 // pred_check_branch
          %668 = sbr.rel (%p666) target = $region80
        $region79: #{tpu_custom_call.1} parent=59 // pred_region
          %669 = dma.done %s662, 4096
        $region80: #{tpu_custom_call.1} parent=59 // pred_fallthru
          _
        %s670 = sand.u32 %s46, 1
        %s671 = scalar_lea.sflag [#allocation12], %s670
        %s672 = sand.u32 %s208, 1
        %s673 = smul.addr %s672, 256
        %s674 = scalar_lea.vmem [#allocation11], %s673
        // Predicated region
        $region81: #{tpu_custom_call.1} parent=59 // pred_check
          %p675 = pneg %p221
        $region82: #{tpu_custom_call.1} parent=59 // pred_check_branch
          %677 = sbr.rel (%p675) target = $region84
        $region83: #{tpu_custom_call.1} parent=59 // pred_region
          %678 = dma.done %s671, 4096
        $region84: #{tpu_custom_call.1} parent=59 // pred_fallthru
          _
        %s679 = sand.u32 %s46, 1
        %s680 = scalar_lea.sflag [#allocation12], %s679
        %s681 = sand.u32 %s236, 1
        %s682 = smul.addr %s681, 256
        %s683 = scalar_lea.vmem [#allocation13], %s682
        // Predicated region
        $region85: #{tpu_custom_call.1} parent=59 // pred_check
          %p684 = pneg %p249
        $region86: #{tpu_custom_call.1} parent=59 // pred_check_branch
          %686 = sbr.rel (%p684) target = $region88
        $region87: #{tpu_custom_call.1} parent=59 // pred_region
          %687 = dma.done %s680, 4096
        $region88: #{tpu_custom_call.1} parent=59 // pred_fallthru
          _
        %s688 = sand.u32 %s46, 1
        %s689 = scalar_lea.sflag [#allocation15], %s688
        %s690 = sand.u32 %s264, 1
        %s691 = smul.addr %s690, 256
        %s692 = scalar_lea.vmem [#allocation14], %s691
        // Predicated region
        $region89: #{tpu_custom_call.1} parent=59 // pred_check
          %p693 = pneg %p277
        $region90: #{tpu_custom_call.1} parent=59 // pred_check_branch
          %695 = sbr.rel (%p693) target = $region92
        $region91: #{tpu_custom_call.1} parent=59 // pred_region
          %696 = dma.done %s689, 4096
        $region92: #{tpu_custom_call.1} parent=59 // pred_fallthru
          _
        // Predicated region
        $region93: #{tpu_custom_call.1} parent=59 // pred_check
          %p697 = pneg %p298
        $region94: #{tpu_custom_call.1} parent=59 // pred_check_branch
          %699 = sbr.rel (%p697) target = $region96
        $region95: #{tpu_custom_call.1} parent=59 // pred_region
          %700 = dma.done [#allocation15], 512
        $region96: #{tpu_custom_call.1} parent=59 // pred_fallthru
          _
        // Predicated region
        $region97: #{tpu_custom_call.1} parent=59 // pred_check
          %p701 = pneg %p319
        $region98: #{tpu_custom_call.1} parent=59 // pred_check_branch
          %703 = sbr.rel (%p701) target = $region100
        $region99: #{tpu_custom_call.1} parent=59 // pred_region
          %704 = dma.done [#allocation18], 128
        $region100: #{tpu_custom_call.1} parent=59 // pred_fallthru
          _
        %s705 = sand.u32 %s68, 1
        %s706 = scalar_lea.sflag [#allocation3], %s705
        %s707 = sand.u32 %s68, 1
        %s708 = smul.addr %s707, 128
        %s709 = scalar_lea.vmem [#allocation2], %s708
        %p710 = pneg %p81
        %p711 = pneg %p78
        %s712 = sand.u32 %s46, 1
        %s713 = scalar_lea.sflag [#allocation6], %s712
        %s714 = sand.u32 %s96, 1
        %s715 = smul.addr %s714, 128
        %s716 = scalar_lea.vmem [#allocation5], %s715
        %p717 = pneg %p109
        %p718 = pneg %p106
        %s719 = sand.u32 %s46, 1
        %s720 = scalar_lea.sflag [#allocation6], %s719
        %s721 = sand.u32 %s124, 1
        %s722 = smul.addr %s721, 128
        %s723 = scalar_lea.vmem [#allocation7], %s722
        %p724 = pneg %p137
        %p725 = pneg %p134
        %s726 = sand.u32 %s46, 1
        %s727 = scalar_lea.sflag [#allocation9], %s726
        %s728 = sand.u32 %s152, 1
        %s729 = smul.addr %s728, 128
        %s730 = scalar_lea.vmem [#allocation8], %s729
        %p731 = pneg %p165
        %p732 = pneg %p162
        %s733 = sand.u32 %s46, 1
        %s734 = scalar_lea.sflag [#allocation9], %s733
        %s735 = sand.u32 %s180, 1
        %s736 = smul.addr %s735, 256
        %s737 = scalar_lea.vmem [#allocation10], %s736
        %p738 = pneg %p193
        %p739 = pneg %p190
        %s740 = sand.u32 %s46, 1
        %s741 = scalar_lea.sflag [#allocation12], %s740
        %s742 = sand.u32 %s208, 1
        %s743 = smul.addr %s742, 256
        %s744 = scalar_lea.vmem [#allocation11], %s743
        %p745 = pneg %p221
        %p746 = pneg %p218
        %s747 = sand.u32 %s46, 1
        %s748 = scalar_lea.sflag [#allocation12], %s747
        %s749 = sand.u32 %s236, 1
        %s750 = smul.addr %s749, 256
        %s751 = scalar_lea.vmem [#allocation13], %s750
        %p752 = pneg %p249
        %p753 = pneg %p246
        %s754 = sand.u32 %s46, 1
        %s755 = scalar_lea.sflag [#allocation15], %s754
        %s756 = sand.u32 %s264, 1
        %s757 = smul.addr %s756, 256
        %s758 = scalar_lea.vmem [#allocation14], %s757
        %p759 = pneg %p277
        %p760 = pneg %p274
        %p761 = pneg %p298
        %p762 = pneg %p295
        %p763 = pneg %p319
        %p764 = pneg %p316
        %p765 = pneg %p347
        %p766 = pneg %p344
        %s767 = sand.u32 %s334, 1
        %s768 = scalar_lea.sflag [#allocation4], %s767
        %s769 = sand.u32 %s334, 1
        %s770 = smul.addr %s769, 256
        %s771 = scalar_lea.vmem [#allocation19], %s770
        %p772 = pneg %p373
        %p773 = pneg %p370
        %s774 = sand.u32 %s46, 1
        %s775 = scalar_lea.sflag [#allocation21], %s774
        %s776 = sand.u32 %s360, 1
        %s777 = scalar_lea.vmem [#allocation20], %s776
        %p778 = pneg %p399
        %p779 = pneg %p396
        %s780 = sand.u32 %s46, 1
        %s781 = scalar_lea.sflag [#allocation21], %s780
        %s782 = sand.u32 %s386, 1
        %s783 = scalar_lea.vmem [#allocation22], %s782
        %s784 = sadd.s32 %s50, %s51
        %s785 = smul.u32 32, %s784
        %s786 = sadd.s32 %s50, %s51
        %s787 = smul.u32 32, %s786
        %s788 = sadd.s32 %s50, %s51
        %s789 = smul.u32 32, %s788
        %s790 = sadd.s32 %s50, %s51
        %s791 = smul.u32 32, %s790
        %s792 = sadd.s32 %s50, %s51
        %s793 = smul.u32 32, %s792
        %s794 = sadd.s32 %s50, %s51
        %s795 = smul.u32 32, %s794
        %s796 = sadd.s32 %s50, %s51
        %s797 = smul.u32 32, %s796
        %s798 = sadd.s32 %s50, %s51
        %s799 = smul.u32 32, %s798
        %s800 = sadd.s32 %s50, %s51
        %s801 = smul.u32 32, %s800
        %v802 = vld [vmem:[#allocation17] sm:$0xff]
        %v803 = vld [vmem:[%s665] sm:$0xff]
        %v804 = vld [vmem:[%s665 + $0x8] sm:$0xff]
        %v805 = vld [vmem:[%s665 + $0x10] sm:$0xff]
        %v806 = vld [vmem:[%s665 + $0x18] sm:$0xff]
        %v807 = vld [vmem:[%s665 + $0x20] sm:$0xff]
        %v808 = vld [vmem:[%s665 + $0x28] sm:$0xff]
        %v809 = vld [vmem:[%s665 + $0x30] sm:$0xff]
        %v810 = vld [vmem:[%s665 + $0x38] sm:$0xff]
        %v811 = vld [vmem:[%s665 + $0x40] sm:$0xff]
        %v812 = vld [vmem:[%s665 + $0x48] sm:$0xff]
        %v813 = vld [vmem:[%s665 + $0x50] sm:$0xff]
        %v814 = vld [vmem:[%s665 + $0x58] sm:$0xff]
        %v815 = vld [vmem:[%s665 + $0x60] sm:$0xff]
        %v816 = vld [vmem:[%s665 + $0x68] sm:$0xff]
        %v817 = vld [vmem:[%s665 + $0x70] sm:$0xff]
        %v818 = vld [vmem:[%s665 + $0x78] sm:$0xff]
        %v819 = vld [vmem:[%s665 + $0x80] sm:$0xff]
        %v820 = vld [vmem:[%s665 + $0x88] sm:$0xff]
        %v821 = vld [vmem:[%s665 + $0x90] sm:$0xff]
        %v822 = vld [vmem:[%s665 + $0x98] sm:$0xff]
        %v823 = vld [vmem:[%s665 + $0xa0] sm:$0xff]
        %v824 = vld [vmem:[%s665 + $0xa8] sm:$0xff]
        %v825 = vld [vmem:[%s665 + $0xb0] sm:$0xff]
        %v826 = vld [vmem:[%s665 + $0xb8] sm:$0xff]
        %v827 = vld [vmem:[%s665 + $0xc0] sm:$0xff]
        %v828 = vld [vmem:[%s665 + $0xc8] sm:$0xff]
        %v829 = vld [vmem:[%s665 + $0xd0] sm:$0xff]
        %v830 = vld [vmem:[%s665 + $0xd8] sm:$0xff]
        %v831 = vld [vmem:[%s665 + $0xe0] sm:$0xff]
        %v832 = vld [vmem:[%s665 + $0xe8] sm:$0xff]
        %v833 = vld [vmem:[%s665 + $0xf0] sm:$0xff]
        %v834 = vld [vmem:[%s665 + $0xf8] sm:$0xff]
        %vm835 = vcmask 64512
        %v837 = vsel %vm835, %v803, 0
        %v840 = vsel %vm835, %v804, 0
        %v843 = vsel %vm835, %v805, 0
        %v846 = vsel %vm835, %v806, 0
        %v849 = vsel %vm835, %v807, 0
        %v852 = vsel %vm835, %v808, 0
        %v855 = vsel %vm835, %v809, 0
        %v858 = vsel %vm835, %v810, 0
        %v861 = vsel %vm835, %v811, 0
        %v864 = vsel %vm835, %v812, 0
        %v867 = vsel %vm835, %v813, 0
        %v870 = vsel %vm835, %v814, 0
        %v873 = vsel %vm835, %v815, 0
        %v876 = vsel %vm835, %v816, 0
        %v879 = vsel %vm835, %v817, 0
        %v882 = vsel %vm835, %v818, 0
        %v885 = vsel %vm835, %v819, 0
        %v888 = vsel %vm835, %v820, 0
        %v891 = vsel %vm835, %v821, 0
        %v894 = vsel %vm835, %v822, 0
        %v897 = vsel %vm835, %v823, 0
        %v900 = vsel %vm835, %v824, 0
        %v903 = vsel %vm835, %v825, 0
        %v906 = vsel %vm835, %v826, 0
        %v909 = vsel %vm835, %v827, 0
        %v912 = vsel %vm835, %v828, 0
        %v915 = vsel %vm835, %v829, 0
        %v918 = vsel %vm835, %v830, 0
        %v921 = vsel %vm835, %v831, 0
        %v924 = vsel %vm835, %v832, 0
        %v927 = vsel %vm835, %v833, 0
        %v930 = vsel %vm835, %v834, 0
        %932 = vmatprep.subr.mxu0 0.0
        %933 = vmatpush1.msra.mxu0 %v802
        %934 = vmatprep.subr.mxu0 0.0
        %935 = vmatpush1.msra.mxu0 0.0
        %936 = vmatprep.subr.mxu0 0.0
        %937 = vmatpush1.msra.mxu0 0.0
        %938 = vmatprep.subr.mxu0 0.0
        %939 = vmatpush1.msra.mxu0 0.0
        %940 = vmatprep.subr.mxu0 0.0
        %941 = vmatpush1.msra.mxu0 0.0
        %942 = vmatprep.subr.mxu0 0.0
        %943 = vmatpush1.msra.mxu0 0.0
        %944 = vmatprep.subr.mxu0 0.0
        %945 = vmatpush1.msra.mxu0 0.0
        %946 = vmatprep.subr.mxu0 0.0
        %947 = vmatpush1.msra.mxu0 0.0
        %948 = vmatprep.subr.mxu0 0.0
        %949 = vmatpush1.msra.mxu0 0.0
        %950 = vmatprep.subr.mxu0 0.0
        %951 = vmatpush1.msra.mxu0 0.0
        %952 = vmatprep.subr.mxu0 0.0
        %953 = vmatpush1.msra.mxu0 0.0
        %954 = vmatprep.subr.mxu0 0.0
        %955 = vmatpush1.msra.mxu0 0.0
        %956 = vmatprep.subr.mxu0 0.0
        %957 = vmatpush1.msra.mxu0 0.0
        %958 = vmatprep.subr.mxu0 0.0
        %959 = vmatpush1.msra.mxu0 0.0
        %960 = vmatprep.subr.mxu0 0.0
        %961 = vmatpush1.msra.mxu0 0.0
        %962 = vmatprep.subr.mxu0 0.0
        %963 = vmatpush1.msra.mxu0 0.0
        %964 = vmatprep.subr.mxu0 0.0
        %965 = vmatpush1.msra.mxu0 0.0
        %966 = vmatprep.subr.mxu0 0.0
        %967 = vmatpush1.msra.mxu0 0.0
        %968 = vmatprep.subr.mxu0 0.0
        %969 = vmatpush1.msra.mxu0 0.0
        %970 = vmatprep.subr.mxu0 0.0
        %971 = vmatpush1.msra.mxu0 0.0
        %972 = vmatprep.subr.mxu0 0.0
        %973 = vmatpush1.msra.mxu0 0.0
        %974 = vmatprep.subr.mxu0 0.0
        %975 = vmatpush1.msra.mxu0 0.0
        %976 = vmatprep.subr.mxu0 0.0
        %977 = vmatpush1.msra.mxu0 0.0
        %978 = vmatprep.subr.mxu0 0.0
        %979 = vmatpush1.msra.mxu0 0.0
        %980 = vmatprep.subr.mxu0 0.0
        %981 = vmatpush1.msra.mxu0 0.0
        %982 = vmatprep.subr.mxu0 0.0
        %983 = vmatpush1.msra.mxu0 0.0
        %984 = vmatprep.subr.mxu0 0.0
        %985 = vmatpush1.msra.mxu0 0.0
        %986 = vmatprep.subr.mxu0 0.0
        %987 = vmatpush1.msra.mxu0 0.0
        %988 = vmatprep.subr.mxu0 0.0
        %989 = vmatpush1.msra.mxu0 0.0
        %990 = vmatprep.subr.mxu0 0.0
        %991 = vmatpush1.msra.mxu0 0.0
        %992 = vmatprep.subr.mxu0 0.0
        %993 = vmatpush1.msra.mxu0 0.0
        %994 = vmatprep.subr.mxu0 0.0
        %995 = vmatpush1.msra.mxu0 0.0
        %996 = vmatprep.mubr.f32.mxu0 0.0
        %997 = vmatmul.mubr.f32.gmra.mrb[0].mxu0 %v837
        %v998 = vpop.f32.mrb[0].mxu0
        %v999 = vadd.f32 0.0, %v998
        %v1000 = vpop.f32.mrb[0].mxu0
        %1001 = vmatprep.mubr.f32.mxu0 0.0
        %1002 = vmatmul.mubr.f32.gmra.mrb[0].mxu0 %v840
        %v1003 = vpop.f32.mrb[0].mxu0
        %v1004 = vadd.f32 0.0, %v1003
        %v1005 = vpop.f32.mrb[0].mxu0
        %1006 = vmatprep.mubr.f32.mxu0 0.0
        %1007 = vmatmul.mubr.f32.gmra.mrb[0].mxu0 %v843
        %v1008 = vpop.f32.mrb[0].mxu0
        %v1009 = vadd.f32 0.0, %v1008
        %v1010 = vpop.f32.mrb[0].mxu0
        %1011 = vmatprep.mubr.f32.mxu0 0.0
        %1012 = vmatmul.mubr.f32.gmra.mrb[0].mxu0 %v846
        %v1013 = vpop.f32.mrb[0].mxu0
        %v1014 = vadd.f32 0.0, %v1013
        %v1015 = vpop.f32.mrb[0].mxu0
        %1016 = vmatprep.mubr.f32.mxu0 0.0
        %1017 = vmatmul.mubr.f32.gmra.mrb[0].mxu0 %v849
        %v1018 = vpop.f32.mrb[0].mxu0
        %v1019 = vadd.f32 0.0, %v1018
        %v1020 = vpop.f32.mrb[0].mxu0
        %1021 = vmatprep.mubr.f32.mxu0 0.0
        %1022 = vmatmul.mubr.f32.gmra.mrb[0].mxu0 %v852
        %v1023 = vpop.f32.mrb[0].mxu0
        %v1024 = vadd.f32 0.0, %v1023
        %v1025 = vpop.f32.mrb[0].mxu0
        %1026 = vmatprep.mubr.f32.mxu0 0.0
        %1027 = vmatmul.mubr.f32.gmra.mrb[0].mxu0 %v855
        %v1028 = vpop.f32.mrb[0].mxu0
        %v1029 = vadd.f32 0.0, %v1028
        %v1030 = vpop.f32.mrb[0].mxu0
        %1031 = vmatprep.mubr.f32.mxu0 0.0
        %1032 = vmatmul.mubr.f32.gmra.mrb[0].mxu0 %v858
        %v1033 = vpop.f32.mrb[0].mxu0
        %v1034 = vadd.f32 0.0, %v1033
        %v1035 = vpop.f32.mrb[0].mxu0
        %1036 = vmatprep.mubr.f32.mxu0 0.0
        %1037 = vmatmul.mubr.f32.gmra.mrb[0].mxu0 %v861
        %v1038 = vpop.f32.mrb[0].mxu0
        %v1039 = vadd.f32 0.0, %v1038
        %v1040 = vpop.f32.mrb[0].mxu0
        %1041 = vmatprep.mubr.f32.mxu0 0.0
        %1042 = vmatmul.mubr.f32.gmra.mrb[0].mxu0 %v864
        %v1043 = vpop.f32.mrb[0].mxu0
        %v1044 = vadd.f32 0.0, %v1043
        %v1045 = vpop.f32.mrb[0].mxu0
        %1046 = vmatprep.mubr.f32.mxu0 0.0
        %1047 = vmatmul.mubr.f32.gmra.mrb[0].mxu0 %v867
        %v1048 = vpop.f32.mrb[0].mxu0
        %v1049 = vadd.f32 0.0, %v1048
        %v1050 = vpop.f32.mrb[0].mxu0
        %1051 = vmatprep.mubr.f32.mxu0 0.0
        %1052 = vmatmul.mubr.f32.gmra.mrb[0].mxu0 %v870
        %v1053 = vpop.f32.mrb[0].mxu0
        %v1054 = vadd.f32 0.0, %v1053
        %v1055 = vpop.f32.mrb[0].mxu0
        %1056 = vmatprep.mubr.f32.mxu0 0.0
        %1057 = vmatmul.mubr.f32.gmra.mrb[0].mxu0 %v873
        %v1058 = vpop.f32.mrb[0].mxu0
        %v1059 = vadd.f32 0.0, %v1058
        %v1060 = vpop.f32.mrb[0].mxu0
        %1061 = vmatprep.mubr.f32.mxu0 0.0
        %1062 = vmatmul.mubr.f32.gmra.mrb[0].mxu0 %v876
        %v1063 = vpop.f32.mrb[0].mxu0
        %v1064 = vadd.f32 0.0, %v1063
        %v1065 = vpop.f32.mrb[0].mxu0
        %1066 = vmatprep.mubr.f32.mxu0 0.0
        %1067 = vmatmul.mubr.f32.gmra.mrb[0].mxu0 %v879
        %v1068 = vpop.f32.mrb[0].mxu0
        %v1069 = vadd.f32 0.0, %v1068
        %v1070 = vpop.f32.mrb[0].mxu0
        %1071 = vmatprep.mubr.f32.mxu0 0.0
        %1072 = vmatmul.mubr.f32.gmra.mrb[0].mxu0 %v882
        %v1073 = vpop.f32.mrb[0].mxu0
        %v1074 = vadd.f32 0.0, %v1073
        %v1075 = vpop.f32.mrb[0].mxu0
        %1076 = vmatprep.mubr.f32.mxu0 0.0
        %1077 = vmatmul.mubr.f32.gmra.mrb[0].mxu0 %v885
        %v1078 = vpop.f32.mrb[0].mxu0
        %v1079 = vadd.f32 0.0, %v1078
        %v1080 = vpop.f32.mrb[0].mxu0
        %1081 = vmatprep.mubr.f32.mxu0 0.0
        %1082 = vmatmul.mubr.f32.gmra.mrb[0].mxu0 %v888
        %v1083 = vpop.f32.mrb[0].mxu0
        %v1084 = vadd.f32 0.0, %v1083
        %v1085 = vpop.f32.mrb[0].mxu0
        %1086 = vmatprep.mubr.f32.mxu0 0.0
        %1087 = vmatmul.mubr.f32.gmra.mrb[0].mxu0 %v891
        %v1088 = vpop.f32.mrb[0].mxu0
        %v1089 = vadd.f32 0.0, %v1088
        %v1090 = vpop.f32.mrb[0].mxu0
        %1091 = vmatprep.mubr.f32.mxu0 0.0
        %1092 = vmatmul.mubr.f32.gmra.mrb[0].mxu0 %v894
        %v1093 = vpop.f32.mrb[0].mxu0
        %v1094 = vadd.f32 0.0, %v1093
        %v1095 = vpop.f32.mrb[0].mxu0
        %1096 = vmatprep.mubr.f32.mxu0 0.0
        %1097 = vmatmul.mubr.f32.gmra.mrb[0].mxu0 %v897
        %v1098 = vpop.f32.mrb[0].mxu0
        %v1099 = vadd.f32 0.0, %v1098
        %v1100 = vpop.f32.mrb[0].mxu0
        %1101 = vmatprep.mubr.f32.mxu0 0.0
        %1102 = vmatmul.mubr.f32.gmra.mrb[0].mxu0 %v900
        %v1103 = vpop.f32.mrb[0].mxu0
        %v1104 = vadd.f32 0.0, %v1103
        %v1105 = vpop.f32.mrb[0].mxu0
        %1106 = vmatprep.mubr.f32.mxu0 0.0
        %1107 = vmatmul.mubr.f32.gmra.mrb[0].mxu0 %v903
        %v1108 = vpop.f32.mrb[0].mxu0
        %v1109 = vadd.f32 0.0, %v1108
        %v1110 = vpop.f32.mrb[0].mxu0
        %1111 = vmatprep.mubr.f32.mxu0 0.0
        %1112 = vmatmul.mubr.f32.gmra.mrb[0].mxu0 %v906
        %v1113 = vpop.f32.mrb[0].mxu0
        %v1114 = vadd.f32 0.0, %v1113
        %v1115 = vpop.f32.mrb[0].mxu0
        %1116 = vmatprep.mubr.f32.mxu0 0.0
        %1117 = vmatmul.mubr.f32.gmra.mrb[0].mxu0 %v909
        %v1118 = vpop.f32.mrb[0].mxu0
        %v1119 = vadd.f32 0.0, %v1118
        %v1120 = vpop.f32.mrb[0].mxu0
        %1121 = vmatprep.mubr.f32.mxu0 0.0
        %1122 = vmatmul.mubr.f32.gmra.mrb[0].mxu0 %v912
        %v1123 = vpop.f32.mrb[0].mxu0
        %v1124 = vadd.f32 0.0, %v1123
        %v1125 = vpop.f32.mrb[0].mxu0
        %1126 = vmatprep.mubr.f32.mxu0 0.0
        %1127 = vmatmul.mubr.f32.gmra.mrb[0].mxu0 %v915
        %v1128 = vpop.f32.mrb[0].mxu0
        %v1129 = vadd.f32 0.0, %v1128
        %v1130 = vpop.f32.mrb[0].mxu0
        %1131 = vmatprep.mubr.f32.mxu0 0.0
        %1132 = vmatmul.mubr.f32.gmra.mrb[0].mxu0 %v918
        %v1133 = vpop.f32.mrb[0].mxu0
        %v1134 = vadd.f32 0.0, %v1133
        %v1135 = vpop.f32.mrb[0].mxu0
        %1136 = vmatprep.mubr.f32.mxu0 0.0
        %1137 = vmatmul.mubr.f32.gmra.mrb[0].mxu0 %v921
        %v1138 = vpop.f32.mrb[0].mxu0
        %v1139 = vadd.f32 0.0, %v1138
        %v1140 = vpop.f32.mrb[0].mxu0
        %1141 = vmatprep.mubr.f32.mxu0 0.0
        %1142 = vmatmul.mubr.f32.gmra.mrb[0].mxu0 %v924
        %v1143 = vpop.f32.mrb[0].mxu0
        %v1144 = vadd.f32 0.0, %v1143
        %v1145 = vpop.f32.mrb[0].mxu0
        %1146 = vmatprep.mubr.f32.mxu0 0.0
        %1147 = vmatmul.mubr.f32.gmra.mrb[0].mxu0 %v927
        %v1148 = vpop.f32.mrb[0].mxu0
        %v1149 = vadd.f32 0.0, %v1148
        %v1150 = vpop.f32.mrb[0].mxu0
        %1151 = vmatprep.mubr.f32.mxu0 0.0
        %1152 = vmatmul.mubr.f32.gmra.mrb[0].mxu0 %v930
        %v1153 = vpop.f32.mrb[0].mxu0
        %v1154 = vadd.f32 0.0, %v1153
        %v1155 = vpop.f32.mrb[0].mxu0
        %1156 = vdwg.mxu0
        %v1157 = vld [vmem:[%s629] sm:$0xf]
        %v1158 = vld [vmem:[%s629 + $0x4] sm:$0xf]
        %v1159 = vld [vmem:[%s629 + $0x8] sm:$0xf]
        %v1160 = vld [vmem:[%s629 + $0xc] sm:$0xf]
        %v1161 = vld [vmem:[%s629 + $0x10] sm:$0xf]
        %v1162 = vld [vmem:[%s629 + $0x14] sm:$0xf]
        %v1163 = vld [vmem:[%s629 + $0x18] sm:$0xf]
        %v1164 = vld [vmem:[%s629 + $0x1c] sm:$0xf]
        %v1165 = vld [vmem:[%s629 + $0x20] sm:$0xf]
        %v1166 = vld [vmem:[%s629 + $0x24] sm:$0xf]
        %v1167 = vld [vmem:[%s629 + $0x28] sm:$0xf]
        %v1168 = vld [vmem:[%s629 + $0x2c] sm:$0xf]
        %v1169 = vld [vmem:[%s629 + $0x30] sm:$0xf]
        %v1170 = vld [vmem:[%s629 + $0x34] sm:$0xf]
        %v1171 = vld [vmem:[%s629 + $0x38] sm:$0xf]
        %v1172 = vld [vmem:[%s629 + $0x3c] sm:$0xf]
        %v1173 = vld [vmem:[%s629 + $0x40] sm:$0xf]
        %v1174 = vld [vmem:[%s629 + $0x44] sm:$0xf]
        %v1175 = vld [vmem:[%s629 + $0x48] sm:$0xf]
        %v1176 = vld [vmem:[%s629 + $0x4c] sm:$0xf]
        %v1177 = vld [vmem:[%s629 + $0x50] sm:$0xf]
        %v1178 = vld [vmem:[%s629 + $0x54] sm:$0xf]
        %v1179 = vld [vmem:[%s629 + $0x58] sm:$0xf]
        %v1180 = vld [vmem:[%s629 + $0x5c] sm:$0xf]
        %v1181 = vld [vmem:[%s629 + $0x60] sm:$0xf]
        %v1182 = vld [vmem:[%s629 + $0x64] sm:$0xf]
        %v1183 = vld [vmem:[%s629 + $0x68] sm:$0xf]
        %v1184 = vld [vmem:[%s629 + $0x6c] sm:$0xf]
        %v1185 = vld [vmem:[%s629 + $0x70] sm:$0xf]
        %v1186 = vld [vmem:[%s629 + $0x74] sm:$0xf]
        %v1187 = vld [vmem:[%s629 + $0x78] sm:$0xf]
        %v1188 = vld [vmem:[%s629 + $0x7c] sm:$0xf]
        %v1189 = vunpack.c.l.bf16 %v1157
        %v1190 = vunpack.c.l.bf16 %v1158
        %v1191 = vunpack.c.l.bf16 %v1159
        %v1192 = vunpack.c.l.bf16 %v1160
        %v1193 = vunpack.c.l.bf16 %v1161
        %v1194 = vunpack.c.l.bf16 %v1162
        %v1195 = vunpack.c.l.bf16 %v1163
        %v1196 = vunpack.c.l.bf16 %v1164
        %v1197 = vunpack.c.l.bf16 %v1165
        %v1198 = vunpack.c.l.bf16 %v1166
        %v1199 = vunpack.c.l.bf16 %v1167
        %v1200 = vunpack.c.l.bf16 %v1168
        %v1201 = vunpack.c.l.bf16 %v1169
        %v1202 = vunpack.c.l.bf16 %v1170
        %v1203 = vunpack.c.l.bf16 %v1171
        %v1204 = vunpack.c.l.bf16 %v1172
        %v1205 = vunpack.c.l.bf16 %v1173
        %v1206 = vunpack.c.l.bf16 %v1174
        %v1207 = vunpack.c.l.bf16 %v1175
        %v1208 = vunpack.c.l.bf16 %v1176
        %v1209 = vunpack.c.l.bf16 %v1177
        %v1210 = vunpack.c.l.bf16 %v1178
        %v1211 = vunpack.c.l.bf16 %v1179
        %v1212 = vunpack.c.l.bf16 %v1180
        %v1213 = vunpack.c.l.bf16 %v1181
        %v1214 = vunpack.c.l.bf16 %v1182
        %v1215 = vunpack.c.l.bf16 %v1183
        %v1216 = vunpack.c.l.bf16 %v1184
        %v1217 = vunpack.c.l.bf16 %v1185
        %v1218 = vunpack.c.l.bf16 %v1186
        %v1219 = vunpack.c.l.bf16 %v1187
        %v1220 = vunpack.c.l.bf16 %v1188
        %v1221 = vmul.f32 %v999, %v1189
        %v1222 = vmul.f32 %v1004, %v1190
        %v1223 = vmul.f32 %v1009, %v1191
        %v1224 = vmul.f32 %v1014, %v1192
        %v1225 = vmul.f32 %v1019, %v1193
        %v1226 = vmul.f32 %v1024, %v1194
        %v1227 = vmul.f32 %v1029, %v1195
        %v1228 = vmul.f32 %v1034, %v1196
        %v1229 = vmul.f32 %v1039, %v1197
        %v1230 = vmul.f32 %v1044, %v1198
        %v1231 = vmul.f32 %v1049, %v1199
        %v1232 = vmul.f32 %v1054, %v1200
        %v1233 = vmul.f32 %v1059, %v1201
        %v1234 = vmul.f32 %v1064, %v1202
        %v1235 = vmul.f32 %v1069, %v1203
        %v1236 = vmul.f32 %v1074, %v1204
        %v1237 = vmul.f32 %v1079, %v1205
        %v1238 = vmul.f32 %v1084, %v1206
        %v1239 = vmul.f32 %v1089, %v1207
        %v1240 = vmul.f32 %v1094, %v1208
        %v1241 = vmul.f32 %v1099, %v1209
        %v1242 = vmul.f32 %v1104, %v1210
        %v1243 = vmul.f32 %v1109, %v1211
        %v1244 = vmul.f32 %v1114, %v1212
        %v1245 = vmul.f32 %v1119, %v1213
        %v1246 = vmul.f32 %v1124, %v1214
        %v1247 = vmul.f32 %v1129, %v1215
        %v1248 = vmul.f32 %v1134, %v1216
        %v1249 = vmul.f32 %v1139, %v1217
        %v1250 = vmul.f32 %v1144, %v1218
        %v1251 = vmul.f32 %v1149, %v1219
        %v1252 = vmul.f32 %v1154, %v1220
        %v1253 = vld [vmem:[%s674] sm:$0xff]
        %v1254 = vld [vmem:[%s674 + $0x8] sm:$0xff]
        %v1255 = vld [vmem:[%s674 + $0x10] sm:$0xff]
        %v1256 = vld [vmem:[%s674 + $0x18] sm:$0xff]
        %v1257 = vld [vmem:[%s674 + $0x20] sm:$0xff]
        %v1258 = vld [vmem:[%s674 + $0x28] sm:$0xff]
        %v1259 = vld [vmem:[%s674 + $0x30] sm:$0xff]
        %v1260 = vld [vmem:[%s674 + $0x38] sm:$0xff]
        %v1261 = vld [vmem:[%s674 + $0x40] sm:$0xff]
        %v1262 = vld [vmem:[%s674 + $0x48] sm:$0xff]
        %v1263 = vld [vmem:[%s674 + $0x50] sm:$0xff]
        %v1264 = vld [vmem:[%s674 + $0x58] sm:$0xff]
        %v1265 = vld [vmem:[%s674 + $0x60] sm:$0xff]
        %v1266 = vld [vmem:[%s674 + $0x68] sm:$0xff]
        %v1267 = vld [vmem:[%s674 + $0x70] sm:$0xff]
        %v1268 = vld [vmem:[%s674 + $0x78] sm:$0xff]
        %v1269 = vld [vmem:[%s674 + $0x80] sm:$0xff]
        %v1270 = vld [vmem:[%s674 + $0x88] sm:$0xff]
        %v1271 = vld [vmem:[%s674 + $0x90] sm:$0xff]
        %v1272 = vld [vmem:[%s674 + $0x98] sm:$0xff]
        %v1273 = vld [vmem:[%s674 + $0xa0] sm:$0xff]
        %v1274 = vld [vmem:[%s674 + $0xa8] sm:$0xff]
        %v1275 = vld [vmem:[%s674 + $0xb0] sm:$0xff]
        %v1276 = vld [vmem:[%s674 + $0xb8] sm:$0xff]
        %v1277 = vld [vmem:[%s674 + $0xc0] sm:$0xff]
        %v1278 = vld [vmem:[%s674 + $0xc8] sm:$0xff]
        %v1279 = vld [vmem:[%s674 + $0xd0] sm:$0xff]
        %v1280 = vld [vmem:[%s674 + $0xd8] sm:$0xff]
        %v1281 = vld [vmem:[%s674 + $0xe0] sm:$0xff]
        %v1282 = vld [vmem:[%s674 + $0xe8] sm:$0xff]
        %v1283 = vld [vmem:[%s674 + $0xf0] sm:$0xff]
        %v1284 = vld [vmem:[%s674 + $0xf8] sm:$0xff]
        %v1286 = vsel %vm835, %v1253, 0
        %v1289 = vsel %vm835, %v1254, 0
        %v1292 = vsel %vm835, %v1255, 0
        %v1295 = vsel %vm835, %v1256, 0
        %v1298 = vsel %vm835, %v1257, 0
        %v1301 = vsel %vm835, %v1258, 0
        %v1304 = vsel %vm835, %v1259, 0
        %v1307 = vsel %vm835, %v1260, 0
        %v1310 = vsel %vm835, %v1261, 0
        %v1313 = vsel %vm835, %v1262, 0
        %v1316 = vsel %vm835, %v1263, 0
        %v1319 = vsel %vm835, %v1264, 0
        %v1322 = vsel %vm835, %v1265, 0
        %v1325 = vsel %vm835, %v1266, 0
        %v1328 = vsel %vm835, %v1267, 0
        %v1331 = vsel %vm835, %v1268, 0
        %v1334 = vsel %vm835, %v1269, 0
        %v1337 = vsel %vm835, %v1270, 0
        %v1340 = vsel %vm835, %v1271, 0
        %v1343 = vsel %vm835, %v1272, 0
        %v1346 = vsel %vm835, %v1273, 0
        %v1349 = vsel %vm835, %v1274, 0
        %v1352 = vsel %vm835, %v1275, 0
        %v1355 = vsel %vm835, %v1276, 0
        %v1358 = vsel %vm835, %v1277, 0
        %v1361 = vsel %vm835, %v1278, 0
        %v1364 = vsel %vm835, %v1279, 0
        %v1367 = vsel %vm835, %v1280, 0
        %v1370 = vsel %vm835, %v1281, 0
        %v1373 = vsel %vm835, %v1282, 0
        %v1376 = vsel %vm835, %v1283, 0
        %v1379 = vsel %vm835, %v1284, 0
        %1381 = vmatprep.subr.mxu0 0.0
        %1382 = vmatpush1.msra.mxu0 %v802
        %1383 = vmatprep.subr.mxu0 0.0
        %1384 = vmatpush1.msra.mxu0 0.0
        %1385 = vmatprep.subr.mxu0 0.0
        %1386 = vmatpush1.msra.mxu0 0.0
        %1387 = vmatprep.subr.mxu0 0.0
        %1388 = vmatpush1.msra.mxu0 0.0
        %1389 = vmatprep.subr.mxu0 0.0
        %1390 = vmatpush1.msra.mxu0 0.0
        %1391 = vmatprep.subr.mxu0 0.0
        %1392 = vmatpush1.msra.mxu0 0.0
        %1393 = vmatprep.subr.mxu0 0.0
        %1394 = vmatpush1.msra.mxu0 0.0
        %1395 = vmatprep.subr.mxu0 0.0
        %1396 = vmatpush1.msra.mxu0 0.0
        %1397 = vmatprep.subr.mxu0 0.0
        %1398 = vmatpush1.msra.mxu0 0.0
        %1399 = vmatprep.subr.mxu0 0.0
        %1400 = vmatpush1.msra.mxu0 0.0
        %1401 = vmatprep.subr.mxu0 0.0
        %1402 = vmatpush1.msra.mxu0 0.0
        %1403 = vmatprep.subr.mxu0 0.0
        %1404 = vmatpush1.msra.mxu0 0.0
        %1405 = vmatprep.subr.mxu0 0.0
        %1406 = vmatpush1.msra.mxu0 0.0
        %1407 = vmatprep.subr.mxu0 0.0
        %1408 = vmatpush1.msra.mxu0 0.0
        %1409 = vmatprep.subr.mxu0 0.0
        %1410 = vmatpush1.msra.mxu0 0.0
        %1411 = vmatprep.subr.mxu0 0.0
        %1412 = vmatpush1.msra.mxu0 0.0
        %1413 = vmatprep.subr.mxu0 0.0
        %1414 = vmatpush1.msra.mxu0 0.0
        %1415 = vmatprep.subr.mxu0 0.0
        %1416 = vmatpush1.msra.mxu0 0.0
        %1417 = vmatprep.subr.mxu0 0.0
        %1418 = vmatpush1.msra.mxu0 0.0
        %1419 = vmatprep.subr.mxu0 0.0
        %1420 = vmatpush1.msra.mxu0 0.0
        %1421 = vmatprep.subr.mxu0 0.0
        %1422 = vmatpush1.msra.mxu0 0.0
        %1423 = vmatprep.subr.mxu0 0.0
        %1424 = vmatpush1.msra.mxu0 0.0
        %1425 = vmatprep.subr.mxu0 0.0
        %1426 = vmatpush1.msra.mxu0 0.0
        %1427 = vmatprep.subr.mxu0 0.0
        %1428 = vmatpush1.msra.mxu0 0.0
        %1429 = vmatprep.subr.mxu0 0.0
        %1430 = vmatpush1.msra.mxu0 0.0
        %1431 = vmatprep.subr.mxu0 0.0
        %1432 = vmatpush1.msra.mxu0 0.0
        %1433 = vmatprep.subr.mxu0 0.0
        %1434 = vmatpush1.msra.mxu0 0.0
        %1435 = vmatprep.subr.mxu0 0.0
        %1436 = vmatpush1.msra.mxu0 0.0
        %1437 = vmatprep.subr.mxu0 0.0
        %1438 = vmatpush1.msra.mxu0 0.0
        %1439 = vmatprep.subr.mxu0 0.0
        %1440 = vmatpush1.msra.mxu0 0.0
        %1441 = vmatprep.subr.mxu0 0.0
        %1442 = vmatpush1.msra.mxu0 0.0
        %1443 = vmatprep.subr.mxu0 0.0
        %1444 = vmatpush1.msra.mxu0 0.0
        %1445 = vmatprep.mubr.f32.mxu0 0.0
        %1446 = vmatmul.mubr.f32.gmra.mrb[0].mxu0 %v1286
        %v1447 = vpop.f32.mrb[0].mxu0
        %v1448 = vadd.f32 0.0, %v1447
        %v1449 = vpop.f32.mrb[0].mxu0
        %1450 = vmatprep.mubr.f32.mxu0 0.0
        %1451 = vmatmul.mubr.f32.gmra.mrb[0].mxu0 %v1289
        %v1452 = vpop.f32.mrb[0].mxu0
        %v1453 = vadd.f32 0.0, %v1452
        %v1454 = vpop.f32.mrb[0].mxu0
        %1455 = vmatprep.mubr.f32.mxu0 0.0
        %1456 = vmatmul.mubr.f32.gmra.mrb[0].mxu0 %v1292
        %v1457 = vpop.f32.mrb[0].mxu0
        %v1458 = vadd.f32 0.0, %v1457
        %v1459 = vpop.f32.mrb[0].mxu0
        %1460 = vmatprep.mubr.f32.mxu0 0.0
        %1461 = vmatmul.mubr.f32.gmra.mrb[0].mxu0 %v1295
        %v1462 = vpop.f32.mrb[0].mxu0
        %v1463 = vadd.f32 0.0, %v1462
        %v1464 = vpop.f32.mrb[0].mxu0
        %1465 = vmatprep.mubr.f32.mxu0 0.0
        %1466 = vmatmul.mubr.f32.gmra.mrb[0].mxu0 %v1298
        %v1467 = vpop.f32.mrb[0].mxu0
        %v1468 = vadd.f32 0.0, %v1467
        %v1469 = vpop.f32.mrb[0].mxu0
        %1470 = vmatprep.mubr.f32.mxu0 0.0
        %1471 = vmatmul.mubr.f32.gmra.mrb[0].mxu0 %v1301
        %v1472 = vpop.f32.mrb[0].mxu0
        %v1473 = vadd.f32 0.0, %v1472
        %v1474 = vpop.f32.mrb[0].mxu0
        %1475 = vmatprep.mubr.f32.mxu0 0.0
        %1476 = vmatmul.mubr.f32.gmra.mrb[0].mxu0 %v1304
        %v1477 = vpop.f32.mrb[0].mxu0
        %v1478 = vadd.f32 0.0, %v1477
        %v1479 = vpop.f32.mrb[0].mxu0
        %1480 = vmatprep.mubr.f32.mxu0 0.0
        %1481 = vmatmul.mubr.f32.gmra.mrb[0].mxu0 %v1307
        %v1482 = vpop.f32.mrb[0].mxu0
        %v1483 = vadd.f32 0.0, %v1482
        %v1484 = vpop.f32.mrb[0].mxu0
        %1485 = vmatprep.mubr.f32.mxu0 0.0
        %1486 = vmatmul.mubr.f32.gmra.mrb[0].mxu0 %v1310
        %v1487 = vpop.f32.mrb[0].mxu0
        %v1488 = vadd.f32 0.0, %v1487
        %v1489 = vpop.f32.mrb[0].mxu0
        %1490 = vmatprep.mubr.f32.mxu0 0.0
        %1491 = vmatmul.mubr.f32.gmra.mrb[0].mxu0 %v1313
        %v1492 = vpop.f32.mrb[0].mxu0
        %v1493 = vadd.f32 0.0, %v1492
        %v1494 = vpop.f32.mrb[0].mxu0
        %1495 = vmatprep.mubr.f32.mxu0 0.0
        %1496 = vmatmul.mubr.f32.gmra.mrb[0].mxu0 %v1316
        %v1497 = vpop.f32.mrb[0].mxu0
        %v1498 = vadd.f32 0.0, %v1497
        %v1499 = vpop.f32.mrb[0].mxu0
        %1500 = vmatprep.mubr.f32.mxu0 0.0
        %1501 = vmatmul.mubr.f32.gmra.mrb[0].mxu0 %v1319
        %v1502 = vpop.f32.mrb[0].mxu0
        %v1503 = vadd.f32 0.0, %v1502
        %v1504 = vpop.f32.mrb[0].mxu0
        %1505 = vmatprep.mubr.f32.mxu0 0.0
        %1506 = vmatmul.mubr.f32.gmra.mrb[0].mxu0 %v1322
        %v1507 = vpop.f32.mrb[0].mxu0
        %v1508 = vadd.f32 0.0, %v1507
        %v1509 = vpop.f32.mrb[0].mxu0
        %1510 = vmatprep.mubr.f32.mxu0 0.0
        %1511 = vmatmul.mubr.f32.gmra.mrb[0].mxu0 %v1325
        %v1512 = vpop.f32.mrb[0].mxu0
        %v1513 = vadd.f32 0.0, %v1512
        %v1514 = vpop.f32.mrb[0].mxu0
        %1515 = vmatprep.mubr.f32.mxu0 0.0
        %1516 = vmatmul.mubr.f32.gmra.mrb[0].mxu0 %v1328
        %v1517 = vpop.f32.mrb[0].mxu0
        %v1518 = vadd.f32 0.0, %v1517
        %v1519 = vpop.f32.mrb[0].mxu0
        %1520 = vmatprep.mubr.f32.mxu0 0.0
        %1521 = vmatmul.mubr.f32.gmra.mrb[0].mxu0 %v1331
        %v1522 = vpop.f32.mrb[0].mxu0
        %v1523 = vadd.f32 0.0, %v1522
        %v1524 = vpop.f32.mrb[0].mxu0
        %1525 = vmatprep.mubr.f32.mxu0 0.0
        %1526 = vmatmul.mubr.f32.gmra.mrb[0].mxu0 %v1334
        %v1527 = vpop.f32.mrb[0].mxu0
        %v1528 = vadd.f32 0.0, %v1527
        %v1529 = vpop.f32.mrb[0].mxu0
        %1530 = vmatprep.mubr.f32.mxu0 0.0
        %1531 = vmatmul.mubr.f32.gmra.mrb[0].mxu0 %v1337
        %v1532 = vpop.f32.mrb[0].mxu0
        %v1533 = vadd.f32 0.0, %v1532
        %v1534 = vpop.f32.mrb[0].mxu0
        %1535 = vmatprep.mubr.f32.mxu0 0.0
        %1536 = vmatmul.mubr.f32.gmra.mrb[0].mxu0 %v1340
        %v1537 = vpop.f32.mrb[0].mxu0
        %v1538 = vadd.f32 0.0, %v1537
        %v1539 = vpop.f32.mrb[0].mxu0
        %1540 = vmatprep.mubr.f32.mxu0 0.0
        %1541 = vmatmul.mubr.f32.gmra.mrb[0].mxu0 %v1343
        %v1542 = vpop.f32.mrb[0].mxu0
        %v1543 = vadd.f32 0.0, %v1542
        %v1544 = vpop.f32.mrb[0].mxu0
        %1545 = vmatprep.mubr.f32.mxu0 0.0
        %1546 = vmatmul.mubr.f32.gmra.mrb[0].mxu0 %v1346
        %v1547 = vpop.f32.mrb[0].mxu0
        %v1548 = vadd.f32 0.0, %v1547
        %v1549 = vpop.f32.mrb[0].mxu0
        %1550 = vmatprep.mubr.f32.mxu0 0.0
        %1551 = vmatmul.mubr.f32.gmra.mrb[0].mxu0 %v1349
        %v1552 = vpop.f32.mrb[0].mxu0
        %v1553 = vadd.f32 0.0, %v1552
        %v1554 = vpop.f32.mrb[0].mxu0
        %1555 = vmatprep.mubr.f32.mxu0 0.0
        %1556 = vmatmul.mubr.f32.gmra.mrb[0].mxu0 %v1352
        %v1557 = vpop.f32.mrb[0].mxu0
        %v1558 = vadd.f32 0.0, %v1557
        %v1559 = vpop.f32.mrb[0].mxu0
        %1560 = vmatprep.mubr.f32.mxu0 0.0
        %1561 = vmatmul.mubr.f32.gmra.mrb[0].mxu0 %v1355
        %v1562 = vpop.f32.mrb[0].mxu0
        %v1563 = vadd.f32 0.0, %v1562
        %v1564 = vpop.f32.mrb[0].mxu0
        %1565 = vmatprep.mubr.f32.mxu0 0.0
        %1566 = vmatmul.mubr.f32.gmra.mrb[0].mxu0 %v1358
        %v1567 = vpop.f32.mrb[0].mxu0
        %v1568 = vadd.f32 0.0, %v1567
        %v1569 = vpop.f32.mrb[0].mxu0
        %1570 = vmatprep.mubr.f32.mxu0 0.0
        %1571 = vmatmul.mubr.f32.gmra.mrb[0].mxu0 %v1361
        %v1572 = vpop.f32.mrb[0].mxu0
        %v1573 = vadd.f32 0.0, %v1572
        %v1574 = vpop.f32.mrb[0].mxu0
        %1575 = vmatprep.mubr.f32.mxu0 0.0
        %1576 = vmatmul.mubr.f32.gmra.mrb[0].mxu0 %v1364
        %v1577 = vpop.f32.mrb[0].mxu0
        %v1578 = vadd.f32 0.0, %v1577
        %v1579 = vpop.f32.mrb[0].mxu0
        %1580 = vmatprep.mubr.f32.mxu0 0.0
        %1581 = vmatmul.mubr.f32.gmra.mrb[0].mxu0 %v1367
        %v1582 = vpop.f32.mrb[0].mxu0
        %v1583 = vadd.f32 0.0, %v1582
        %v1584 = vpop.f32.mrb[0].mxu0
        %1585 = vmatprep.mubr.f32.mxu0 0.0
        %1586 = vmatmul.mubr.f32.gmra.mrb[0].mxu0 %v1370
        %v1587 = vpop.f32.mrb[0].mxu0
        %v1588 = vadd.f32 0.0, %v1587
        %v1589 = vpop.f32.mrb[0].mxu0
        %1590 = vmatprep.mubr.f32.mxu0 0.0
        %1591 = vmatmul.mubr.f32.gmra.mrb[0].mxu0 %v1373
        %v1592 = vpop.f32.mrb[0].mxu0
        %v1593 = vadd.f32 0.0, %v1592
        %v1594 = vpop.f32.mrb[0].mxu0
        %1595 = vmatprep.mubr.f32.mxu0 0.0
        %1596 = vmatmul.mubr.f32.gmra.mrb[0].mxu0 %v1376
        %v1597 = vpop.f32.mrb[0].mxu0
        %v1598 = vadd.f32 0.0, %v1597
        %v1599 = vpop.f32.mrb[0].mxu0
        %1600 = vmatprep.mubr.f32.mxu0 0.0
        %1601 = vmatmul.mubr.f32.gmra.mrb[0].mxu0 %v1379
        %v1602 = vpop.f32.mrb[0].mxu0
        %v1603 = vadd.f32 0.0, %v1602
        %v1604 = vpop.f32.mrb[0].mxu0
        %1605 = vdwg.mxu0
        %v1606 = vld [vmem:[%s638] sm:$0xf]
        %v1607 = vld [vmem:[%s638 + $0x4] sm:$0xf]
        %v1608 = vld [vmem:[%s638 + $0x8] sm:$0xf]
        %v1609 = vld [vmem:[%s638 + $0xc] sm:$0xf]
        %v1610 = vld [vmem:[%s638 + $0x10] sm:$0xf]
        %v1611 = vld [vmem:[%s638 + $0x14] sm:$0xf]
        %v1612 = vld [vmem:[%s638 + $0x18] sm:$0xf]
        %v1613 = vld [vmem:[%s638 + $0x1c] sm:$0xf]
        %v1614 = vld [vmem:[%s638 + $0x20] sm:$0xf]
        %v1615 = vld [vmem:[%s638 + $0x24] sm:$0xf]
        %v1616 = vld [vmem:[%s638 + $0x28] sm:$0xf]
        %v1617 = vld [vmem:[%s638 + $0x2c] sm:$0xf]
        %v1618 = vld [vmem:[%s638 + $0x30] sm:$0xf]
        %v1619 = vld [vmem:[%s638 + $0x34] sm:$0xf]
        %v1620 = vld [vmem:[%s638 + $0x38] sm:$0xf]
        %v1621 = vld [vmem:[%s638 + $0x3c] sm:$0xf]
        %v1622 = vld [vmem:[%s638 + $0x40] sm:$0xf]
        %v1623 = vld [vmem:[%s638 + $0x44] sm:$0xf]
        %v1624 = vld [vmem:[%s638 + $0x48] sm:$0xf]
        %v1625 = vld [vmem:[%s638 + $0x4c] sm:$0xf]
        %v1626 = vld [vmem:[%s638 + $0x50] sm:$0xf]
        %v1627 = vld [vmem:[%s638 + $0x54] sm:$0xf]
        %v1628 = vld [vmem:[%s638 + $0x58] sm:$0xf]
        %v1629 = vld [vmem:[%s638 + $0x5c] sm:$0xf]
        %v1630 = vld [vmem:[%s638 + $0x60] sm:$0xf]
        %v1631 = vld [vmem:[%s638 + $0x64] sm:$0xf]
        %v1632 = vld [vmem:[%s638 + $0x68] sm:$0xf]
        %v1633 = vld [vmem:[%s638 + $0x6c] sm:$0xf]
        %v1634 = vld [vmem:[%s638 + $0x70] sm:$0xf]
        %v1635 = vld [vmem:[%s638 + $0x74] sm:$0xf]
        %v1636 = vld [vmem:[%s638 + $0x78] sm:$0xf]
        %v1637 = vld [vmem:[%s638 + $0x7c] sm:$0xf]
        %v1638 = vunpack.c.l.bf16 %v1606
        %v1639 = vunpack.c.l.bf16 %v1607
        %v1640 = vunpack.c.l.bf16 %v1608
        %v1641 = vunpack.c.l.bf16 %v1609
        %v1642 = vunpack.c.l.bf16 %v1610
        %v1643 = vunpack.c.l.bf16 %v1611
        %v1644 = vunpack.c.l.bf16 %v1612
        %v1645 = vunpack.c.l.bf16 %v1613
        %v1646 = vunpack.c.l.bf16 %v1614
        %v1647 = vunpack.c.l.bf16 %v1615
        %v1648 = vunpack.c.l.bf16 %v1616
        %v1649 = vunpack.c.l.bf16 %v1617
        %v1650 = vunpack.c.l.bf16 %v1618
        %v1651 = vunpack.c.l.bf16 %v1619
        %v1652 = vunpack.c.l.bf16 %v1620
        %v1653 = vunpack.c.l.bf16 %v1621
        %v1654 = vunpack.c.l.bf16 %v1622
        %v1655 = vunpack.c.l.bf16 %v1623
        %v1656 = vunpack.c.l.bf16 %v1624
        %v1657 = vunpack.c.l.bf16 %v1625
        %v1658 = vunpack.c.l.bf16 %v1626
        %v1659 = vunpack.c.l.bf16 %v1627
        %v1660 = vunpack.c.l.bf16 %v1628
        %v1661 = vunpack.c.l.bf16 %v1629
        %v1662 = vunpack.c.l.bf16 %v1630
        %v1663 = vunpack.c.l.bf16 %v1631
        %v1664 = vunpack.c.l.bf16 %v1632
        %v1665 = vunpack.c.l.bf16 %v1633
        %v1666 = vunpack.c.l.bf16 %v1634
        %v1667 = vunpack.c.l.bf16 %v1635
        %v1668 = vunpack.c.l.bf16 %v1636
        %v1669 = vunpack.c.l.bf16 %v1637
        %v1670 = vmul.f32 %v1448, %v1638
        %v1671 = vmul.f32 %v1453, %v1639
        %v1672 = vmul.f32 %v1458, %v1640
        %v1673 = vmul.f32 %v1463, %v1641
        %v1674 = vmul.f32 %v1468, %v1642
        %v1675 = vmul.f32 %v1473, %v1643
        %v1676 = vmul.f32 %v1478, %v1644
        %v1677 = vmul.f32 %v1483, %v1645
        %v1678 = vmul.f32 %v1488, %v1646
        %v1679 = vmul.f32 %v1493, %v1647
        %v1680 = vmul.f32 %v1498, %v1648
        %v1681 = vmul.f32 %v1503, %v1649
        %v1682 = vmul.f32 %v1508, %v1650
        %v1683 = vmul.f32 %v1513, %v1651
        %v1684 = vmul.f32 %v1518, %v1652
        %v1685 = vmul.f32 %v1523, %v1653
        %v1686 = vmul.f32 %v1528, %v1654
        %v1687 = vmul.f32 %v1533, %v1655
        %v1688 = vmul.f32 %v1538, %v1656
        %v1689 = vmul.f32 %v1543, %v1657
        %v1690 = vmul.f32 %v1548, %v1658
        %v1691 = vmul.f32 %v1553, %v1659
        %v1692 = vmul.f32 %v1558, %v1660
        %v1693 = vmul.f32 %v1563, %v1661
        %v1694 = vmul.f32 %v1568, %v1662
        %v1695 = vmul.f32 %v1573, %v1663
        %v1696 = vmul.f32 %v1578, %v1664
        %v1697 = vmul.f32 %v1583, %v1665
        %v1698 = vmul.f32 %v1588, %v1666
        %v1699 = vmul.f32 %v1593, %v1667
        %v1700 = vmul.f32 %v1598, %v1668
        %v1701 = vmul.f32 %v1603, %v1669
        %v1702 = vadd.f32 %v1221, %v1670
        %v1703 = vadd.f32 %v1222, %v1671
        %v1704 = vadd.f32 %v1223, %v1672
        %v1705 = vadd.f32 %v1224, %v1673
        %v1706 = vadd.f32 %v1225, %v1674
        %v1707 = vadd.f32 %v1226, %v1675
        %v1708 = vadd.f32 %v1227, %v1676
        %v1709 = vadd.f32 %v1228, %v1677
        %v1710 = vadd.f32 %v1229, %v1678
        %v1711 = vadd.f32 %v1230, %v1679
        %v1712 = vadd.f32 %v1231, %v1680
        %v1713 = vadd.f32 %v1232, %v1681
        %v1714 = vadd.f32 %v1233, %v1682
        %v1715 = vadd.f32 %v1234, %v1683
        %v1716 = vadd.f32 %v1235, %v1684
        %v1717 = vadd.f32 %v1236, %v1685
        %v1718 = vadd.f32 %v1237, %v1686
        %v1719 = vadd.f32 %v1238, %v1687
        %v1720 = vadd.f32 %v1239, %v1688
        %v1721 = vadd.f32 %v1240, %v1689
        %v1722 = vadd.f32 %v1241, %v1690
        %v1723 = vadd.f32 %v1242, %v1691
        %v1724 = vadd.f32 %v1243, %v1692
        %v1725 = vadd.f32 %v1244, %v1693
        %v1726 = vadd.f32 %v1245, %v1694
        %v1727 = vadd.f32 %v1246, %v1695
        %v1728 = vadd.f32 %v1247, %v1696
        %v1729 = vadd.f32 %v1248, %v1697
        %v1730 = vadd.f32 %v1249, %v1698
        %v1731 = vadd.f32 %v1250, %v1699
        %v1732 = vadd.f32 %v1251, %v1700
        %v1733 = vadd.f32 %v1252, %v1701
        %v1734 = vld [vmem:[%s683] sm:$0xff]
        %v1735 = vld [vmem:[%s683 + $0x8] sm:$0xff]
        %v1736 = vld [vmem:[%s683 + $0x10] sm:$0xff]
        %v1737 = vld [vmem:[%s683 + $0x18] sm:$0xff]
        %v1738 = vld [vmem:[%s683 + $0x20] sm:$0xff]
        %v1739 = vld [vmem:[%s683 + $0x28] sm:$0xff]
        %v1740 = vld [vmem:[%s683 + $0x30] sm:$0xff]
        %v1741 = vld [vmem:[%s683 + $0x38] sm:$0xff]
        %v1742 = vld [vmem:[%s683 + $0x40] sm:$0xff]
        %v1743 = vld [vmem:[%s683 + $0x48] sm:$0xff]
        %v1744 = vld [vmem:[%s683 + $0x50] sm:$0xff]
        %v1745 = vld [vmem:[%s683 + $0x58] sm:$0xff]
        %v1746 = vld [vmem:[%s683 + $0x60] sm:$0xff]
        %v1747 = vld [vmem:[%s683 + $0x68] sm:$0xff]
        %v1748 = vld [vmem:[%s683 + $0x70] sm:$0xff]
        %v1749 = vld [vmem:[%s683 + $0x78] sm:$0xff]
        %v1750 = vld [vmem:[%s683 + $0x80] sm:$0xff]
        %v1751 = vld [vmem:[%s683 + $0x88] sm:$0xff]
        %v1752 = vld [vmem:[%s683 + $0x90] sm:$0xff]
        %v1753 = vld [vmem:[%s683 + $0x98] sm:$0xff]
        %v1754 = vld [vmem:[%s683 + $0xa0] sm:$0xff]
        %v1755 = vld [vmem:[%s683 + $0xa8] sm:$0xff]
        %v1756 = vld [vmem:[%s683 + $0xb0] sm:$0xff]
        %v1757 = vld [vmem:[%s683 + $0xb8] sm:$0xff]
        %v1758 = vld [vmem:[%s683 + $0xc0] sm:$0xff]
        %v1759 = vld [vmem:[%s683 + $0xc8] sm:$0xff]
        %v1760 = vld [vmem:[%s683 + $0xd0] sm:$0xff]
        %v1761 = vld [vmem:[%s683 + $0xd8] sm:$0xff]
        %v1762 = vld [vmem:[%s683 + $0xe0] sm:$0xff]
        %v1763 = vld [vmem:[%s683 + $0xe8] sm:$0xff]
        %v1764 = vld [vmem:[%s683 + $0xf0] sm:$0xff]
        %v1765 = vld [vmem:[%s683 + $0xf8] sm:$0xff]
        %v1767 = vsel %vm835, %v1734, 0
        %v1770 = vsel %vm835, %v1735, 0
        %v1773 = vsel %vm835, %v1736, 0
        %v1776 = vsel %vm835, %v1737, 0
        %v1779 = vsel %vm835, %v1738, 0
        %v1782 = vsel %vm835, %v1739, 0
        %v1785 = vsel %vm835, %v1740, 0
        %v1788 = vsel %vm835, %v1741, 0
        %v1791 = vsel %vm835, %v1742, 0
        %v1794 = vsel %vm835, %v1743, 0
        %v1797 = vsel %vm835, %v1744, 0
        %v1800 = vsel %vm835, %v1745, 0
        %v1803 = vsel %vm835, %v1746, 0
        %v1806 = vsel %vm835, %v1747, 0
        %v1809 = vsel %vm835, %v1748, 0
        %v1812 = vsel %vm835, %v1749, 0
        %v1815 = vsel %vm835, %v1750, 0
        %v1818 = vsel %vm835, %v1751, 0
        %v1821 = vsel %vm835, %v1752, 0
        %v1824 = vsel %vm835, %v1753, 0
        %v1827 = vsel %vm835, %v1754, 0
        %v1830 = vsel %vm835, %v1755, 0
        %v1833 = vsel %vm835, %v1756, 0
        %v1836 = vsel %vm835, %v1757, 0
        %v1839 = vsel %vm835, %v1758, 0
        %v1842 = vsel %vm835, %v1759, 0
        %v1845 = vsel %vm835, %v1760, 0
        %v1848 = vsel %vm835, %v1761, 0
        %v1851 = vsel %vm835, %v1762, 0
        %v1854 = vsel %vm835, %v1763, 0
        %v1857 = vsel %vm835, %v1764, 0
        %v1860 = vsel %vm835, %v1765, 0
        %1862 = vmatprep.subr.mxu0 0.0
        %1863 = vmatpush1.msra.mxu0 %v802
        %1864 = vmatprep.subr.mxu0 0.0
        %1865 = vmatpush1.msra.mxu0 0.0
        %1866 = vmatprep.subr.mxu0 0.0
        %1867 = vmatpush1.msra.mxu0 0.0
        %1868 = vmatprep.subr.mxu0 0.0
        %1869 = vmatpush1.msra.mxu0 0.0
        %1870 = vmatprep.subr.mxu0 0.0
        %1871 = vmatpush1.msra.mxu0 0.0
        %1872 = vmatprep.subr.mxu0 0.0
        %1873 = vmatpush1.msra.mxu0 0.0
        %1874 = vmatprep.subr.mxu0 0.0
        %1875 = vmatpush1.msra.mxu0 0.0
        %1876 = vmatprep.subr.mxu0 0.0
        %1877 = vmatpush1.msra.mxu0 0.0
        %1878 = vmatprep.subr.mxu0 0.0
        %1879 = vmatpush1.msra.mxu0 0.0
        %1880 = vmatprep.subr.mxu0 0.0
        %1881 = vmatpush1.msra.mxu0 0.0
        %1882 = vmatprep.subr.mxu0 0.0
        %1883 = vmatpush1.msra.mxu0 0.0
        %1884 = vmatprep.subr.mxu0 0.0
        %1885 = vmatpush1.msra.mxu0 0.0
        %1886 = vmatprep.subr.mxu0 0.0
        %1887 = vmatpush1.msra.mxu0 0.0
        %1888 = vmatprep.subr.mxu0 0.0
        %1889 = vmatpush1.msra.mxu0 0.0
        %1890 = vmatprep.subr.mxu0 0.0
        %1891 = vmatpush1.msra.mxu0 0.0
        %1892 = vmatprep.subr.mxu0 0.0
        %1893 = vmatpush1.msra.mxu0 0.0
        %1894 = vmatprep.subr.mxu0 0.0
        %1895 = vmatpush1.msra.mxu0 0.0
        %1896 = vmatprep.subr.mxu0 0.0
        %1897 = vmatpush1.msra.mxu0 0.0
        %1898 = vmatprep.subr.mxu0 0.0
        %1899 = vmatpush1.msra.mxu0 0.0
        %1900 = vmatprep.subr.mxu0 0.0
        %1901 = vmatpush1.msra.mxu0 0.0
        %1902 = vmatprep.subr.mxu0 0.0
        %1903 = vmatpush1.msra.mxu0 0.0
        %1904 = vmatprep.subr.mxu0 0.0
        %1905 = vmatpush1.msra.mxu0 0.0
        %1906 = vmatprep.subr.mxu0 0.0
        %1907 = vmatpush1.msra.mxu0 0.0
        %1908 = vmatprep.subr.mxu0 0.0
        %1909 = vmatpush1.msra.mxu0 0.0
        %1910 = vmatprep.subr.mxu0 0.0
        %1911 = vmatpush1.msra.mxu0 0.0
        %1912 = vmatprep.subr.mxu0 0.0
        %1913 = vmatpush1.msra.mxu0 0.0
        %1914 = vmatprep.subr.mxu0 0.0
        %1915 = vmatpush1.msra.mxu0 0.0
        %1916 = vmatprep.subr.mxu0 0.0
        %1917 = vmatpush1.msra.mxu0 0.0
        %1918 = vmatprep.subr.mxu0 0.0
        %1919 = vmatpush1.msra.mxu0 0.0
        %1920 = vmatprep.subr.mxu0 0.0
        %1921 = vmatpush1.msra.mxu0 0.0
        %1922 = vmatprep.subr.mxu0 0.0
        %1923 = vmatpush1.msra.mxu0 0.0
        %1924 = vmatprep.subr.mxu0 0.0
        %1925 = vmatpush1.msra.mxu0 0.0
        %1926 = vmatprep.mubr.f32.mxu0 0.0
        %1927 = vmatmul.mubr.f32.gmra.mrb[0].mxu0 %v1767
        %v1928 = vpop.f32.mrb[0].mxu0
        %v1929 = vadd.f32 0.0, %v1928
        %v1930 = vpop.f32.mrb[0].mxu0
        %1931 = vmatprep.mubr.f32.mxu0 0.0
        %1932 = vmatmul.mubr.f32.gmra.mrb[0].mxu0 %v1770
        %v1933 = vpop.f32.mrb[0].mxu0
        %v1934 = vadd.f32 0.0, %v1933
        %v1935 = vpop.f32.mrb[0].mxu0
        %1936 = vmatprep.mubr.f32.mxu0 0.0
        %1937 = vmatmul.mubr.f32.gmra.mrb[0].mxu0 %v1773
        %v1938 = vpop.f32.mrb[0].mxu0
        %v1939 = vadd.f32 0.0, %v1938
        %v1940 = vpop.f32.mrb[0].mxu0
        %1941 = vmatprep.mubr.f32.mxu0 0.0
        %1942 = vmatmul.mubr.f32.gmra.mrb[0].mxu0 %v1776
        %v1943 = vpop.f32.mrb[0].mxu0
        %v1944 = vadd.f32 0.0, %v1943
        %v1945 = vpop.f32.mrb[0].mxu0
        %1946 = vmatprep.mubr.f32.mxu0 0.0
        %1947 = vmatmul.mubr.f32.gmra.mrb[0].mxu0 %v1779
        %v1948 = vpop.f32.mrb[0].mxu0
        %v1949 = vadd.f32 0.0, %v1948
        %v1950 = vpop.f32.mrb[0].mxu0
        %1951 = vmatprep.mubr.f32.mxu0 0.0
        %1952 = vmatmul.mubr.f32.gmra.mrb[0].mxu0 %v1782
        %v1953 = vpop.f32.mrb[0].mxu0
        %v1954 = vadd.f32 0.0, %v1953
        %v1955 = vpop.f32.mrb[0].mxu0
        %1956 = vmatprep.mubr.f32.mxu0 0.0
        %1957 = vmatmul.mubr.f32.gmra.mrb[0].mxu0 %v1785
        %v1958 = vpop.f32.mrb[0].mxu0
        %v1959 = vadd.f32 0.0, %v1958
        %v1960 = vpop.f32.mrb[0].mxu0
        %1961 = vmatprep.mubr.f32.mxu0 0.0
        %1962 = vmatmul.mubr.f32.gmra.mrb[0].mxu0 %v1788
        %v1963 = vpop.f32.mrb[0].mxu0
        %v1964 = vadd.f32 0.0, %v1963
        %v1965 = vpop.f32.mrb[0].mxu0
        %1966 = vmatprep.mubr.f32.mxu0 0.0
        %1967 = vmatmul.mubr.f32.gmra.mrb[0].mxu0 %v1791
        %v1968 = vpop.f32.mrb[0].mxu0
        %v1969 = vadd.f32 0.0, %v1968
        %v1970 = vpop.f32.mrb[0].mxu0
        %1971 = vmatprep.mubr.f32.mxu0 0.0
        %1972 = vmatmul.mubr.f32.gmra.mrb[0].mxu0 %v1794
        %v1973 = vpop.f32.mrb[0].mxu0
        %v1974 = vadd.f32 0.0, %v1973
        %v1975 = vpop.f32.mrb[0].mxu0
        %1976 = vmatprep.mubr.f32.mxu0 0.0
        %1977 = vmatmul.mubr.f32.gmra.mrb[0].mxu0 %v1797
        %v1978 = vpop.f32.mrb[0].mxu0
        %v1979 = vadd.f32 0.0, %v1978
        %v1980 = vpop.f32.mrb[0].mxu0
        %1981 = vmatprep.mubr.f32.mxu0 0.0
        %1982 = vmatmul.mubr.f32.gmra.mrb[0].mxu0 %v1800
        %v1983 = vpop.f32.mrb[0].mxu0
        %v1984 = vadd.f32 0.0, %v1983
        %v1985 = vpop.f32.mrb[0].mxu0
        %1986 = vmatprep.mubr.f32.mxu0 0.0
        %1987 = vmatmul.mubr.f32.gmra.mrb[0].mxu0 %v1803
        %v1988 = vpop.f32.mrb[0].mxu0
        %v1989 = vadd.f32 0.0, %v1988
        %v1990 = vpop.f32.mrb[0].mxu0
        %1991 = vmatprep.mubr.f32.mxu0 0.0
        %1992 = vmatmul.mubr.f32.gmra.mrb[0].mxu0 %v1806
        %v1993 = vpop.f32.mrb[0].mxu0
        %v1994 = vadd.f32 0.0, %v1993
        %v1995 = vpop.f32.mrb[0].mxu0
        %1996 = vmatprep.mubr.f32.mxu0 0.0
        %1997 = vmatmul.mubr.f32.gmra.mrb[0].mxu0 %v1809
        %v1998 = vpop.f32.mrb[0].mxu0
        %v1999 = vadd.f32 0.0, %v1998
        %v2000 = vpop.f32.mrb[0].mxu0
        %2001 = vmatprep.mubr.f32.mxu0 0.0
        %2002 = vmatmul.mubr.f32.gmra.mrb[0].mxu0 %v1812
        %v2003 = vpop.f32.mrb[0].mxu0
        %v2004 = vadd.f32 0.0, %v2003
        %v2005 = vpop.f32.mrb[0].mxu0
        %2006 = vmatprep.mubr.f32.mxu0 0.0
        %2007 = vmatmul.mubr.f32.gmra.mrb[0].mxu0 %v1815
        %v2008 = vpop.f32.mrb[0].mxu0
        %v2009 = vadd.f32 0.0, %v2008
        %v2010 = vpop.f32.mrb[0].mxu0
        %2011 = vmatprep.mubr.f32.mxu0 0.0
        %2012 = vmatmul.mubr.f32.gmra.mrb[0].mxu0 %v1818
        %v2013 = vpop.f32.mrb[0].mxu0
        %v2014 = vadd.f32 0.0, %v2013
        %v2015 = vpop.f32.mrb[0].mxu0
        %2016 = vmatprep.mubr.f32.mxu0 0.0
        %2017 = vmatmul.mubr.f32.gmra.mrb[0].mxu0 %v1821
        %v2018 = vpop.f32.mrb[0].mxu0
        %v2019 = vadd.f32 0.0, %v2018
        %v2020 = vpop.f32.mrb[0].mxu0
        %2021 = vmatprep.mubr.f32.mxu0 0.0
        %2022 = vmatmul.mubr.f32.gmra.mrb[0].mxu0 %v1824
        %v2023 = vpop.f32.mrb[0].mxu0
        %v2024 = vadd.f32 0.0, %v2023
        %v2025 = vpop.f32.mrb[0].mxu0
        %2026 = vmatprep.mubr.f32.mxu0 0.0
        %2027 = vmatmul.mubr.f32.gmra.mrb[0].mxu0 %v1827
        %v2028 = vpop.f32.mrb[0].mxu0
        %v2029 = vadd.f32 0.0, %v2028
        %v2030 = vpop.f32.mrb[0].mxu0
        %2031 = vmatprep.mubr.f32.mxu0 0.0
        %2032 = vmatmul.mubr.f32.gmra.mrb[0].mxu0 %v1830
        %v2033 = vpop.f32.mrb[0].mxu0
        %v2034 = vadd.f32 0.0, %v2033
        %v2035 = vpop.f32.mrb[0].mxu0
        %2036 = vmatprep.mubr.f32.mxu0 0.0
        %2037 = vmatmul.mubr.f32.gmra.mrb[0].mxu0 %v1833
        %v2038 = vpop.f32.mrb[0].mxu0
        %v2039 = vadd.f32 0.0, %v2038
        %v2040 = vpop.f32.mrb[0].mxu0
        %2041 = vmatprep.mubr.f32.mxu0 0.0
        %2042 = vmatmul.mubr.f32.gmra.mrb[0].mxu0 %v1836
        %v2043 = vpop.f32.mrb[0].mxu0
        %v2044 = vadd.f32 0.0, %v2043
        %v2045 = vpop.f32.mrb[0].mxu0
        %2046 = vmatprep.mubr.f32.mxu0 0.0
        %2047 = vmatmul.mubr.f32.gmra.mrb[0].mxu0 %v1839
        %v2048 = vpop.f32.mrb[0].mxu0
        %v2049 = vadd.f32 0.0, %v2048
        %v2050 = vpop.f32.mrb[0].mxu0
        %2051 = vmatprep.mubr.f32.mxu0 0.0
        %2052 = vmatmul.mubr.f32.gmra.mrb[0].mxu0 %v1842
        %v2053 = vpop.f32.mrb[0].mxu0
        %v2054 = vadd.f32 0.0, %v2053
        %v2055 = vpop.f32.mrb[0].mxu0
        %2056 = vmatprep.mubr.f32.mxu0 0.0
        %2057 = vmatmul.mubr.f32.gmra.mrb[0].mxu0 %v1845
        %v2058 = vpop.f32.mrb[0].mxu0
        %v2059 = vadd.f32 0.0, %v2058
        %v2060 = vpop.f32.mrb[0].mxu0
        %2061 = vmatprep.mubr.f32.mxu0 0.0
        %2062 = vmatmul.mubr.f32.gmra.mrb[0].mxu0 %v1848
        %v2063 = vpop.f32.mrb[0].mxu0
        %v2064 = vadd.f32 0.0, %v2063
        %v2065 = vpop.f32.mrb[0].mxu0
        %2066 = vmatprep.mubr.f32.mxu0 0.0
        %2067 = vmatmul.mubr.f32.gmra.mrb[0].mxu0 %v1851
        %v2068 = vpop.f32.mrb[0].mxu0
        %v2069 = vadd.f32 0.0, %v2068
        %v2070 = vpop.f32.mrb[0].mxu0
        %2071 = vmatprep.mubr.f32.mxu0 0.0
        %2072 = vmatmul.mubr.f32.gmra.mrb[0].mxu0 %v1854
        %v2073 = vpop.f32.mrb[0].mxu0
        %v2074 = vadd.f32 0.0, %v2073
        %v2075 = vpop.f32.mrb[0].mxu0
        %2076 = vmatprep.mubr.f32.mxu0 0.0
        %2077 = vmatmul.mubr.f32.gmra.mrb[0].mxu0 %v1857
        %v2078 = vpop.f32.mrb[0].mxu0
        %v2079 = vadd.f32 0.0, %v2078
        %v2080 = vpop.f32.mrb[0].mxu0
        %2081 = vmatprep.mubr.f32.mxu0 0.0
        %2082 = vmatmul.mubr.f32.gmra.mrb[0].mxu0 %v1860
        %v2083 = vpop.f32.mrb[0].mxu0
        %v2084 = vadd.f32 0.0, %v2083
        %v2085 = vpop.f32.mrb[0].mxu0
        %2086 = vdwg.mxu0
        %v2087 = vld [vmem:[%s647] sm:$0xf]
        %v2088 = vld [vmem:[%s647 + $0x4] sm:$0xf]
        %v2089 = vld [vmem:[%s647 + $0x8] sm:$0xf]
        %v2090 = vld [vmem:[%s647 + $0xc] sm:$0xf]
        %v2091 = vld [vmem:[%s647 + $0x10] sm:$0xf]
        %v2092 = vld [vmem:[%s647 + $0x14] sm:$0xf]
        %v2093 = vld [vmem:[%s647 + $0x18] sm:$0xf]
        %v2094 = vld [vmem:[%s647 + $0x1c] sm:$0xf]
        %v2095 = vld [vmem:[%s647 + $0x20] sm:$0xf]
        %v2096 = vld [vmem:[%s647 + $0x24] sm:$0xf]
        %v2097 = vld [vmem:[%s647 + $0x28] sm:$0xf]
        %v2098 = vld [vmem:[%s647 + $0x2c] sm:$0xf]
        %v2099 = vld [vmem:[%s647 + $0x30] sm:$0xf]
        %v2100 = vld [vmem:[%s647 + $0x34] sm:$0xf]
        %v2101 = vld [vmem:[%s647 + $0x38] sm:$0xf]
        %v2102 = vld [vmem:[%s647 + $0x3c] sm:$0xf]
        %v2103 = vld [vmem:[%s647 + $0x40] sm:$0xf]
        %v2104 = vld [vmem:[%s647 + $0x44] sm:$0xf]
        %v2105 = vld [vmem:[%s647 + $0x48] sm:$0xf]
        %v2106 = vld [vmem:[%s647 + $0x4c] sm:$0xf]
        %v2107 = vld [vmem:[%s647 + $0x50] sm:$0xf]
        %v2108 = vld [vmem:[%s647 + $0x54] sm:$0xf]
        %v2109 = vld [vmem:[%s647 + $0x58] sm:$0xf]
        %v2110 = vld [vmem:[%s647 + $0x5c] sm:$0xf]
        %v2111 = vld [vmem:[%s647 + $0x60] sm:$0xf]
        %v2112 = vld [vmem:[%s647 + $0x64] sm:$0xf]
        %v2113 = vld [vmem:[%s647 + $0x68] sm:$0xf]
        %v2114 = vld [vmem:[%s647 + $0x6c] sm:$0xf]
        %v2115 = vld [vmem:[%s647 + $0x70] sm:$0xf]
        %v2116 = vld [vmem:[%s647 + $0x74] sm:$0xf]
        %v2117 = vld [vmem:[%s647 + $0x78] sm:$0xf]
        %v2118 = vld [vmem:[%s647 + $0x7c] sm:$0xf]
        %v2119 = vunpack.c.l.bf16 %v2087
        %v2120 = vunpack.c.l.bf16 %v2088
        %v2121 = vunpack.c.l.bf16 %v2089
        %v2122 = vunpack.c.l.bf16 %v2090
        %v2123 = vunpack.c.l.bf16 %v2091
        %v2124 = vunpack.c.l.bf16 %v2092
        %v2125 = vunpack.c.l.bf16 %v2093
        %v2126 = vunpack.c.l.bf16 %v2094
        %v2127 = vunpack.c.l.bf16 %v2095
        %v2128 = vunpack.c.l.bf16 %v2096
        %v2129 = vunpack.c.l.bf16 %v2097
        %v2130 = vunpack.c.l.bf16 %v2098
        %v2131 = vunpack.c.l.bf16 %v2099
        %v2132 = vunpack.c.l.bf16 %v2100
        %v2133 = vunpack.c.l.bf16 %v2101
        %v2134 = vunpack.c.l.bf16 %v2102
        %v2135 = vunpack.c.l.bf16 %v2103
        %v2136 = vunpack.c.l.bf16 %v2104
        %v2137 = vunpack.c.l.bf16 %v2105
        %v2138 = vunpack.c.l.bf16 %v2106
        %v2139 = vunpack.c.l.bf16 %v2107
        %v2140 = vunpack.c.l.bf16 %v2108
        %v2141 = vunpack.c.l.bf16 %v2109
        %v2142 = vunpack.c.l.bf16 %v2110
        %v2143 = vunpack.c.l.bf16 %v2111
        %v2144 = vunpack.c.l.bf16 %v2112
        %v2145 = vunpack.c.l.bf16 %v2113
        %v2146 = vunpack.c.l.bf16 %v2114
        %v2147 = vunpack.c.l.bf16 %v2115
        %v2148 = vunpack.c.l.bf16 %v2116
        %v2149 = vunpack.c.l.bf16 %v2117
        %v2150 = vunpack.c.l.bf16 %v2118
        %v2151 = vmul.f32 %v1929, %v2119
        %v2152 = vmul.f32 %v1934, %v2120
        %v2153 = vmul.f32 %v1939, %v2121
        %v2154 = vmul.f32 %v1944, %v2122
        %v2155 = vmul.f32 %v1949, %v2123
        %v2156 = vmul.f32 %v1954, %v2124
        %v2157 = vmul.f32 %v1959, %v2125
        %v2158 = vmul.f32 %v1964, %v2126
        %v2159 = vmul.f32 %v1969, %v2127
        %v2160 = vmul.f32 %v1974, %v2128
        %v2161 = vmul.f32 %v1979, %v2129
        %v2162 = vmul.f32 %v1984, %v2130
        %v2163 = vmul.f32 %v1989, %v2131
        %v2164 = vmul.f32 %v1994, %v2132
        %v2165 = vmul.f32 %v1999, %v2133
        %v2166 = vmul.f32 %v2004, %v2134
        %v2167 = vmul.f32 %v2009, %v2135
        %v2168 = vmul.f32 %v2014, %v2136
        %v2169 = vmul.f32 %v2019, %v2137
        %v2170 = vmul.f32 %v2024, %v2138
        %v2171 = vmul.f32 %v2029, %v2139
        %v2172 = vmul.f32 %v2034, %v2140
        %v2173 = vmul.f32 %v2039, %v2141
        %v2174 = vmul.f32 %v2044, %v2142
        %v2175 = vmul.f32 %v2049, %v2143
        %v2176 = vmul.f32 %v2054, %v2144
        %v2177 = vmul.f32 %v2059, %v2145
        %v2178 = vmul.f32 %v2064, %v2146
        %v2179 = vmul.f32 %v2069, %v2147
        %v2180 = vmul.f32 %v2074, %v2148
        %v2181 = vmul.f32 %v2079, %v2149
        %v2182 = vmul.f32 %v2084, %v2150
        %v2183 = vadd.f32 %v1702, %v2151
        %v2184 = vadd.f32 %v1703, %v2152
        %v2185 = vadd.f32 %v1704, %v2153
        %v2186 = vadd.f32 %v1705, %v2154
        %v2187 = vadd.f32 %v1706, %v2155
        %v2188 = vadd.f32 %v1707, %v2156
        %v2189 = vadd.f32 %v1708, %v2157
        %v2190 = vadd.f32 %v1709, %v2158
        %v2191 = vadd.f32 %v1710, %v2159
        %v2192 = vadd.f32 %v1711, %v2160
        %v2193 = vadd.f32 %v1712, %v2161
        %v2194 = vadd.f32 %v1713, %v2162
        %v2195 = vadd.f32 %v1714, %v2163
        %v2196 = vadd.f32 %v1715, %v2164
        %v2197 = vadd.f32 %v1716, %v2165
        %v2198 = vadd.f32 %v1717, %v2166
        %v2199 = vadd.f32 %v1718, %v2167
        %v2200 = vadd.f32 %v1719, %v2168
        %v2201 = vadd.f32 %v1720, %v2169
        %v2202 = vadd.f32 %v1721, %v2170
        %v2203 = vadd.f32 %v1722, %v2171
        %v2204 = vadd.f32 %v1723, %v2172
        %v2205 = vadd.f32 %v1724, %v2173
        %v2206 = vadd.f32 %v1725, %v2174
        %v2207 = vadd.f32 %v1726, %v2175
        %v2208 = vadd.f32 %v1727, %v2176
        %v2209 = vadd.f32 %v1728, %v2177
        %v2210 = vadd.f32 %v1729, %v2178
        %v2211 = vadd.f32 %v1730, %v2179
        %v2212 = vadd.f32 %v1731, %v2180
        %v2213 = vadd.f32 %v1732, %v2181
        %v2214 = vadd.f32 %v1733, %v2182
        %v2215 = vld [vmem:[%s692] sm:$0xff]
        %v2216 = vld [vmem:[%s692 + $0x8] sm:$0xff]
        %v2217 = vld [vmem:[%s692 + $0x10] sm:$0xff]
        %v2218 = vld [vmem:[%s692 + $0x18] sm:$0xff]
        %v2219 = vld [vmem:[%s692 + $0x20] sm:$0xff]
        %v2220 = vld [vmem:[%s692 + $0x28] sm:$0xff]
        %v2221 = vld [vmem:[%s692 + $0x30] sm:$0xff]
        %v2222 = vld [vmem:[%s692 + $0x38] sm:$0xff]
        %v2223 = vld [vmem:[%s692 + $0x40] sm:$0xff]
        %v2224 = vld [vmem:[%s692 + $0x48] sm:$0xff]
        %v2225 = vld [vmem:[%s692 + $0x50] sm:$0xff]
        %v2226 = vld [vmem:[%s692 + $0x58] sm:$0xff]
        %v2227 = vld [vmem:[%s692 + $0x60] sm:$0xff]
        %v2228 = vld [vmem:[%s692 + $0x68] sm:$0xff]
        %v2229 = vld [vmem:[%s692 + $0x70] sm:$0xff]
        %v2230 = vld [vmem:[%s692 + $0x78] sm:$0xff]
        %v2231 = vld [vmem:[%s692 + $0x80] sm:$0xff]
        %v2232 = vld [vmem:[%s692 + $0x88] sm:$0xff]
        %v2233 = vld [vmem:[%s692 + $0x90] sm:$0xff]
        %v2234 = vld [vmem:[%s692 + $0x98] sm:$0xff]
        %v2235 = vld [vmem:[%s692 + $0xa0] sm:$0xff]
        %v2236 = vld [vmem:[%s692 + $0xa8] sm:$0xff]
        %v2237 = vld [vmem:[%s692 + $0xb0] sm:$0xff]
        %v2238 = vld [vmem:[%s692 + $0xb8] sm:$0xff]
        %v2239 = vld [vmem:[%s692 + $0xc0] sm:$0xff]
        %v2240 = vld [vmem:[%s692 + $0xc8] sm:$0xff]
        %v2241 = vld [vmem:[%s692 + $0xd0] sm:$0xff]
        %v2242 = vld [vmem:[%s692 + $0xd8] sm:$0xff]
        %v2243 = vld [vmem:[%s692 + $0xe0] sm:$0xff]
        %v2244 = vld [vmem:[%s692 + $0xe8] sm:$0xff]
        %v2245 = vld [vmem:[%s692 + $0xf0] sm:$0xff]
        %v2246 = vld [vmem:[%s692 + $0xf8] sm:$0xff]
        %v2248 = vsel %vm835, %v2215, 0
        %v2251 = vsel %vm835, %v2216, 0
        %v2254 = vsel %vm835, %v2217, 0
        %v2257 = vsel %vm835, %v2218, 0
        %v2260 = vsel %vm835, %v2219, 0
        %v2263 = vsel %vm835, %v2220, 0
        %v2266 = vsel %vm835, %v2221, 0
        %v2269 = vsel %vm835, %v2222, 0
        %v2272 = vsel %vm835, %v2223, 0
        %v2275 = vsel %vm835, %v2224, 0
        %v2278 = vsel %vm835, %v2225, 0
        %v2281 = vsel %vm835, %v2226, 0
        %v2284 = vsel %vm835, %v2227, 0
        %v2287 = vsel %vm835, %v2228, 0
        %v2290 = vsel %vm835, %v2229, 0
        %v2293 = vsel %vm835, %v2230, 0
        %v2296 = vsel %vm835, %v2231, 0
        %v2299 = vsel %vm835, %v2232, 0
        %v2302 = vsel %vm835, %v2233, 0
        %v2305 = vsel %vm835, %v2234, 0
        %v2308 = vsel %vm835, %v2235, 0
        %v2311 = vsel %vm835, %v2236, 0
        %v2314 = vsel %vm835, %v2237, 0
        %v2317 = vsel %vm835, %v2238, 0
        %v2320 = vsel %vm835, %v2239, 0
        %v2323 = vsel %vm835, %v2240, 0
        %v2326 = vsel %vm835, %v2241, 0
        %v2329 = vsel %vm835, %v2242, 0
        %v2332 = vsel %vm835, %v2243, 0
        %v2335 = vsel %vm835, %v2244, 0
        %v2338 = vsel %vm835, %v2245, 0
        %v2341 = vsel %vm835, %v2246, 0
        %2343 = vmatprep.subr.mxu0 0.0
        %2344 = vmatpush1.msra.mxu0 %v802
        %2345 = vmatprep.subr.mxu0 0.0
        %2346 = vmatpush1.msra.mxu0 0.0
        %2347 = vmatprep.subr.mxu0 0.0
        %2348 = vmatpush1.msra.mxu0 0.0
        %2349 = vmatprep.subr.mxu0 0.0
        %2350 = vmatpush1.msra.mxu0 0.0
        %2351 = vmatprep.subr.mxu0 0.0
        %2352 = vmatpush1.msra.mxu0 0.0
        %2353 = vmatprep.subr.mxu0 0.0
        %2354 = vmatpush1.msra.mxu0 0.0
        %2355 = vmatprep.subr.mxu0 0.0
        %2356 = vmatpush1.msra.mxu0 0.0
        %2357 = vmatprep.subr.mxu0 0.0
        %2358 = vmatpush1.msra.mxu0 0.0
        %2359 = vmatprep.subr.mxu0 0.0
        %2360 = vmatpush1.msra.mxu0 0.0
        %2361 = vmatprep.subr.mxu0 0.0
        %2362 = vmatpush1.msra.mxu0 0.0
        %2363 = vmatprep.subr.mxu0 0.0
        %2364 = vmatpush1.msra.mxu0 0.0
        %2365 = vmatprep.subr.mxu0 0.0
        %2366 = vmatpush1.msra.mxu0 0.0
        %2367 = vmatprep.subr.mxu0 0.0
        %2368 = vmatpush1.msra.mxu0 0.0
        %2369 = vmatprep.subr.mxu0 0.0
        %2370 = vmatpush1.msra.mxu0 0.0
        %2371 = vmatprep.subr.mxu0 0.0
        %2372 = vmatpush1.msra.mxu0 0.0
        %2373 = vmatprep.subr.mxu0 0.0
        %2374 = vmatpush1.msra.mxu0 0.0
        %2375 = vmatprep.subr.mxu0 0.0
        %2376 = vmatpush1.msra.mxu0 0.0
        %2377 = vmatprep.subr.mxu0 0.0
        %2378 = vmatpush1.msra.mxu0 0.0
        %2379 = vmatprep.subr.mxu0 0.0
        %2380 = vmatpush1.msra.mxu0 0.0
        %2381 = vmatprep.subr.mxu0 0.0
        %2382 = vmatpush1.msra.mxu0 0.0
        %2383 = vmatprep.subr.mxu0 0.0
        %2384 = vmatpush1.msra.mxu0 0.0
        %2385 = vmatprep.subr.mxu0 0.0
        %2386 = vmatpush1.msra.mxu0 0.0
        %2387 = vmatprep.subr.mxu0 0.0
        %2388 = vmatpush1.msra.mxu0 0.0
        %2389 = vmatprep.subr.mxu0 0.0
        %2390 = vmatpush1.msra.mxu0 0.0
        %2391 = vmatprep.subr.mxu0 0.0
        %2392 = vmatpush1.msra.mxu0 0.0
        %2393 = vmatprep.subr.mxu0 0.0
        %2394 = vmatpush1.msra.mxu0 0.0
        %2395 = vmatprep.subr.mxu0 0.0
        %2396 = vmatpush1.msra.mxu0 0.0
        %2397 = vmatprep.subr.mxu0 0.0
        %2398 = vmatpush1.msra.mxu0 0.0
        %2399 = vmatprep.subr.mxu0 0.0
        %2400 = vmatpush1.msra.mxu0 0.0
        %2401 = vmatprep.subr.mxu0 0.0
        %2402 = vmatpush1.msra.mxu0 0.0
        %2403 = vmatprep.subr.mxu0 0.0
        %2404 = vmatpush1.msra.mxu0 0.0
        %2405 = vmatprep.subr.mxu0 0.0
        %2406 = vmatpush1.msra.mxu0 0.0
        %2407 = vmatprep.mubr.f32.mxu0 0.0
        %2408 = vmatmul.mubr.f32.gmra.mrb[0].mxu0 %v2248
        %v2409 = vpop.f32.mrb[0].mxu0
        %v2410 = vadd.f32 0.0, %v2409
        %v2411 = vpop.f32.mrb[0].mxu0
        %2412 = vmatprep.mubr.f32.mxu0 0.0
        %2413 = vmatmul.mubr.f32.gmra.mrb[0].mxu0 %v2251
        %v2414 = vpop.f32.mrb[0].mxu0
        %v2415 = vadd.f32 0.0, %v2414
        %v2416 = vpop.f32.mrb[0].mxu0
        %2417 = vmatprep.mubr.f32.mxu0 0.0
        %2418 = vmatmul.mubr.f32.gmra.mrb[0].mxu0 %v2254
        %v2419 = vpop.f32.mrb[0].mxu0
        %v2420 = vadd.f32 0.0, %v2419
        %v2421 = vpop.f32.mrb[0].mxu0
        %2422 = vmatprep.mubr.f32.mxu0 0.0
        %2423 = vmatmul.mubr.f32.gmra.mrb[0].mxu0 %v2257
        %v2424 = vpop.f32.mrb[0].mxu0
        %v2425 = vadd.f32 0.0, %v2424
        %v2426 = vpop.f32.mrb[0].mxu0
        %2427 = vmatprep.mubr.f32.mxu0 0.0
        %2428 = vmatmul.mubr.f32.gmra.mrb[0].mxu0 %v2260
        %v2429 = vpop.f32.mrb[0].mxu0
        %v2430 = vadd.f32 0.0, %v2429
        %v2431 = vpop.f32.mrb[0].mxu0
        %2432 = vmatprep.mubr.f32.mxu0 0.0
        %2433 = vmatmul.mubr.f32.gmra.mrb[0].mxu0 %v2263
        %v2434 = vpop.f32.mrb[0].mxu0
        %v2435 = vadd.f32 0.0, %v2434
        %v2436 = vpop.f32.mrb[0].mxu0
        %2437 = vmatprep.mubr.f32.mxu0 0.0
        %2438 = vmatmul.mubr.f32.gmra.mrb[0].mxu0 %v2266
        %v2439 = vpop.f32.mrb[0].mxu0
        %v2440 = vadd.f32 0.0, %v2439
        %v2441 = vpop.f32.mrb[0].mxu0
        %2442 = vmatprep.mubr.f32.mxu0 0.0
        %2443 = vmatmul.mubr.f32.gmra.mrb[0].mxu0 %v2269
        %v2444 = vpop.f32.mrb[0].mxu0
        %v2445 = vadd.f32 0.0, %v2444
        %v2446 = vpop.f32.mrb[0].mxu0
        %2447 = vmatprep.mubr.f32.mxu0 0.0
        %2448 = vmatmul.mubr.f32.gmra.mrb[0].mxu0 %v2272
        %v2449 = vpop.f32.mrb[0].mxu0
        %v2450 = vadd.f32 0.0, %v2449
        %v2451 = vpop.f32.mrb[0].mxu0
        %2452 = vmatprep.mubr.f32.mxu0 0.0
        %2453 = vmatmul.mubr.f32.gmra.mrb[0].mxu0 %v2275
        %v2454 = vpop.f32.mrb[0].mxu0
        %v2455 = vadd.f32 0.0, %v2454
        %v2456 = vpop.f32.mrb[0].mxu0
        %2457 = vmatprep.mubr.f32.mxu0 0.0
        %2458 = vmatmul.mubr.f32.gmra.mrb[0].mxu0 %v2278
        %v2459 = vpop.f32.mrb[0].mxu0
        %v2460 = vadd.f32 0.0, %v2459
        %v2461 = vpop.f32.mrb[0].mxu0
        %2462 = vmatprep.mubr.f32.mxu0 0.0
        %2463 = vmatmul.mubr.f32.gmra.mrb[0].mxu0 %v2281
        %v2464 = vpop.f32.mrb[0].mxu0
        %v2465 = vadd.f32 0.0, %v2464
        %v2466 = vpop.f32.mrb[0].mxu0
        %2467 = vmatprep.mubr.f32.mxu0 0.0
        %2468 = vmatmul.mubr.f32.gmra.mrb[0].mxu0 %v2284
        %v2469 = vpop.f32.mrb[0].mxu0
        %v2470 = vadd.f32 0.0, %v2469
        %v2471 = vpop.f32.mrb[0].mxu0
        %2472 = vmatprep.mubr.f32.mxu0 0.0
        %2473 = vmatmul.mubr.f32.gmra.mrb[0].mxu0 %v2287
        %v2474 = vpop.f32.mrb[0].mxu0
        %v2475 = vadd.f32 0.0, %v2474
        %v2476 = vpop.f32.mrb[0].mxu0
        %2477 = vmatprep.mubr.f32.mxu0 0.0
        %2478 = vmatmul.mubr.f32.gmra.mrb[0].mxu0 %v2290
        %v2479 = vpop.f32.mrb[0].mxu0
        %v2480 = vadd.f32 0.0, %v2479
        %v2481 = vpop.f32.mrb[0].mxu0
        %2482 = vmatprep.mubr.f32.mxu0 0.0
        %2483 = vmatmul.mubr.f32.gmra.mrb[0].mxu0 %v2293
        %v2484 = vpop.f32.mrb[0].mxu0
        %v2485 = vadd.f32 0.0, %v2484
        %v2486 = vpop.f32.mrb[0].mxu0
        %2487 = vmatprep.mubr.f32.mxu0 0.0
        %2488 = vmatmul.mubr.f32.gmra.mrb[0].mxu0 %v2296
        %v2489 = vpop.f32.mrb[0].mxu0
        %v2490 = vadd.f32 0.0, %v2489
        %v2491 = vpop.f32.mrb[0].mxu0
        %2492 = vmatprep.mubr.f32.mxu0 0.0
        %2493 = vmatmul.mubr.f32.gmra.mrb[0].mxu0 %v2299
        %v2494 = vpop.f32.mrb[0].mxu0
        %v2495 = vadd.f32 0.0, %v2494
        %v2496 = vpop.f32.mrb[0].mxu0
        %2497 = vmatprep.mubr.f32.mxu0 0.0
        %2498 = vmatmul.mubr.f32.gmra.mrb[0].mxu0 %v2302
        %v2499 = vpop.f32.mrb[0].mxu0
        %v2500 = vadd.f32 0.0, %v2499
        %v2501 = vpop.f32.mrb[0].mxu0
        %2502 = vmatprep.mubr.f32.mxu0 0.0
        %2503 = vmatmul.mubr.f32.gmra.mrb[0].mxu0 %v2305
        %v2504 = vpop.f32.mrb[0].mxu0
        %v2505 = vadd.f32 0.0, %v2504
        %v2506 = vpop.f32.mrb[0].mxu0
        %2507 = vmatprep.mubr.f32.mxu0 0.0
        %2508 = vmatmul.mubr.f32.gmra.mrb[0].mxu0 %v2308
        %v2509 = vpop.f32.mrb[0].mxu0
        %v2510 = vadd.f32 0.0, %v2509
        %v2511 = vpop.f32.mrb[0].mxu0
        %2512 = vmatprep.mubr.f32.mxu0 0.0
        %2513 = vmatmul.mubr.f32.gmra.mrb[0].mxu0 %v2311
        %v2514 = vpop.f32.mrb[0].mxu0
        %v2515 = vadd.f32 0.0, %v2514
        %v2516 = vpop.f32.mrb[0].mxu0
        %2517 = vmatprep.mubr.f32.mxu0 0.0
        %2518 = vmatmul.mubr.f32.gmra.mrb[0].mxu0 %v2314
        %v2519 = vpop.f32.mrb[0].mxu0
        %v2520 = vadd.f32 0.0, %v2519
        %v2521 = vpop.f32.mrb[0].mxu0
        %2522 = vmatprep.mubr.f32.mxu0 0.0
        %2523 = vmatmul.mubr.f32.gmra.mrb[0].mxu0 %v2317
        %v2524 = vpop.f32.mrb[0].mxu0
        %v2525 = vadd.f32 0.0, %v2524
        %v2526 = vpop.f32.mrb[0].mxu0
        %2527 = vmatprep.mubr.f32.mxu0 0.0
        %2528 = vmatmul.mubr.f32.gmra.mrb[0].mxu0 %v2320
        %v2529 = vpop.f32.mrb[0].mxu0
        %v2530 = vadd.f32 0.0, %v2529
        %v2531 = vpop.f32.mrb[0].mxu0
        %2532 = vmatprep.mubr.f32.mxu0 0.0
        %2533 = vmatmul.mubr.f32.gmra.mrb[0].mxu0 %v2323
        %v2534 = vpop.f32.mrb[0].mxu0
        %v2535 = vadd.f32 0.0, %v2534
        %v2536 = vpop.f32.mrb[0].mxu0
        %2537 = vmatprep.mubr.f32.mxu0 0.0
        %2538 = vmatmul.mubr.f32.gmra.mrb[0].mxu0 %v2326
        %v2539 = vpop.f32.mrb[0].mxu0
        %v2540 = vadd.f32 0.0, %v2539
        %v2541 = vpop.f32.mrb[0].mxu0
        %2542 = vmatprep.mubr.f32.mxu0 0.0
        %2543 = vmatmul.mubr.f32.gmra.mrb[0].mxu0 %v2329
        %v2544 = vpop.f32.mrb[0].mxu0
        %v2545 = vadd.f32 0.0, %v2544
        %v2546 = vpop.f32.mrb[0].mxu0
        %2547 = vmatprep.mubr.f32.mxu0 0.0
        %2548 = vmatmul.mubr.f32.gmra.mrb[0].mxu0 %v2332
        %v2549 = vpop.f32.mrb[0].mxu0
        %v2550 = vadd.f32 0.0, %v2549
        %v2551 = vpop.f32.mrb[0].mxu0
        %2552 = vmatprep.mubr.f32.mxu0 0.0
        %2553 = vmatmul.mubr.f32.gmra.mrb[0].mxu0 %v2335
        %v2554 = vpop.f32.mrb[0].mxu0
        %v2555 = vadd.f32 0.0, %v2554
        %v2556 = vpop.f32.mrb[0].mxu0
        %2557 = vmatprep.mubr.f32.mxu0 0.0
        %2558 = vmatmul.mubr.f32.gmra.mrb[0].mxu0 %v2338
        %v2559 = vpop.f32.mrb[0].mxu0
        %v2560 = vadd.f32 0.0, %v2559
        %v2561 = vpop.f32.mrb[0].mxu0
        %2562 = vmatprep.mubr.f32.mxu0 0.0
        %2563 = vmatmul.mubr.f32.gmra.mrb[0].mxu0 %v2341
        %v2564 = vpop.f32.mrb[0].mxu0
        %v2565 = vadd.f32 0.0, %v2564
        %v2566 = vpop.f32.mrb[0].mxu0
        %2567 = vdwg.mxu0
        %v2568 = vld [vmem:[%s656] sm:$0xf]
        %v2569 = vld [vmem:[%s656 + $0x4] sm:$0xf]
        %v2570 = vld [vmem:[%s656 + $0x8] sm:$0xf]
        %v2571 = vld [vmem:[%s656 + $0xc] sm:$0xf]
        %v2572 = vld [vmem:[%s656 + $0x10] sm:$0xf]
        %v2573 = vld [vmem:[%s656 + $0x14] sm:$0xf]
        %v2574 = vld [vmem:[%s656 + $0x18] sm:$0xf]
        %v2575 = vld [vmem:[%s656 + $0x1c] sm:$0xf]
        %v2576 = vld [vmem:[%s656 + $0x20] sm:$0xf]
        %v2577 = vld [vmem:[%s656 + $0x24] sm:$0xf]
        %v2578 = vld [vmem:[%s656 + $0x28] sm:$0xf]
        %v2579 = vld [vmem:[%s656 + $0x2c] sm:$0xf]
        %v2580 = vld [vmem:[%s656 + $0x30] sm:$0xf]
        %v2581 = vld [vmem:[%s656 + $0x34] sm:$0xf]
        %v2582 = vld [vmem:[%s656 + $0x38] sm:$0xf]
        %v2583 = vld [vmem:[%s656 + $0x3c] sm:$0xf]
        %v2584 = vld [vmem:[%s656 + $0x40] sm:$0xf]
        %v2585 = vld [vmem:[%s656 + $0x44] sm:$0xf]
        %v2586 = vld [vmem:[%s656 + $0x48] sm:$0xf]
        %v2587 = vld [vmem:[%s656 + $0x4c] sm:$0xf]
        %v2588 = vld [vmem:[%s656 + $0x50] sm:$0xf]
        %v2589 = vld [vmem:[%s656 + $0x54] sm:$0xf]
        %v2590 = vld [vmem:[%s656 + $0x58] sm:$0xf]
        %v2591 = vld [vmem:[%s656 + $0x5c] sm:$0xf]
        %v2592 = vld [vmem:[%s656 + $0x60] sm:$0xf]
        %v2593 = vld [vmem:[%s656 + $0x64] sm:$0xf]
        %v2594 = vld [vmem:[%s656 + $0x68] sm:$0xf]
        %v2595 = vld [vmem:[%s656 + $0x6c] sm:$0xf]
        %v2596 = vld [vmem:[%s656 + $0x70] sm:$0xf]
        %v2597 = vld [vmem:[%s656 + $0x74] sm:$0xf]
        %v2598 = vld [vmem:[%s656 + $0x78] sm:$0xf]
        %v2599 = vld [vmem:[%s656 + $0x7c] sm:$0xf]
        %v2600 = vunpack.c.l.bf16 %v2568
        %v2601 = vunpack.c.l.bf16 %v2569
        %v2602 = vunpack.c.l.bf16 %v2570
        %v2603 = vunpack.c.l.bf16 %v2571
        %v2604 = vunpack.c.l.bf16 %v2572
        %v2605 = vunpack.c.l.bf16 %v2573
        %v2606 = vunpack.c.l.bf16 %v2574
        %v2607 = vunpack.c.l.bf16 %v2575
        %v2608 = vunpack.c.l.bf16 %v2576
        %v2609 = vunpack.c.l.bf16 %v2577
        %v2610 = vunpack.c.l.bf16 %v2578
        %v2611 = vunpack.c.l.bf16 %v2579
        %v2612 = vunpack.c.l.bf16 %v2580
        %v2613 = vunpack.c.l.bf16 %v2581
        %v2614 = vunpack.c.l.bf16 %v2582
        %v2615 = vunpack.c.l.bf16 %v2583
        %v2616 = vunpack.c.l.bf16 %v2584
        %v2617 = vunpack.c.l.bf16 %v2585
        %v2618 = vunpack.c.l.bf16 %v2586
        %v2619 = vunpack.c.l.bf16 %v2587
        %v2620 = vunpack.c.l.bf16 %v2588
        %v2621 = vunpack.c.l.bf16 %v2589
        %v2622 = vunpack.c.l.bf16 %v2590
        %v2623 = vunpack.c.l.bf16 %v2591
        %v2624 = vunpack.c.l.bf16 %v2592
        %v2625 = vunpack.c.l.bf16 %v2593
        %v2626 = vunpack.c.l.bf16 %v2594
        %v2627 = vunpack.c.l.bf16 %v2595
        %v2628 = vunpack.c.l.bf16 %v2596
        %v2629 = vunpack.c.l.bf16 %v2597
        %v2630 = vunpack.c.l.bf16 %v2598
        %v2631 = vunpack.c.l.bf16 %v2599
        %v2632 = vmul.f32 %v2410, %v2600
        %v2633 = vmul.f32 %v2415, %v2601
        %v2634 = vmul.f32 %v2420, %v2602
        %v2635 = vmul.f32 %v2425, %v2603
        %v2636 = vmul.f32 %v2430, %v2604
        %v2637 = vmul.f32 %v2435, %v2605
        %v2638 = vmul.f32 %v2440, %v2606
        %v2639 = vmul.f32 %v2445, %v2607
        %v2640 = vmul.f32 %v2450, %v2608
        %v2641 = vmul.f32 %v2455, %v2609
        %v2642 = vmul.f32 %v2460, %v2610
        %v2643 = vmul.f32 %v2465, %v2611
        %v2644 = vmul.f32 %v2470, %v2612
        %v2645 = vmul.f32 %v2475, %v2613
        %v2646 = vmul.f32 %v2480, %v2614
        %v2647 = vmul.f32 %v2485, %v2615
        %v2648 = vmul.f32 %v2490, %v2616
        %v2649 = vmul.f32 %v2495, %v2617
        %v2650 = vmul.f32 %v2500, %v2618
        %v2651 = vmul.f32 %v2505, %v2619
        %v2652 = vmul.f32 %v2510, %v2620
        %v2653 = vmul.f32 %v2515, %v2621
        %v2654 = vmul.f32 %v2520, %v2622
        %v2655 = vmul.f32 %v2525, %v2623
        %v2656 = vmul.f32 %v2530, %v2624
        %v2657 = vmul.f32 %v2535, %v2625
        %v2658 = vmul.f32 %v2540, %v2626
        %v2659 = vmul.f32 %v2545, %v2627
        %v2660 = vmul.f32 %v2550, %v2628
        %v2661 = vmul.f32 %v2555, %v2629
        %v2662 = vmul.f32 %v2560, %v2630
        %v2663 = vmul.f32 %v2565, %v2631
        %v2664 = vadd.f32 %v2183, %v2632
        %v2665 = vadd.f32 %v2184, %v2633
        %v2666 = vadd.f32 %v2185, %v2634
        %v2667 = vadd.f32 %v2186, %v2635
        %v2668 = vadd.f32 %v2187, %v2636
        %v2669 = vadd.f32 %v2188, %v2637
        %v2670 = vadd.f32 %v2189, %v2638
        %v2671 = vadd.f32 %v2190, %v2639
        %v2672 = vadd.f32 %v2191, %v2640
        %v2673 = vadd.f32 %v2192, %v2641
        %v2674 = vadd.f32 %v2193, %v2642
        %v2675 = vadd.f32 %v2194, %v2643
        %v2676 = vadd.f32 %v2195, %v2644
        %v2677 = vadd.f32 %v2196, %v2645
        %v2678 = vadd.f32 %v2197, %v2646
        %v2679 = vadd.f32 %v2198, %v2647
        %v2680 = vadd.f32 %v2199, %v2648
        %v2681 = vadd.f32 %v2200, %v2649
        %v2682 = vadd.f32 %v2201, %v2650
        %v2683 = vadd.f32 %v2202, %v2651
        %v2684 = vadd.f32 %v2203, %v2652
        %v2685 = vadd.f32 %v2204, %v2653
        %v2686 = vadd.f32 %v2205, %v2654
        %v2687 = vadd.f32 %v2206, %v2655
        %v2688 = vadd.f32 %v2207, %v2656
        %v2689 = vadd.f32 %v2208, %v2657
        %v2690 = vadd.f32 %v2209, %v2658
        %v2691 = vadd.f32 %v2210, %v2659
        %v2692 = vadd.f32 %v2211, %v2660
        %v2693 = vadd.f32 %v2212, %v2661
        %v2694 = vadd.f32 %v2213, %v2662
        %v2695 = vadd.f32 %v2214, %v2663
        %v2696 = vld [vmem:[#allocation16] sm:$0xff]
        %v2697 = vld [vmem:[#allocation16 + $0x8] sm:$0xff]
        %v2698 = vld [vmem:[#allocation16 + $0x10] sm:$0xff]
        %v2699 = vld [vmem:[#allocation16 + $0x18] sm:$0xff]
        %vm2700 = vcmask 261120
        %v2702 = vsel %vm2700, %v2664, 0
        %v2705 = vsel %vm2700, %v2665, 0
        %v2708 = vsel %vm2700, %v2666, 0
        %v2711 = vsel %vm2700, %v2667, 0
        %v2714 = vsel %vm2700, %v2668, 0
        %v2717 = vsel %vm2700, %v2669, 0
        %v2720 = vsel %vm2700, %v2670, 0
        %v2723 = vsel %vm2700, %v2671, 0
        %v2726 = vsel %vm2700, %v2672, 0
        %v2729 = vsel %vm2700, %v2673, 0
        %v2732 = vsel %vm2700, %v2674, 0
        %v2735 = vsel %vm2700, %v2675, 0
        %v2738 = vsel %vm2700, %v2676, 0
        %v2741 = vsel %vm2700, %v2677, 0
        %v2744 = vsel %vm2700, %v2678, 0
        %v2747 = vsel %vm2700, %v2679, 0
        %v2750 = vsel %vm2700, %v2680, 0
        %v2753 = vsel %vm2700, %v2681, 0
        %v2756 = vsel %vm2700, %v2682, 0
        %v2759 = vsel %vm2700, %v2683, 0
        %v2762 = vsel %vm2700, %v2684, 0
        %v2765 = vsel %vm2700, %v2685, 0
        %v2768 = vsel %vm2700, %v2686, 0
        %v2771 = vsel %vm2700, %v2687, 0
        %v2774 = vsel %vm2700, %v2688, 0
        %v2777 = vsel %vm2700, %v2689, 0
        %v2780 = vsel %vm2700, %v2690, 0
        %v2783 = vsel %vm2700, %v2691, 0
        %v2786 = vsel %vm2700, %v2692, 0
        %v2789 = vsel %vm2700, %v2693, 0
        %v2792 = vsel %vm2700, %v2694, 0
        %v2795 = vsel %vm2700, %v2695, 0
        %2797 = vmatprep.subr.mxu0 0.0
        %2798 = vmatpush1.msra.mxu0 %v2696
        %2799 = vmatprep.subr.mxu0 0.0
        %2800 = vmatpush1.msra.mxu0 %v2697
        %2801 = vmatprep.subr.mxu0 0.0
        %2802 = vmatpush1.msra.mxu0 %v2698
        %2803 = vmatprep.subr.mxu0 0.0
        %2804 = vmatpush1.msra.mxu0 %v2699
        %2805 = vmatprep.subr.mxu0 0.0
        %2806 = vmatpush1.msra.mxu0 0.0
        %2807 = vmatprep.subr.mxu0 0.0
        %2808 = vmatpush1.msra.mxu0 0.0
        %2809 = vmatprep.subr.mxu0 0.0
        %2810 = vmatpush1.msra.mxu0 0.0
        %2811 = vmatprep.subr.mxu0 0.0
        %2812 = vmatpush1.msra.mxu0 0.0
        %2813 = vmatprep.subr.mxu0 0.0
        %2814 = vmatpush1.msra.mxu0 0.0
        %2815 = vmatprep.subr.mxu0 0.0
        %2816 = vmatpush1.msra.mxu0 0.0
        %2817 = vmatprep.subr.mxu0 0.0
        %2818 = vmatpush1.msra.mxu0 0.0
        %2819 = vmatprep.subr.mxu0 0.0
        %2820 = vmatpush1.msra.mxu0 0.0
        %2821 = vmatprep.subr.mxu0 0.0
        %2822 = vmatpush1.msra.mxu0 0.0
        %2823 = vmatprep.subr.mxu0 0.0
        %2824 = vmatpush1.msra.mxu0 0.0
        %2825 = vmatprep.subr.mxu0 0.0
        %2826 = vmatpush1.msra.mxu0 0.0
        %2827 = vmatprep.subr.mxu0 0.0
        %2828 = vmatpush1.msra.mxu0 0.0
        %2829 = vmatprep.subr.mxu0 0.0
        %2830 = vmatpush1.msra.mxu0 0.0
        %2831 = vmatprep.subr.mxu0 0.0
        %2832 = vmatpush1.msra.mxu0 0.0
        %2833 = vmatprep.subr.mxu0 0.0
        %2834 = vmatpush1.msra.mxu0 0.0
        %2835 = vmatprep.subr.mxu0 0.0
        %2836 = vmatpush1.msra.mxu0 0.0
        %2837 = vmatprep.subr.mxu0 0.0
        %2838 = vmatpush1.msra.mxu0 0.0
        %2839 = vmatprep.subr.mxu0 0.0
        %2840 = vmatpush1.msra.mxu0 0.0
        %2841 = vmatprep.subr.mxu0 0.0
        %2842 = vmatpush1.msra.mxu0 0.0
        %2843 = vmatprep.subr.mxu0 0.0
        %2844 = vmatpush1.msra.mxu0 0.0
        %2845 = vmatprep.subr.mxu0 0.0
        %2846 = vmatpush1.msra.mxu0 0.0
        %2847 = vmatprep.subr.mxu0 0.0
        %2848 = vmatpush1.msra.mxu0 0.0
        %2849 = vmatprep.subr.mxu0 0.0
        %2850 = vmatpush1.msra.mxu0 0.0
        %2851 = vmatprep.subr.mxu0 0.0
        %2852 = vmatpush1.msra.mxu0 0.0
        %2853 = vmatprep.subr.mxu0 0.0
        %2854 = vmatpush1.msra.mxu0 0.0
        %2855 = vmatprep.subr.mxu0 0.0
        %2856 = vmatpush1.msra.mxu0 0.0
        %2857 = vmatprep.subr.mxu0 0.0
        %2858 = vmatpush1.msra.mxu0 0.0
        %2859 = vmatprep.subr.mxu0 0.0
        %2860 = vmatpush1.msra.mxu0 0.0
        %2861 = vmatprep.mubr.f32.mxu0 0.0
        %2862 = vmatmul.mubr.f32.gmra.mrb[0].mxu0 %v2702
        %v2863 = vpop.f32.mrb[0].mxu0
        %v2864 = vadd.f32 0.0, %v2863
        %v2865 = vpop.f32.mrb[0].mxu0
        %2866 = vmatprep.mubr.f32.mxu0 0.0
        %2867 = vmatmul.mubr.f32.gmra.mrb[0].mxu0 %v2705
        %v2868 = vpop.f32.mrb[0].mxu0
        %v2869 = vadd.f32 0.0, %v2868
        %v2870 = vpop.f32.mrb[0].mxu0
        %2871 = vmatprep.mubr.f32.mxu0 0.0
        %2872 = vmatmul.mubr.f32.gmra.mrb[0].mxu0 %v2708
        %v2873 = vpop.f32.mrb[0].mxu0
        %v2874 = vadd.f32 0.0, %v2873
        %v2875 = vpop.f32.mrb[0].mxu0
        %2876 = vmatprep.mubr.f32.mxu0 0.0
        %2877 = vmatmul.mubr.f32.gmra.mrb[0].mxu0 %v2711
        %v2878 = vpop.f32.mrb[0].mxu0
        %v2879 = vadd.f32 0.0, %v2878
        %v2880 = vpop.f32.mrb[0].mxu0
        %2881 = vmatprep.mubr.f32.mxu0 0.0
        %2882 = vmatmul.mubr.f32.gmra.mrb[0].mxu0 %v2714
        %v2883 = vpop.f32.mrb[0].mxu0
        %v2884 = vadd.f32 0.0, %v2883
        %v2885 = vpop.f32.mrb[0].mxu0
        %2886 = vmatprep.mubr.f32.mxu0 0.0
        %2887 = vmatmul.mubr.f32.gmra.mrb[0].mxu0 %v2717
        %v2888 = vpop.f32.mrb[0].mxu0
        %v2889 = vadd.f32 0.0, %v2888
        %v2890 = vpop.f32.mrb[0].mxu0
        %2891 = vmatprep.mubr.f32.mxu0 0.0
        %2892 = vmatmul.mubr.f32.gmra.mrb[0].mxu0 %v2720
        %v2893 = vpop.f32.mrb[0].mxu0
        %v2894 = vadd.f32 0.0, %v2893
        %v2895 = vpop.f32.mrb[0].mxu0
        %2896 = vmatprep.mubr.f32.mxu0 0.0
        %2897 = vmatmul.mubr.f32.gmra.mrb[0].mxu0 %v2723
        %v2898 = vpop.f32.mrb[0].mxu0
        %v2899 = vadd.f32 0.0, %v2898
        %v2900 = vpop.f32.mrb[0].mxu0
        %2901 = vmatprep.mubr.f32.mxu0 0.0
        %2902 = vmatmul.mubr.f32.gmra.mrb[0].mxu0 %v2726
        %v2903 = vpop.f32.mrb[0].mxu0
        %v2904 = vadd.f32 0.0, %v2903
        %v2905 = vpop.f32.mrb[0].mxu0
        %2906 = vmatprep.mubr.f32.mxu0 0.0
        %2907 = vmatmul.mubr.f32.gmra.mrb[0].mxu0 %v2729
        %v2908 = vpop.f32.mrb[0].mxu0
        %v2909 = vadd.f32 0.0, %v2908
        %v2910 = vpop.f32.mrb[0].mxu0
        %2911 = vmatprep.mubr.f32.mxu0 0.0
        %2912 = vmatmul.mubr.f32.gmra.mrb[0].mxu0 %v2732
        %v2913 = vpop.f32.mrb[0].mxu0
        %v2914 = vadd.f32 0.0, %v2913
        %v2915 = vpop.f32.mrb[0].mxu0
        %2916 = vmatprep.mubr.f32.mxu0 0.0
        %2917 = vmatmul.mubr.f32.gmra.mrb[0].mxu0 %v2735
        %v2918 = vpop.f32.mrb[0].mxu0
        %v2919 = vadd.f32 0.0, %v2918
        %v2920 = vpop.f32.mrb[0].mxu0
        %2921 = vmatprep.mubr.f32.mxu0 0.0
        %2922 = vmatmul.mubr.f32.gmra.mrb[0].mxu0 %v2738
        %v2923 = vpop.f32.mrb[0].mxu0
        %v2924 = vadd.f32 0.0, %v2923
        %v2925 = vpop.f32.mrb[0].mxu0
        %2926 = vmatprep.mubr.f32.mxu0 0.0
        %2927 = vmatmul.mubr.f32.gmra.mrb[0].mxu0 %v2741
        %v2928 = vpop.f32.mrb[0].mxu0
        %v2929 = vadd.f32 0.0, %v2928
        %v2930 = vpop.f32.mrb[0].mxu0
        %2931 = vmatprep.mubr.f32.mxu0 0.0
        %2932 = vmatmul.mubr.f32.gmra.mrb[0].mxu0 %v2744
        %v2933 = vpop.f32.mrb[0].mxu0
        %v2934 = vadd.f32 0.0, %v2933
        %v2935 = vpop.f32.mrb[0].mxu0
        %2936 = vmatprep.mubr.f32.mxu0 0.0
        %2937 = vmatmul.mubr.f32.gmra.mrb[0].mxu0 %v2747
        %v2938 = vpop.f32.mrb[0].mxu0
        %v2939 = vadd.f32 0.0, %v2938
        %v2940 = vpop.f32.mrb[0].mxu0
        %2941 = vmatprep.mubr.f32.mxu0 0.0
        %2942 = vmatmul.mubr.f32.gmra.mrb[0].mxu0 %v2750
        %v2943 = vpop.f32.mrb[0].mxu0
        %v2944 = vadd.f32 0.0, %v2943
        %v2945 = vpop.f32.mrb[0].mxu0
        %2946 = vmatprep.mubr.f32.mxu0 0.0
        %2947 = vmatmul.mubr.f32.gmra.mrb[0].mxu0 %v2753
        %v2948 = vpop.f32.mrb[0].mxu0
        %v2949 = vadd.f32 0.0, %v2948
        %v2950 = vpop.f32.mrb[0].mxu0
        %2951 = vmatprep.mubr.f32.mxu0 0.0
        %2952 = vmatmul.mubr.f32.gmra.mrb[0].mxu0 %v2756
        %v2953 = vpop.f32.mrb[0].mxu0
        %v2954 = vadd.f32 0.0, %v2953
        %v2955 = vpop.f32.mrb[0].mxu0
        %2956 = vmatprep.mubr.f32.mxu0 0.0
        %2957 = vmatmul.mubr.f32.gmra.mrb[0].mxu0 %v2759
        %v2958 = vpop.f32.mrb[0].mxu0
        %v2959 = vadd.f32 0.0, %v2958
        %v2960 = vpop.f32.mrb[0].mxu0
        %2961 = vmatprep.mubr.f32.mxu0 0.0
        %2962 = vmatmul.mubr.f32.gmra.mrb[0].mxu0 %v2762
        %v2963 = vpop.f32.mrb[0].mxu0
        %v2964 = vadd.f32 0.0, %v2963
        %v2965 = vpop.f32.mrb[0].mxu0
        %2966 = vmatprep.mubr.f32.mxu0 0.0
        %2967 = vmatmul.mubr.f32.gmra.mrb[0].mxu0 %v2765
        %v2968 = vpop.f32.mrb[0].mxu0
        %v2969 = vadd.f32 0.0, %v2968
        %v2970 = vpop.f32.mrb[0].mxu0
        %2971 = vmatprep.mubr.f32.mxu0 0.0
        %2972 = vmatmul.mubr.f32.gmra.mrb[0].mxu0 %v2768
        %v2973 = vpop.f32.mrb[0].mxu0
        %v2974 = vadd.f32 0.0, %v2973
        %v2975 = vpop.f32.mrb[0].mxu0
        %2976 = vmatprep.mubr.f32.mxu0 0.0
        %2977 = vmatmul.mubr.f32.gmra.mrb[0].mxu0 %v2771
        %v2978 = vpop.f32.mrb[0].mxu0
        %v2979 = vadd.f32 0.0, %v2978
        %v2980 = vpop.f32.mrb[0].mxu0
        %2981 = vmatprep.mubr.f32.mxu0 0.0
        %2982 = vmatmul.mubr.f32.gmra.mrb[0].mxu0 %v2774
        %v2983 = vpop.f32.mrb[0].mxu0
        %v2984 = vadd.f32 0.0, %v2983
        %v2985 = vpop.f32.mrb[0].mxu0
        %2986 = vmatprep.mubr.f32.mxu0 0.0
        %2987 = vmatmul.mubr.f32.gmra.mrb[0].mxu0 %v2777
        %v2988 = vpop.f32.mrb[0].mxu0
        %v2989 = vadd.f32 0.0, %v2988
        %v2990 = vpop.f32.mrb[0].mxu0
        %2991 = vmatprep.mubr.f32.mxu0 0.0
        %2992 = vmatmul.mubr.f32.gmra.mrb[0].mxu0 %v2780
        %v2993 = vpop.f32.mrb[0].mxu0
        %v2994 = vadd.f32 0.0, %v2993
        %v2995 = vpop.f32.mrb[0].mxu0
        %2996 = vmatprep.mubr.f32.mxu0 0.0
        %2997 = vmatmul.mubr.f32.gmra.mrb[0].mxu0 %v2783
        %v2998 = vpop.f32.mrb[0].mxu0
        %v2999 = vadd.f32 0.0, %v2998
        %v3000 = vpop.f32.mrb[0].mxu0
        %3001 = vmatprep.mubr.f32.mxu0 0.0
        %3002 = vmatmul.mubr.f32.gmra.mrb[0].mxu0 %v2786
        %v3003 = vpop.f32.mrb[0].mxu0
        %v3004 = vadd.f32 0.0, %v3003
        %v3005 = vpop.f32.mrb[0].mxu0
        %3006 = vmatprep.mubr.f32.mxu0 0.0
        %3007 = vmatmul.mubr.f32.gmra.mrb[0].mxu0 %v2789
        %v3008 = vpop.f32.mrb[0].mxu0
        %v3009 = vadd.f32 0.0, %v3008
        %v3010 = vpop.f32.mrb[0].mxu0
        %3011 = vmatprep.mubr.f32.mxu0 0.0
        %3012 = vmatmul.mubr.f32.gmra.mrb[0].mxu0 %v2792
        %v3013 = vpop.f32.mrb[0].mxu0
        %v3014 = vadd.f32 0.0, %v3013
        %v3015 = vpop.f32.mrb[0].mxu0
        %3016 = vmatprep.mubr.f32.mxu0 0.0
        %3017 = vmatmul.mubr.f32.gmra.mrb[0].mxu0 %v2795
        %v3018 = vpop.f32.mrb[0].mxu0
        %v3019 = vadd.f32 0.0, %v3018
        %v3020 = vpop.f32.mrb[0].mxu0
        %3021 = vdwg.mxu0
        %3022 = vst.msk [vmem:[%s771] sm:$0xff] %vm835, %v2864
        %3023 = vst.msk [vmem:[%s771 + $0x8] sm:$0xff] %vm835, %v2869
        %3024 = vst.msk [vmem:[%s771 + $0x10] sm:$0xff] %vm835, %v2874
        %3025 = vst.msk [vmem:[%s771 + $0x18] sm:$0xff] %vm835, %v2879
        %3026 = vst.msk [vmem:[%s771 + $0x20] sm:$0xff] %vm835, %v2884
        %3027 = vst.msk [vmem:[%s771 + $0x28] sm:$0xff] %vm835, %v2889
        %3028 = vst.msk [vmem:[%s771 + $0x30] sm:$0xff] %vm835, %v2894
        %3029 = vst.msk [vmem:[%s771 + $0x38] sm:$0xff] %vm835, %v2899
        %3030 = vst.msk [vmem:[%s771 + $0x40] sm:$0xff] %vm835, %v2904
        %3031 = vst.msk [vmem:[%s771 + $0x48] sm:$0xff] %vm835, %v2909
        %3032 = vst.msk [vmem:[%s771 + $0x50] sm:$0xff] %vm835, %v2914
        %3033 = vst.msk [vmem:[%s771 + $0x58] sm:$0xff] %vm835, %v2919
        %3034 = vst.msk [vmem:[%s771 + $0x60] sm:$0xff] %vm835, %v2924
        %3035 = vst.msk [vmem:[%s771 + $0x68] sm:$0xff] %vm835, %v2929
        %3036 = vst.msk [vmem:[%s771 + $0x70] sm:$0xff] %vm835, %v2934
        %3037 = vst.msk [vmem:[%s771 + $0x78] sm:$0xff] %vm835, %v2939
        %3038 = vst.msk [vmem:[%s771 + $0x80] sm:$0xff] %vm835, %v2944
        %3039 = vst.msk [vmem:[%s771 + $0x88] sm:$0xff] %vm835, %v2949
        %3040 = vst.msk [vmem:[%s771 + $0x90] sm:$0xff] %vm835, %v2954
        %3041 = vst.msk [vmem:[%s771 + $0x98] sm:$0xff] %vm835, %v2959
        %3042 = vst.msk [vmem:[%s771 + $0xa0] sm:$0xff] %vm835, %v2964
        %3043 = vst.msk [vmem:[%s771 + $0xa8] sm:$0xff] %vm835, %v2969
        %3044 = vst.msk [vmem:[%s771 + $0xb0] sm:$0xff] %vm835, %v2974
        %3045 = vst.msk [vmem:[%s771 + $0xb8] sm:$0xff] %vm835, %v2979
        %3046 = vst.msk [vmem:[%s771 + $0xc0] sm:$0xff] %vm835, %v2984
        %3047 = vst.msk [vmem:[%s771 + $0xc8] sm:$0xff] %vm835, %v2989
        %3048 = vst.msk [vmem:[%s771 + $0xd0] sm:$0xff] %vm835, %v2994
        %3049 = vst.msk [vmem:[%s771 + $0xd8] sm:$0xff] %vm835, %v2999
        %3050 = vst.msk [vmem:[%s771 + $0xe0] sm:$0xff] %vm835, %v3004
        %3051 = vst.msk [vmem:[%s771 + $0xe8] sm:$0xff] %vm835, %v3009
        %3052 = vst.msk [vmem:[%s771 + $0xf0] sm:$0xff] %vm835, %v3014
        %3053 = vst.msk [vmem:[%s771 + $0xf8] sm:$0xff] %vm835, %v3019
        %p3054 = scmp.eq.s32.totalorder %s51, 0
        // Predicated region
        $region101: #{tpu_custom_call.1} parent=59 // pred_check
          %p3055 = pneg %p3054
        $region102: #{tpu_custom_call.1} parent=59 // pred_check_branch
          %3057 = sbr.rel (%p3055) target = $region104
        $region103: #{tpu_custom_call.1} parent=59 // pred_region
          %vm3058 = vcmask 57344
          %3059 = vst.msk [vmem:[%s777] sm:$0x1] %vm3058, 0.0
          %3060 = vst.msk [vmem:[%s783] sm:$0x1] %vm3058, 0.0
        $region104: #{tpu_custom_call.1} parent=59 // pred_fallthru
          _
        %v3061 = vld [vmem:[%s777] sm:$0x1]
        %v3062 = vsel %vm835, %v2864, 0.0
        %v3063 = vsel %vm835, %v2869, 0.0
        %v3064 = vadd.f32 %v3062, %v3063
        %v3065 = vsel %vm835, %v2874, 0.0
        %v3066 = vadd.f32 %v3064, %v3065
        %v3067 = vsel %vm835, %v2879, 0.0
        %v3068 = vadd.f32 %v3066, %v3067
        %v3069 = vsel %vm835, %v2884, 0.0
        %v3070 = vadd.f32 %v3068, %v3069
        %v3071 = vsel %vm835, %v2889, 0.0
        %v3072 = vadd.f32 %v3070, %v3071
        %v3073 = vsel %vm835, %v2894, 0.0
        %v3074 = vadd.f32 %v3072, %v3073
        %v3075 = vsel %vm835, %v2899, 0.0
        %v3076 = vadd.f32 %v3074, %v3075
        %v3077 = vsel %vm835, %v2904, 0.0
        %v3078 = vadd.f32 %v3076, %v3077
        %v3079 = vsel %vm835, %v2909, 0.0
        %v3080 = vadd.f32 %v3078, %v3079
        %v3081 = vsel %vm835, %v2914, 0.0
        %v3082 = vadd.f32 %v3080, %v3081
        %v3083 = vsel %vm835, %v2919, 0.0
        %v3084 = vadd.f32 %v3082, %v3083
        %v3085 = vsel %vm835, %v2924, 0.0
        %v3086 = vadd.f32 %v3084, %v3085
        %v3087 = vsel %vm835, %v2929, 0.0
        %v3088 = vadd.f32 %v3086, %v3087
        %v3089 = vsel %vm835, %v2934, 0.0
        %v3090 = vadd.f32 %v3088, %v3089
        %v3091 = vsel %vm835, %v2939, 0.0
        %v3092 = vadd.f32 %v3090, %v3091
        %v3093 = vsel %vm835, %v2944, 0.0
        %v3094 = vadd.f32 %v3092, %v3093
        %v3095 = vsel %vm835, %v2949, 0.0
        %v3096 = vadd.f32 %v3094, %v3095
        %v3097 = vsel %vm835, %v2954, 0.0
        %v3098 = vadd.f32 %v3096, %v3097
        %v3099 = vsel %vm835, %v2959, 0.0
        %v3100 = vadd.f32 %v3098, %v3099
        %v3101 = vsel %vm835, %v2964, 0.0
        %v3102 = vadd.f32 %v3100, %v3101
        %v3103 = vsel %vm835, %v2969, 0.0
        %v3104 = vadd.f32 %v3102, %v3103
        %v3105 = vsel %vm835, %v2974, 0.0
        %v3106 = vadd.f32 %v3104, %v3105
        %v3107 = vsel %vm835, %v2979, 0.0
        %v3108 = vadd.f32 %v3106, %v3107
        %v3109 = vsel %vm835, %v2984, 0.0
        %v3110 = vadd.f32 %v3108, %v3109
        %v3111 = vsel %vm835, %v2989, 0.0
        %v3112 = vadd.f32 %v3110, %v3111
        %v3113 = vsel %vm835, %v2994, 0.0
        %v3114 = vadd.f32 %v3112, %v3113
        %v3115 = vsel %vm835, %v2999, 0.0
        %v3116 = vadd.f32 %v3114, %v3115
        %v3117 = vsel %vm835, %v3004, 0.0
        %v3118 = vadd.f32 %v3116, %v3117
        %v3119 = vsel %vm835, %v3009, 0.0
        %v3120 = vadd.f32 %v3118, %v3119
        %v3121 = vsel %vm835, %v3014, 0.0
        %v3122 = vadd.f32 %v3120, %v3121
        %v3123 = vsel %vm835, %v3019, 0.0
        %v3124 = vadd.f32 %v3122, %v3123
        %v3125 = vrot.slane %v3124, 4
        %v3126 = vadd.f32 %v3124, %v3125
        %v3127 = vrot.slane %v3126, 2
        %v3128 = vadd.f32 %v3126, %v3127
        %v3129 = vrot.slane %v3128, 1
        %v3130 = vadd.f32 %v3128, %v3129
        %v3131 = vadd.f32 %v3061, %v3130
        %vm3132 = vcmask 57344
        %3133 = vst.msk [vmem:[%s777] sm:$0x1] %vm3132, %v3131
        %v3134 = vld [vmem:[%s783] sm:$0x1]
        %v3135 = vmul.f32 %v2864, %v2864
        %v3136 = vmul.f32 %v2869, %v2869
        %v3137 = vmul.f32 %v2874, %v2874
        %v3138 = vmul.f32 %v2879, %v2879
        %v3139 = vmul.f32 %v2884, %v2884
        %v3140 = vmul.f32 %v2889, %v2889
        %v3141 = vmul.f32 %v2894, %v2894
        %v3142 = vmul.f32 %v2899, %v2899
        %v3143 = vmul.f32 %v2904, %v2904
        %v3144 = vmul.f32 %v2909, %v2909
        %v3145 = vmul.f32 %v2914, %v2914
        %v3146 = vmul.f32 %v2919, %v2919
        %v3147 = vmul.f32 %v2924, %v2924
        %v3148 = vmul.f32 %v2929, %v2929
        %v3149 = vmul.f32 %v2934, %v2934
        %v3150 = vmul.f32 %v2939, %v2939
        %v3151 = vmul.f32 %v2944, %v2944
        %v3152 = vmul.f32 %v2949, %v2949
        %v3153 = vmul.f32 %v2954, %v2954
        %v3154 = vmul.f32 %v2959, %v2959
        %v3155 = vmul.f32 %v2964, %v2964
        %v3156 = vmul.f32 %v2969, %v2969
        %v3157 = vmul.f32 %v2974, %v2974
        %v3158 = vmul.f32 %v2979, %v2979
        %v3159 = vmul.f32 %v2984, %v2984
        %v3160 = vmul.f32 %v2989, %v2989
        %v3161 = vmul.f32 %v2994, %v2994
        %v3162 = vmul.f32 %v2999, %v2999
        %v3163 = vmul.f32 %v3004, %v3004
        %v3164 = vmul.f32 %v3009, %v3009
        %v3165 = vmul.f32 %v3014, %v3014
        %v3166 = vmul.f32 %v3019, %v3019
        %v3167 = vsel %vm835, %v3135, 0.0
        %v3168 = vsel %vm835, %v3136, 0.0
        %v3169 = vadd.f32 %v3167, %v3168
        %v3170 = vsel %vm835, %v3137, 0.0
        %v3171 = vadd.f32 %v3169, %v3170
        %v3172 = vsel %vm835, %v3138, 0.0
        %v3173 = vadd.f32 %v3171, %v3172
        %v3174 = vsel %vm835, %v3139, 0.0
        %v3175 = vadd.f32 %v3173, %v3174
        %v3176 = vsel %vm835, %v3140, 0.0
        %v3177 = vadd.f32 %v3175, %v3176
        %v3178 = vsel %vm835, %v3141, 0.0
        %v3179 = vadd.f32 %v3177, %v3178
        %v3180 = vsel %vm835, %v3142, 0.0
        %v3181 = vadd.f32 %v3179, %v3180
        %v3182 = vsel %vm835, %v3143, 0.0
        %v3183 = vadd.f32 %v3181, %v3182
        %v3184 = vsel %vm835, %v3144, 0.0
        %v3185 = vadd.f32 %v3183, %v3184
        %v3186 = vsel %vm835, %v3145, 0.0
        %v3187 = vadd.f32 %v3185, %v3186
        %v3188 = vsel %vm835, %v3146, 0.0
        %v3189 = vadd.f32 %v3187, %v3188
        %v3190 = vsel %vm835, %v3147, 0.0
        %v3191 = vadd.f32 %v3189, %v3190
        %v3192 = vsel %vm835, %v3148, 0.0
        %v3193 = vadd.f32 %v3191, %v3192
        %v3194 = vsel %vm835, %v3149, 0.0
        %v3195 = vadd.f32 %v3193, %v3194
        %v3196 = vsel %vm835, %v3150, 0.0
        %v3197 = vadd.f32 %v3195, %v3196
        %v3198 = vsel %vm835, %v3151, 0.0
        %v3199 = vadd.f32 %v3197, %v3198
        %v3200 = vsel %vm835, %v3152, 0.0
        %v3201 = vadd.f32 %v3199, %v3200
        %v3202 = vsel %vm835, %v3153, 0.0
        %v3203 = vadd.f32 %v3201, %v3202
        %v3204 = vsel %vm835, %v3154, 0.0
        %v3205 = vadd.f32 %v3203, %v3204
        %v3206 = vsel %vm835, %v3155, 0.0
        %v3207 = vadd.f32 %v3205, %v3206
        %v3208 = vsel %vm835, %v3156, 0.0
        %v3209 = vadd.f32 %v3207, %v3208
        %v3210 = vsel %vm835, %v3157, 0.0
        %v3211 = vadd.f32 %v3209, %v3210
        %v3212 = vsel %vm835, %v3158, 0.0
        %v3213 = vadd.f32 %v3211, %v3212
        %v3214 = vsel %vm835, %v3159, 0.0
        %v3215 = vadd.f32 %v3213, %v3214
        %v3216 = vsel %vm835, %v3160, 0.0
        %v3217 = vadd.f32 %v3215, %v3216
        %v3218 = vsel %vm835, %v3161, 0.0
        %v3219 = vadd.f32 %v3217, %v3218
        %v3220 = vsel %vm835, %v3162, 0.0
        %v3221 = vadd.f32 %v3219, %v3220
        %v3222 = vsel %vm835, %v3163, 0.0
        %v3223 = vadd.f32 %v3221, %v3222
        %v3224 = vsel %vm835, %v3164, 0.0
        %v3225 = vadd.f32 %v3223, %v3224
        %v3226 = vsel %vm835, %v3165, 0.0
        %v3227 = vadd.f32 %v3225, %v3226
        %v3228 = vsel %vm835, %v3166, 0.0
        %v3229 = vadd.f32 %v3227, %v3228
        %v3230 = vrot.slane %v3229, 4
        %v3231 = vadd.f32 %v3229, %v3230
        %v3232 = vrot.slane %v3231, 2
        %v3233 = vadd.f32 %v3231, %v3232
        %v3234 = vrot.slane %v3233, 1
        %v3235 = vadd.f32 %v3233, %v3234
        %v3236 = vadd.f32 %v3134, %v3235
        %3237 = vst.msk [vmem:[%s783] sm:$0x1] %vm3132, %v3236
        %s3238 = sand.u32 %s334, 1
        %s3239 = scalar_lea.sflag [#allocation4], %s3238
        %s3240 = sand.u32 %s334, 1
        %s3241 = smul.addr %s3240, 256
        %s3242 = scalar_lea.vmem [#allocation19], %s3241
        %s3243 = sand.u32 %s46, 1
        %s3244 = scalar_lea.sflag [#allocation21], %s3243
        %s3245 = sand.u32 %s360, 1
        %s3246 = scalar_lea.vmem [#allocation20], %s3245
        %s3247 = sand.u32 %s46, 1
        %s3248 = scalar_lea.sflag [#allocation21], %s3247
        %s3249 = sand.u32 %s386, 1
        %s3250 = scalar_lea.vmem [#allocation22], %s3249
        // Predicated region
        $region105: #{tpu_custom_call.1} parent=59 // pred_check
          %p3251 = pneg %p344
        $region106: #{tpu_custom_call.1} parent=59 // pred_check_branch
          %3253 = sbr.rel (%p3251) target = $region108
        $region107: #{tpu_custom_call.1} parent=59 // pred_region
          %s3254 = sadd.s32 %s50, %s51
          %s3255 = smul.u32 32, %s3254
          %s3257 = ssub.s32 4096, 4096
          %3258 = vsyncadd %s3239, %s3257
          %s3259 = smul.addr %s3255, 128
          %s3260 = scalar_lea.hbm %s10, %s3259
          %s3261 = sshll.u32 %s3242, 4
          %s3262 = int_to_ptr.vmem [resolvable:$true] %s3261
          %3267 = dma.vmem_to_hbm [thread:$0]  %s3262, 4096, %s3260, %s3239, 128, 128, 8
        $region108: #{tpu_custom_call.1} parent=59 // pred_fallthru
          _
        // Predicated region
        $region109: #{tpu_custom_call.1} parent=59 // pred_check
          %p3268 = pneg %p370
        $region110: #{tpu_custom_call.1} parent=59 // pred_check_branch
          %3270 = sbr.rel (%p3268) target = $region112
        $region111: #{tpu_custom_call.1} parent=59 // pred_region
          %s3272 = ssub.s32 16, 16
          %3273 = vsyncadd %s3244, %s3272
          %s3274 = smul.addr %s50, 16
          %s3275 = scalar_lea.hbm %s11, %s3274
          %s3277 = sshll.u32 %s3246, 4
          %s3278 = int_to_ptr.vmem [resolvable:$true] %s3277
          %3280 = dma.vmem_to_hbm [thread:$0]  %s3278, 16, %s3275, %s3244
        $region112: #{tpu_custom_call.1} parent=59 // pred_fallthru
          _
        // Predicated region
        $region113: #{tpu_custom_call.1} parent=59 // pred_check
          %p3281 = pneg %p396
        $region114: #{tpu_custom_call.1} parent=59 // pred_check_branch
          %3283 = sbr.rel (%p3281) target = $region116
        $region115: #{tpu_custom_call.1} parent=59 // pred_region
          %s3285 = ssub.s32 16, 16
          %3286 = vsyncadd %s3248, %s3285
          %s3287 = smul.addr %s50, 16
          %s3288 = scalar_lea.hbm %s12, %s3287
          %s3290 = sshll.u32 %s3250, 4
          %s3291 = int_to_ptr.vmem [resolvable:$true] %s3290
          %3293 = dma.vmem_to_hbm [thread:$0]  %s3291, 16, %s3288, %s3248
        $region116: #{tpu_custom_call.1} parent=59 // pred_fallthru
          _
      $region60: #{tpu_custom_call.1} parent=5 // pred_fallthru
        _
      %p3294 = scmp.le.s32.totalorder 2, %s41
      // Predicated region
      $region117: #{tpu_custom_call.1} parent=5 // pred_check
        %p3295 = pneg %p3294
      $region118: #{tpu_custom_call.1} parent=5 // pred_check_branch
        %3297 = sbr.rel (%p3295) target = $region120
      $region119: #{tpu_custom_call.1} parent=5 // pred_region
        %s3298 = ssub.s32 %s41, 2
        // Predicated region
        $region121: #{tpu_custom_call.1} parent=119 // pred_check
          %p3299 = pneg %p350
        $region122: #{tpu_custom_call.1} parent=119 // pred_check_branch
          %3301 = sbr.rel (%p3299) target = $region124
        $region123: #{tpu_custom_call.1} parent=119 // pred_region
          %s3302 = sand.u32 %s335, 1
          %s3303 = scalar_lea.sflag [#allocation4], %s3302
          %s3304 = sand.u32 %s335, 1
          %s3305 = smul.addr %s3304, 256
          %s3306 = scalar_lea.vmem [#allocation19], %s3305
          %3307 = dma.done %s3303, 4096
        $region124: #{tpu_custom_call.1} parent=119 // pred_fallthru
          _
        // Predicated region
        $region125: #{tpu_custom_call.1} parent=119 // pred_check
          %p3308 = pneg %p376
        $region126: #{tpu_custom_call.1} parent=119 // pred_check_branch
          %3310 = sbr.rel (%p3308) target = $region128
        $region127: #{tpu_custom_call.1} parent=119 // pred_region
          %s3311 = sand.u32 %s47, 1
          %s3312 = scalar_lea.sflag [#allocation21], %s3311
          %s3313 = sand.u32 %s361, 1
          %s3314 = scalar_lea.vmem [#allocation20], %s3313
          %3315 = dma.done %s3312, 16
        $region128: #{tpu_custom_call.1} parent=119 // pred_fallthru
          _
        // Predicated region
        $region129: #{tpu_custom_call.1} parent=119 // pred_check
          %p3316 = pneg %p402
        $region130: #{tpu_custom_call.1} parent=119 // pred_check_branch
          %3318 = sbr.rel (%p3316) target = $region132
        $region131: #{tpu_custom_call.1} parent=119 // pred_region
          %s3319 = sand.u32 %s47, 1
          %s3320 = scalar_lea.sflag [#allocation21], %s3319
          %s3321 = sand.u32 %s387, 1
          %s3322 = scalar_lea.vmem [#allocation22], %s3321
          %3323 = dma.done %s3320, 16
        $region132: #{tpu_custom_call.1} parent=119 // pred_fallthru
          _
      $region120: #{tpu_custom_call.1} parent=5 // pred_fallthru
        _
    $region6: #{tpu_custom_call.1} parent=1 // loop_footer
      %s45 = sadd.s32 1, %s41
    $region7: #{tpu_custom_call.1} parent=1 // loop_footer_branch
      %40 = sbr.rel target = $region3
    $region8: #{tpu_custom_call.1} parent=1 // loop_exit
      _
    %3324 = vsyncpa [#allocation3], 1
    %s3325 = scalar_lea.sflag [#allocation3], 1
    %3326 = vsyncpa %s3325, 1
    %3327 = vsyncpa [#allocation6], 1
    %s3328 = scalar_lea.sflag [#allocation6], 1
    %3329 = vsyncpa %s3328, 1
    %3330 = vsyncpa [#allocation9], 1
    %s3331 = scalar_lea.sflag [#allocation9], 1
    %3332 = vsyncpa %s3331, 1
    %3333 = vsyncpa [#allocation12], 1
    %s3334 = scalar_lea.sflag [#allocation12], 1
    %3335 = vsyncpa %s3334, 1
    %3336 = vsyncpa [#allocation15], 1
    %s3337 = scalar_lea.sflag [#allocation15], 1
    %3338 = vsyncpa %s3337, 1
    %3339 = vsyncpa [#allocation18], 1
    %3340 = vsyncpa [#allocation4], 1
    %s3341 = scalar_lea.sflag [#allocation4], 1
    %3342 = vsyncpa %s3341, 1
    %3343 = vsyncpa [#allocation21], 1
    %s3344 = scalar_lea.sflag [#allocation21], 1
    %3345 = vsyncpa %s3344, 1

</llo_original>
